<compile_context>
chip_gen: v7x
topology: tpu7x:2x2x1
jax: 0.10.0
libtpu: 0.0.40
codegen_flags: <defaults>
</compile_context>

<pallas_src>
import functools

import numpy as np
import jax
import jax.numpy as jnp
from jax.experimental import pallas as pl
from jax.experimental.pallas import tpu as pltpu

SAMPLE_RATE = 22050
N_FFT = 1024
HOP = 512                  # == N_FFT // 2 (chunk-pair framing relies on this)
N_MELS = 64
N_FREQS = N_FFT // 2 + 1   # 513 onesided bins (reference path)
N_F = 512                  # bins used in-kernel: 0..511 (Nyquist bin has zero
                           # mel weight, so dropping it is exact for the mel
                           # output and keeps every operand lane-aligned)
N_CHANNELS = 3


# ----------------------------------------------------------------------------
# Host-side constants (window-folded DFT basis + HTK mel filterbank), built in
# float64 with numpy, stored as f32.
# ----------------------------------------------------------------------------
def _hann_window(n):
    # torch.hann_window(n), periodic=True
    return 0.5 * (1.0 - np.cos(2.0 * np.pi * np.arange(n) / n))


def _mel_filterbank(n_freqs, n_mels, sample_rate, f_min=0.0, f_max=None):
    # torchaudio.functional.melscale_fbanks(..., norm=None, mel_scale="htk")
    if f_max is None:
        f_max = sample_rate / 2.0
    all_freqs = np.linspace(0.0, sample_rate // 2, n_freqs)
    hz_to_mel = lambda f: 2595.0 * np.log10(1.0 + f / 700.0)
    mel_to_hz = lambda m: 700.0 * (10.0 ** (m / 2595.0) - 1.0)
    m_pts = np.linspace(hz_to_mel(f_min), hz_to_mel(f_max), n_mels + 2)
    f_pts = mel_to_hz(m_pts)
    f_diff = f_pts[1:] - f_pts[:-1]                 # (n_mels+1,)
    slopes = f_pts[None, :] - all_freqs[:, None]    # (n_freqs, n_mels+2)
    down = -slopes[:, :-2] / f_diff[:-1]
    up = slopes[:, 2:] / f_diff[1:]
    return np.maximum(0.0, np.minimum(down, up))    # (n_freqs, n_mels)


def make_constants():
    n = np.arange(N_FFT)
    k = np.arange(N_F)
    # mod-reduce the phase so the trig argument stays in [0, 2*pi)
    phase = (2.0 * np.pi / N_FFT) * ((n[:, None] * k[None, :]) % N_FFT)
    win = _hann_window(N_FFT)[:, None]
    w_re = win * np.cos(phase)                      # (1024, 512)
    w_im = -win * np.sin(phase)                     # (1024, 512)
    # pack [re | im] side-by-side, then split into the two hop-sized halves
    # consumed by the chunk-pair framing: W[0] hits chunk_t, W[1] chunk_{t+1}
    w = np.concatenate([w_re, w_im], axis=1)        # (1024, 1024)
    w = w.reshape(2, HOP, 2 * N_F)                  # (2, 512, 1024)
    # mel filterbank, stored transposed (n_mels, N_F) so the kernel can use a
    # contract-last-with-last dot_general (output already (n_mels, T)).
    # Rows 0..511 only; row 512 (Nyquist) is identically zero for HTK fbanks
    # with f_min=0, f_max=sr/2, so truncation does not change the mel output.
    fb_t = _mel_filterbank(N_FREQS, N_MELS, SAMPLE_RATE).T[:, :N_F]  # (64, 512)
    return jnp.asarray(w, jnp.float32), jnp.asarray(fb_t, jnp.float32)


# ----------------------------------------------------------------------------
# Fused kernel: one batch element per grid step.
# ----------------------------------------------------------------------------
def _melspec_kernel(x_ref, w_ref, fbt_ref, o_ref, *, n_frames, n_channels):
    # x_ref: (n_frames+1, HOP) hop-sized chunks of the reflect-padded wave.
    # Frame t = [chunk_t | chunk_{t+1}] (hop == win//2), so the windowed DFT
    # is two K=HOP matmuls against the two halves of the folded [re|im] basis.
    c0 = x_ref[pl.ds(0, n_frames), :]                     # (T, HOP)
    c1 = x_ref[pl.ds(1, n_frames), :]                     # (T, HOP)
    y = (jnp.dot(c0, w_ref[0], preferred_element_type=jnp.float32) +
         jnp.dot(c1, w_ref[1], preferred_element_type=jnp.float32))  # (T, 2*N_F)
    re = y[:, :N_F]                                       # lane-aligned slices
    im = y[:, N_F:]
    power = re * re + im * im                             # (T, N_F) = |STFT|^2
    # mel, produced directly transposed: (n_mels, T) — contract both last dims
    # (fb_t is (n_mels, N_F)); avoids any standalone transpose.
    mel_t = jax.lax.dot_general(
        fbt_ref[...], power,
        dimension_numbers=(((1,), (1,)), ((), ())),
        preferred_element_type=jnp.float32)               # (n_mels, T)
    for c in range(n_channels):                           # .repeat(1, C, 1, 1)
        o_ref[c] = mel_t


@functools.partial(jax.jit, static_argnames=("n_channels",))
def mel_spectrogram_3channel(x, w, fb_t, n_channels=N_CHANNELS):
    """x: (B, num_samples) f32 waveform -> (B, n_channels, N_MELS, n_frames)."""
    B, num_samples = x.shape
    n_frames = 1 + num_samples // HOP                     # center=True framing
    pad = N_FFT // 2
    xp = jnp.pad(x, ((0, 0), (pad, pad)), mode="reflect")  # torch reflect pad
    xc = xp[:, :(n_frames + 1) * HOP].reshape(B, n_frames + 1, HOP)

    kernel = functools.partial(_melspec_kernel,
                               n_frames=n_frames, n_channels=n_channels)
    return pl.pallas_call(
        kernel,
        out_shape=jax.ShapeDtypeStruct((B, n_channels, N_MELS, n_frames),
                                       jnp.float32),
        grid=(B,),
        in_specs=[
            pl.BlockSpec((None, n_frames + 1, HOP), lambda b: (b, 0, 0)),
            pl.BlockSpec((2, HOP, 2 * N_F), lambda b: (0, 0, 0)),
            pl.BlockSpec((N_MELS, N_F), lambda b: (0, 0)),
        ],
        out_specs=pl.BlockSpec((None, n_channels, N_MELS, n_frames),
                               lambda b: (b, 0, 0, 0)),
        compiler_params=pltpu.CompilerParams(
            dimension_semantics=("parallel",),            # 1 batch elem / TC
            vmem_limit_bytes=32 * 1024 * 1024),
    )(xc, w, fb_t)


# ----------------------------------------------------------------------------
# float64 host reference (independent FFT path, full 513 bins) for a
# tolerance check.
# ----------------------------------------------------------------------------
def _reference_mel(x_np, n_channels):
    B, num_samples = x_np.shape
    pad = N_FFT // 2
    xp = np.pad(x_np.astype(np.float64), ((0, 0), (pad, pad)), mode="reflect")
    T = 1 + num_samples // HOP
    win = _hann_window(N_FFT)
    frames = np.stack([xp[:, t * HOP:t * HOP + N_FFT] for t in range(T)], 1)
    power = np.abs(np.fft.rfft(frames * win, axis=-1)) ** 2   # (B, T, 513)
    fb = _mel_filterbank(N_FREQS, N_MELS, SAMPLE_RATE)
    mel = np.transpose(power @ fb, (0, 2, 1))                 # (B, 64, T)
    return np.repeat(mel[:, None], n_channels, axis=1)


if __name__ == "__main__":
    key = jax.random.PRNGKey(0)
    B = 2
    num_samples = HOP * 127              # ~2.95 s @ 22.05 kHz -> 128 frames
    x = jax.random.normal(key, (B, num_samples), jnp.float32)

    w, fb_t = make_constants()
    out = jax.block_until_ready(
        mel_spectrogram_3channel(x, w, fb_t, n_channels=N_CHANNELS))

    T = 1 + num_samples // HOP
    assert out.shape == (B, N_CHANNELS, N_MELS, T), out.shape
    out_np = np.asarray(out)
    assert np.all(np.isfinite(out_np))
    # all channels must be identical copies (the .repeat semantics)
    assert np.array_equal(out_np[:, 0], out_np[:, 1])
    assert np.array_equal(out_np[:, 0], out_np[:, 2])
    # numerical check vs. an independent float64 FFT reference
    ref = _reference_mel(np.asarray(x), N_CHANNELS)
    err = np.max(np.abs(out_np - ref))
    assert err <= 1e-3 * np.max(np.abs(ref)) + 1e-5, err
    print("KERNEL_OK")
</pallas_src>

<mosaic_0001>
module attributes {stable_mosaic.version = 11 : i64} {
  func.func @_melspec_kernel(%arg0: i32, %arg1: memref<1x129x512xf32, #tpu.memory_space<vmem>>, %arg2: memref<2x512x1024xf32, #tpu.memory_space<vmem>>, %arg3: memref<64x512xf32, #tpu.memory_space<vmem>>, %arg4: memref<1x3x64x128xf32, #tpu.memory_space<vmem>>) attributes {dimension_semantics = [#tpu.dimension_semantics<parallel>], iteration_bounds = array<i64: 2>, scalar_prefetch = 0 : i64, scratch_operands = 0 : i64, tpu.core_type = #tpu.core_type<tc>, window_params = [{transform_indices = @transform_0, window_bounds = array<i64: 1, 129, 512>}, {pipeline_mode = #tpu.pipeline_mode<synchronous>, transform_indices = @transform_1, window_bounds = array<i64: 2, 512, 1024>}, {pipeline_mode = #tpu.pipeline_mode<synchronous>, transform_indices = @transform_2, window_bounds = array<i64: 64, 512>}, {transform_indices = @transform_3, window_bounds = array<i64: 1, 3, 64, 128>}]} {
    %c0 = arith.constant 0 : index
    %c0_0 = arith.constant 0 : index
    %c0_1 = arith.constant 0 : index
    %0 = vector.load %arg1[%c0, %c0_0, %c0_1] : memref<1x129x512xf32, #tpu.memory_space<vmem>>, vector<1x128x512xf32>
    %1 = vector.shape_cast %0 : vector<1x128x512xf32> to vector<128x512xf32>
    %c0_2 = arith.constant 0 : index
    %c1 = arith.constant 1 : index
    %c0_3 = arith.constant 0 : index
    %2 = vector.load %arg1[%c0_2, %c1, %c0_3] : memref<1x129x512xf32, #tpu.memory_space<vmem>>, vector<1x128x512xf32>
    %3 = vector.shape_cast %2 : vector<1x128x512xf32> to vector<128x512xf32>
    %c0_4 = arith.constant 0 : index
    %c0_5 = arith.constant 0 : index
    %c0_6 = arith.constant 0 : index
    %4 = vector.load %arg2[%c0_4, %c0_5, %c0_6] : memref<2x512x1024xf32, #tpu.memory_space<vmem>>, vector<1x512x1024xf32>
    %5 = vector.shape_cast %4 : vector<1x512x1024xf32> to vector<512x1024xf32>
    %cst = arith.constant dense<0.000000e+00> : vector<128x1024xf32>
    %6 = tpu.matmul %1, %5, %cst {dimension_numbers = #tpu.dot_dimension_numbers<[1], [0], [0], [1], [0, 0, 1, 1], [], []>} : vector<128x512xf32>, vector<512x1024xf32>, vector<128x1024xf32> -> vector<128x1024xf32>
    %c1_7 = arith.constant 1 : index
    %c0_8 = arith.constant 0 : index
    %c0_9 = arith.constant 0 : index
    %7 = vector.load %arg2[%c1_7, %c0_8, %c0_9] : memref<2x512x1024xf32, #tpu.memory_space<vmem>>, vector<1x512x1024xf32>
    %8 = vector.shape_cast %7 : vector<1x512x1024xf32> to vector<512x1024xf32>
    %cst_10 = arith.constant dense<0.000000e+00> : vector<128x1024xf32>
    %9 = tpu.matmul %3, %8, %cst_10 {dimension_numbers = #tpu.dot_dimension_numbers<[1], [0], [0], [1], [0, 0, 1, 1], [], []>} : vector<128x512xf32>, vector<512x1024xf32>, vector<128x1024xf32> -> vector<128x1024xf32>
    %10 = arith.addf %6, %9 : vector<128x1024xf32>
    %11 = vector.extract_strided_slice %10 {offsets = [0, 0], sizes = [128, 512], strides = [1, 1]} : vector<128x1024xf32> to vector<128x512xf32>
    %12 = vector.extract_strided_slice %10 {offsets = [0, 512], sizes = [128, 512], strides = [1, 1]} : vector<128x1024xf32> to vector<128x512xf32>
    %13 = arith.mulf %11, %11 : vector<128x512xf32>
    %14 = arith.mulf %12, %12 : vector<128x512xf32>
    %15 = arith.addf %13, %14 : vector<128x512xf32>
    %c0_11 = arith.constant 0 : index
    %c0_12 = arith.constant 0 : index
    %16 = vector.load %arg3[%c0_11, %c0_12] : memref<64x512xf32, #tpu.memory_space<vmem>>, vector<64x512xf32>
    %cst_13 = arith.constant dense<0.000000e+00> : vector<64x128xf32>
    %17 = tpu.matmul %16, %15, %cst_13 {dimension_numbers = #tpu.dot_dimension_numbers<[1], [1], [0], [0], [0, 0, 1, 0], [], []>} : vector<64x512xf32>, vector<128x512xf32>, vector<64x128xf32> -> vector<64x128xf32>
    %c0_14 = arith.constant 0 : index
    %c0_15 = arith.constant 0 : index
    %c0_16 = arith.constant 0 : index
    %c0_17 = arith.constant 0 : index
    %18 = vector.load %arg4[%c0_14, %c0_15, %c0_16, %c0_17] : memref<1x3x64x128xf32, #tpu.memory_space<vmem>>, vector<1x1x64x128xf32>
    %19 = vector.shape_cast %18 : vector<1x1x64x128xf32> to vector<64x128xf32>
    %20 = vector.shape_cast %17 : vector<64x128xf32> to vector<1x1x64x128xf32>
    tpu.vector_store %arg4[%c0_14, %c0_15, %c0_16, %c0_17], %20 {strides = array<i32>} : memref<1x3x64x128xf32, #tpu.memory_space<vmem>>, vector<1x1x64x128xf32>,
    %c0_18 = arith.constant 0 : index
    %c1_19 = arith.constant 1 : index
    %c0_20 = arith.constant 0 : index
    %c0_21 = arith.constant 0 : index
    %21 = vector.load %arg4[%c0_18, %c1_19, %c0_20, %c0_21] : memref<1x3x64x128xf32, #tpu.memory_space<vmem>>, vector<1x1x64x128xf32>
    %22 = vector.shape_cast %21 : vector<1x1x64x128xf32> to vector<64x128xf32>
    %23 = vector.shape_cast %17 : vector<64x128xf32> to vector<1x1x64x128xf32>
    tpu.vector_store %arg4[%c0_18, %c1_19, %c0_20, %c0_21], %23 {strides = array<i32>} : memref<1x3x64x128xf32, #tpu.memory_space<vmem>>, vector<1x1x64x128xf32>,
    %c0_22 = arith.constant 0 : index
    %c2 = arith.constant 2 : index
    %c0_23 = arith.constant 0 : index
    %c0_24 = arith.constant 0 : index
    %24 = vector.load %arg4[%c0_22, %c2, %c0_23, %c0_24] : memref<1x3x64x128xf32, #tpu.memory_space<vmem>>, vector<1x1x64x128xf32>
    %25 = vector.shape_cast %24 : vector<1x1x64x128xf32> to vector<64x128xf32>
    %26 = vector.shape_cast %17 : vector<64x128xf32> to vector<1x1x64x128xf32>
    tpu.vector_store %arg4[%c0_22, %c2, %c0_23, %c0_24], %26 {strides = array<i32>} : memref<1x3x64x128xf32, #tpu.memory_space<vmem>>, vector<1x1x64x128xf32>,
    return
  }
  func.func @transform_0(%arg0: i32) -> (i32, i32, i32) {
    %c0_i32 = arith.constant 0 : i32
    %c0_i32_0 = arith.constant 0 : i32
    %c0_i32_1 = arith.constant 0 : i32
    return %arg0, %c0_i32, %c0_i32_0 : i32, i32, i32
  }
  func.func @transform_1(%arg0: i32) -> (i32, i32, i32) {
    %c0_i32 = arith.constant 0 : i32
    %c0_i32_0 = arith.constant 0 : i32
    %c0_i32_1 = arith.constant 0 : i32
    %c0_i32_2 = arith.constant 0 : i32
    return %c0_i32, %c0_i32_0, %c0_i32_1 : i32, i32, i32
  }
  func.func @transform_2(%arg0: i32) -> (i32, i32) {
    %c0_i32 = arith.constant 0 : i32
    %c0_i32_0 = arith.constant 0 : i32
    %c0_i32_1 = arith.constant 0 : i32
    return %c0_i32, %c0_i32_0 : i32, i32
  }
  func.func @transform_3(%arg0: i32) -> (i32, i32, i32, i32) {
    %c0_i32 = arith.constant 0 : i32
    %c0_i32_0 = arith.constant 0 : i32
    %c0_i32_1 = arith.constant 0 : i32
    %c0_i32_2 = arith.constant 0 : i32
    return %arg0, %c0_i32, %c0_i32_0, %c0_i32_1 : i32, i32, i32, i32
  }
}

</mosaic_0001>

<llo_original>
// kernel: mel_spectrogram_3channel.1
$region0: #{mel_spectrogram_3channel.1}
  #allocation0 [shape = 'u32[]', space=smem, size = 0x4, offset = 0x4, fixed_abs, tag = 'smem constant byte address 0x4 - core index']
  #allocation1 [shape = 'u32[144,128]{1,0:T(1,128)}', space=vmem, size = 0x12000, scoped, tag = 'internal scratch']
  %s0 = inlined_call_operand.vmem [shape: f32[2,129,512], index: 0, kind: input, shape index: {}]
  %s1 = inlined_call_operand.hbm [shape: f32[2,512,1024], index: 1, kind: input, shape index: {}]
  %s2 = inlined_call_operand.hbm [shape: f32[64,512], index: 2, kind: input, shape index: {}]
  %s3 = inlined_call_operand.hbm [shape: f32[2,3,64,128], index: 3, kind: output, shape index: {}]
  %s4 = sld [smem:[#allocation0]]
  $region53: #{mel_spectrogram_3channel.1} parent=0
    _
  %s6 = ssub.s32 1, %s4
  %s7 = scalar_select 0, %s6, %s4
  $region1: #{mel_spectrogram_3channel.1} parent=0
    #allocation2 [shape = 'u8[4194304]{0}', space=vmem, size = 0x400000, scoped, tag = 'input window, operand 1, single buffered']
    #allocation3 [shape = 's32[2]{0}', space=sflag, size = 0x8, scoped, tag = 'scoped memory for mel_spectrogram_3channel.1']
    #allocation4 [shape = 's32[2]{0}', space=sflag, size = 0x8, scoped, tag = 'scoped memory for mel_spectrogram_3channel.1']
    #allocation5 [shape = 'u8[131072]{0}', space=vmem, size = 0x20000, scoped, tag = 'input window, operand 2, single buffered']
    #allocation6 [shape = 's32[1]{0}', space=sflag, size = 0x4, scoped, tag = 'scoped memory for mel_spectrogram_3channel.1']
    #allocation7 [shape = 'u8[196608]{0}', space=vmem, size = 0x30000, scoped, tag = 'output window, operand 0']
    %8 = vsyncpa [#allocation3], 0
    %9 = vsyncpa [#allocation6], 0
    %10 = vsyncpa [#allocation4], 0
    %s11 = scalar_lea.sflag [#allocation4], 1
    %12 = vsyncpa %s11, 0
    loop: start=0, step=1, limit=4
    $region2: #{mel_spectrogram_3channel.1} parent=1 // loop_pre_header
      _
    $region3: #{mel_spectrogram_3channel.1} parent=1 // loop_header
      %s14 = sphi 0, %s18
      %p15 = scmp.ge.s32.totalorder %s14, 4
      %s24 = sphi 0, %s26
      %s27 = sphi 0, %s24
      %s28 = sphi 0, %s27
      %s44 = sphi 0, %s28
      %s48 = sphi 0, %s48
      %s50 = sphi 0, %s48
      %s51 = sphi 0, %s50
      %s65 = sphi 0, %s51
      %s69 = sphi 0, %s69
      %s71 = sphi 0, %s69
      %s72 = sphi 0, %s71
      %s86 = sphi 0, %s72
      %s92 = sphi 0, %s94
      %s95 = sphi 0, %s92
      %s96 = sphi 0, %s95
      %s112 = sphi 0, %s96
    $region4: #{mel_spectrogram_3channel.1} parent=1 // loop_header_branch
      %17 = sbr.rel (%p15) target = $region8
    $region5: #{mel_spectrogram_3channel.1} parent=1 // loop_body
      %s19 = ssub.s32 %s14, 1
      %s20 = ssub.s32 %s14, 2
      %s21 = sadd.s32 %s14, 1
      %s22 = ssub.s32 %s14, %s21
      %p23 = scmp.eq.s32.totalorder %s22, 0
      %s25 = sadd.s32 %s24, 1
      %s26 = scalar_select %p23, %s24, %s25
      %p29 = pneg %p23
      %p30 = scmp.eq.s32.totalorder %s14, 1
      %p31 = por %p29, %p30
      %p32 = scmp.ne.s32.totalorder %s24, %s27
      %p33 = scmp.eq.s32.totalorder %s14, 0
      %p34 = por %p32, %p33
      %p35 = scmp.ne.s32.totalorder %s24, %s27
      %p36 = scmp.eq.s32.totalorder %s19, 1
      %p37 = por %p35, %p36
      %p38 = scmp.ne.s32.totalorder %s27, %s28
      %p39 = scmp.eq.s32.totalorder %s19, 0
      %p40 = por %p38, %p39
      %p41 = scmp.ne.s32.totalorder %s27, %s28
      %p42 = scmp.eq.s32.totalorder %s20, 1
      %p43 = por %p41, %p42
      %p45 = scmp.ne.s32.totalorder %s28, %s44
      %p46 = scmp.eq.s32.totalorder %s20, 0
      %p47 = por %p45, %p46
      %s49 = sadd.s32 %s48, 1
      %p52 = scmp.eq.s32.totalorder %s14, 1
      %p53 = scmp.ne.s32.totalorder %s48, %s50
      %p54 = scmp.eq.s32.totalorder %s14, 0
      %p55 = por %p53, %p54
      %p56 = scmp.ne.s32.totalorder %s48, %s50
      %p57 = scmp.eq.s32.totalorder %s19, 1
      %p58 = por %p56, %p57
      %p59 = scmp.ne.s32.totalorder %s50, %s51
      %p60 = scmp.eq.s32.totalorder %s19, 0
      %p61 = por %p59, %p60
      %p62 = scmp.ne.s32.totalorder %s50, %s51
      %p63 = scmp.eq.s32.totalorder %s20, 1
      %p64 = por %p62, %p63
      %p66 = scmp.ne.s32.totalorder %s51, %s65
      %p67 = scmp.eq.s32.totalorder %s20, 0
      %p68 = por %p66, %p67
      %s70 = sadd.s32 %s69, 1
      %p73 = scmp.eq.s32.totalorder %s14, 1
      %p74 = scmp.ne.s32.totalorder %s69, %s71
      %p75 = scmp.eq.s32.totalorder %s14, 0
      %p76 = por %p74, %p75
      %p77 = scmp.ne.s32.totalorder %s69, %s71
      %p78 = scmp.eq.s32.totalorder %s19, 1
      %p79 = por %p77, %p78
      %p80 = scmp.ne.s32.totalorder %s71, %s72
      %p81 = scmp.eq.s32.totalorder %s19, 0
      %p82 = por %p80, %p81
      %p83 = scmp.ne.s32.totalorder %s71, %s72
      %p84 = scmp.eq.s32.totalorder %s20, 1
      %p85 = por %p83, %p84
      %p87 = scmp.ne.s32.totalorder %s72, %s86
      %p88 = scmp.eq.s32.totalorder %s20, 0
      %p89 = por %p87, %p88
      %s90 = ssub.s32 %s14, %s21
      %p91 = scmp.eq.s32.totalorder %s90, 0
      %s93 = sadd.s32 %s92, 1
      %s94 = scalar_select %p91, %s92, %s93
      %p97 = pneg %p91
      %p98 = scmp.eq.s32.totalorder %s14, 1
      %p99 = por %p97, %p98
      %p100 = scmp.ne.s32.totalorder %s92, %s95
      %p101 = scmp.eq.s32.totalorder %s14, 0
      %p102 = por %p100, %p101
      %p103 = scmp.ne.s32.totalorder %s92, %s95
      %p104 = scmp.eq.s32.totalorder %s19, 1
      %p105 = por %p103, %p104
      %p106 = scmp.ne.s32.totalorder %s95, %s96
      %p107 = scmp.eq.s32.totalorder %s19, 0
      %p108 = por %p106, %p107
      %p109 = scmp.ne.s32.totalorder %s95, %s96
      %p110 = scmp.eq.s32.totalorder %s20, 1
      %p111 = por %p109, %p110
      %p113 = scmp.ne.s32.totalorder %s96, %s112
      %p114 = scmp.eq.s32.totalorder %s20, 0
      %p115 = por %p113, %p114
      %p116 = scmp.le.s32.totalorder 1, %s14
      %p117 = scmp.lt.s32.totalorder %s14, 3
      %p118 = pnand %p116, %p117
      %p119 = pneg %p118
      // Predicated region
      $region9: #{mel_spectrogram_3channel.1} parent=5 // pred_check
        _
      $region10: #{mel_spectrogram_3channel.1} parent=5 // pred_check_branch
        %121 = sbr.rel (%p118) target = $region12
      $region11: #{mel_spectrogram_3channel.1} parent=5 // pred_region
        %s122 = ssub.s32 %s14, 1
        // Predicated region
        $region13: #{mel_spectrogram_3channel.1} parent=11 // pred_check
          %p123 = pneg %p61
        $region14: #{mel_spectrogram_3channel.1} parent=11 // pred_check_branch
          %125 = sbr.rel (%p123) target = $region16
        $region15: #{mel_spectrogram_3channel.1} parent=11 // pred_region
          %s127 = ssub.s32 131072, 131072
          %128 = vsyncadd [#allocation3], %s127
          %s129 = sshll.u32 [#allocation2], 4
          %s130 = int_to_ptr.vmem [resolvable:$true] %s129
          %135 = dma.hbm_to_vmem [thread:$0]  %s1, 131072, %s130, [#allocation3], 1024, 1024, 64
        $region16: #{mel_spectrogram_3channel.1} parent=11 // pred_fallthru
          _
        // Predicated region
        $region17: #{mel_spectrogram_3channel.1} parent=11 // pred_check
          %p136 = pneg %p82
        $region18: #{mel_spectrogram_3channel.1} parent=11 // pred_check_branch
          %138 = sbr.rel (%p136) target = $region20
        $region19: #{mel_spectrogram_3channel.1} parent=11 // pred_region
          %s140 = ssub.s32 4096, 4096
          %141 = vsyncadd [#allocation6], %s140
          %s142 = sshll.u32 [#allocation5], 4
          %s143 = int_to_ptr.vmem [resolvable:$true] %s142
          %148 = dma.hbm_to_vmem [thread:$0]  %s2, 4096, %s143, [#allocation6], 512, 512, 32
        $region20: #{mel_spectrogram_3channel.1} parent=11 // pred_fallthru
          _
      $region12: #{mel_spectrogram_3channel.1} parent=5 // pred_fallthru
        _
      %p149 = scmp.lt.s32.totalorder %s14, 2
      // Predicated region
      $region21: #{mel_spectrogram_3channel.1} parent=5 // pred_check
        %p150 = pneg %p149
      $region22: #{mel_spectrogram_3channel.1} parent=5 // pred_check_branch
        %152 = sbr.rel (%p150) target = $region24
      $region23: #{mel_spectrogram_3channel.1} parent=5 // pred_region
        // Predicated region
        $region25: #{mel_spectrogram_3channel.1} parent=23 // pred_check
          %p153 = pneg %p34
        $region26: #{mel_spectrogram_3channel.1} parent=23 // pred_check_branch
          %155 = sbr.rel (%p153) target = $region28
        $region27: #{mel_spectrogram_3channel.1} parent=23 // pred_region
          %p156 = scmp.lt.s32.totalorder %s14, 1
          %s157 = scalar_select %p156, %s14, 1
          %s158 = smul.addr %s157, 68
          %s159 = smul.addr %s158, 8
          %s160 = scalar_lea.vmem %s0, %s159
        $region28: #{mel_spectrogram_3channel.1} parent=23 // pred_fallthru
          _
      $region24: #{mel_spectrogram_3channel.1} parent=5 // pred_fallthru
        _
      %p161 = scmp.le.s32.totalorder 1, %s14
      %p162 = scmp.lt.s32.totalorder %s14, 3
      %p163 = pnand %p161, %p162
      %p164 = pneg %p163
      // Predicated region
      $region29: #{mel_spectrogram_3channel.1} parent=5 // pred_check
        _
      $region30: #{mel_spectrogram_3channel.1} parent=5 // pred_check_branch
        %166 = sbr.rel (%p163) target = $region32
      $region31: #{mel_spectrogram_3channel.1} parent=5 // pred_region
        %s167 = ssub.s32 %s14, 1
        // Predicated region
        $region33: #{mel_spectrogram_3channel.1} parent=31 // pred_check
          %p168 = pneg %p61
        $region34: #{mel_spectrogram_3channel.1} parent=31 // pred_check_branch
          %170 = sbr.rel (%p168) target = $region36
        $region35: #{mel_spectrogram_3channel.1} parent=31 // pred_region
          %171 = dma.done [#allocation3], 131072
        $region36: #{mel_spectrogram_3channel.1} parent=31 // pred_fallthru
          _
        // Predicated region
        $region37: #{mel_spectrogram_3channel.1} parent=31 // pred_check
          %p172 = pneg %p82
        $region38: #{mel_spectrogram_3channel.1} parent=31 // pred_check_branch
          %174 = sbr.rel (%p172) target = $region40
        $region39: #{mel_spectrogram_3channel.1} parent=31 // pred_region
          %175 = dma.done [#allocation6], 4096
        $region40: #{mel_spectrogram_3channel.1} parent=31 // pred_fallthru
          _
        %p176 = scmp.lt.s32.totalorder %s19, 1
        %s177 = scalar_select %p176, %s19, 1
        %s178 = smul.addr %s177, 68
        %s179 = smul.addr %s178, 8
        %s180 = scalar_lea.vmem %s0, %s179
        %p181 = pneg %p40
        %p182 = pneg %p37
        %p183 = pneg %p61
        %p184 = pneg %p58
        %p185 = pneg %p82
        %p186 = pneg %p79
        %p187 = pneg %p108
        %p188 = pneg %p105
        %s189 = sand.u32 %s95, 1
        %s190 = scalar_lea.sflag [#allocation4], %s189
        %s191 = sand.u32 %s95, 1
        %s192 = smul.addr %s191, 192
        %s193 = scalar_lea.vmem [#allocation7], %s192
        %p194 = scmp.lt.s32.totalorder %s19, 1
        %s195 = scalar_select %p194, %s19, 1
        %s196 = smul.addr %s195, 68
        %s197 = smul.addr %s196, 8
        %s198 = scalar_lea.vmem %s0, %s197
        %v199 = vld [vmem:[%s198] sm:$0xff]
        %v200 = vld [vmem:[%s198 + $0x8] sm:$0xff]
        %v201 = vld [vmem:[%s198 + $0x10] sm:$0xff]
        %v202 = vld [vmem:[%s198 + $0x18] sm:$0xff]
        %v203 = vld [vmem:[%s198 + $0x20] sm:$0xff]
        %v204 = vld [vmem:[%s198 + $0x28] sm:$0xff]
        %v205 = vld [vmem:[%s198 + $0x30] sm:$0xff]
        %v206 = vld [vmem:[%s198 + $0x38] sm:$0xff]
        %v207 = vld [vmem:[%s198 + $0x40] sm:$0xff]
        %v208 = vld [vmem:[%s198 + $0x48] sm:$0xff]
        %v209 = vld [vmem:[%s198 + $0x50] sm:$0xff]
        %v210 = vld [vmem:[%s198 + $0x58] sm:$0xff]
        %v211 = vld [vmem:[%s198 + $0x60] sm:$0xff]
        %v212 = vld [vmem:[%s198 + $0x68] sm:$0xff]
        %v213 = vld [vmem:[%s198 + $0x70] sm:$0xff]
        %v214 = vld [vmem:[%s198 + $0x78] sm:$0xff]
        %v215 = vld [vmem:[%s198 + $0x80] sm:$0xff]
        %v216 = vld [vmem:[%s198 + $0x88] sm:$0xff]
        %v217 = vld [vmem:[%s198 + $0x90] sm:$0xff]
        %v218 = vld [vmem:[%s198 + $0x98] sm:$0xff]
        %v219 = vld [vmem:[%s198 + $0xa0] sm:$0xff]
        %v220 = vld [vmem:[%s198 + $0xa8] sm:$0xff]
        %v221 = vld [vmem:[%s198 + $0xb0] sm:$0xff]
        %v222 = vld [vmem:[%s198 + $0xb8] sm:$0xff]
        %v223 = vld [vmem:[%s198 + $0xc0] sm:$0xff]
        %v224 = vld [vmem:[%s198 + $0xc8] sm:$0xff]
        %v225 = vld [vmem:[%s198 + $0xd0] sm:$0xff]
        %v226 = vld [vmem:[%s198 + $0xd8] sm:$0xff]
        %v227 = vld [vmem:[%s198 + $0xe0] sm:$0xff]
        %v228 = vld [vmem:[%s198 + $0xe8] sm:$0xff]
        %v229 = vld [vmem:[%s198 + $0xf0] sm:$0xff]
        %v230 = vld [vmem:[%s198 + $0xf8] sm:$0xff]
        %v231 = vld [vmem:[%s198 + $0x100] sm:$0xff]
        %v232 = vld [vmem:[%s198 + $0x108] sm:$0xff]
        %v233 = vld [vmem:[%s198 + $0x110] sm:$0xff]
        %v234 = vld [vmem:[%s198 + $0x118] sm:$0xff]
        %v235 = vld [vmem:[%s198 + $0x120] sm:$0xff]
        %v236 = vld [vmem:[%s198 + $0x128] sm:$0xff]
        %v237 = vld [vmem:[%s198 + $0x130] sm:$0xff]
        %v238 = vld [vmem:[%s198 + $0x138] sm:$0xff]
        %v239 = vld [vmem:[%s198 + $0x140] sm:$0xff]
        %v240 = vld [vmem:[%s198 + $0x148] sm:$0xff]
        %v241 = vld [vmem:[%s198 + $0x150] sm:$0xff]
        %v242 = vld [vmem:[%s198 + $0x158] sm:$0xff]
        %v243 = vld [vmem:[%s198 + $0x160] sm:$0xff]
        %v244 = vld [vmem:[%s198 + $0x168] sm:$0xff]
        %v245 = vld [vmem:[%s198 + $0x170] sm:$0xff]
        %v246 = vld [vmem:[%s198 + $0x178] sm:$0xff]
        %v247 = vld [vmem:[%s198 + $0x180] sm:$0xff]
        %v248 = vld [vmem:[%s198 + $0x188] sm:$0xff]
        %v249 = vld [vmem:[%s198 + $0x190] sm:$0xff]
        %v250 = vld [vmem:[%s198 + $0x198] sm:$0xff]
        %v251 = vld [vmem:[%s198 + $0x1a0] sm:$0xff]
        %v252 = vld [vmem:[%s198 + $0x1a8] sm:$0xff]
        %v253 = vld [vmem:[%s198 + $0x1b0] sm:$0xff]
        %v254 = vld [vmem:[%s198 + $0x1b8] sm:$0xff]
        %v255 = vld [vmem:[%s198 + $0x1c0] sm:$0xff]
        %v256 = vld [vmem:[%s198 + $0x1c8] sm:$0xff]
        %v257 = vld [vmem:[%s198 + $0x1d0] sm:$0xff]
        %v258 = vld [vmem:[%s198 + $0x1d8] sm:$0xff]
        %v259 = vld [vmem:[%s198 + $0x1e0] sm:$0xff]
        %v260 = vld [vmem:[%s198 + $0x1e8] sm:$0xff]
        %v261 = vld [vmem:[%s198 + $0x1f0] sm:$0xff]
        %v262 = vld [vmem:[%s198 + $0x1f8] sm:$0xff]
        %v263 = vld [vmem:[%s198] sm:$0xfe]
        %v264 = vld [vmem:[%s198 + $0x8] sm:$0xfe]
        %v265 = vld [vmem:[%s198 + $0x10] sm:$0xfe]
        %v266 = vld [vmem:[%s198 + $0x18] sm:$0xfe]
        %v267 = vld [vmem:[%s198 + $0x200] sm:$0x1]
        %v268 = vld [vmem:[%s198 + $0x208] sm:$0x1]
        %v269 = vld [vmem:[%s198 + $0x210] sm:$0x1]
        %v270 = vld [vmem:[%s198 + $0x218] sm:$0x1]
        %v271 = vld [vmem:[#allocation2] sm:$0xff]
        %v272 = vld [vmem:[#allocation2 + $0x8] sm:$0xff]
        %v273 = vld [vmem:[#allocation2 + $0x10] sm:$0xff]
        %v274 = vld [vmem:[#allocation2 + $0x18] sm:$0xff]
        %v275 = vld [vmem:[#allocation2 + $0x20] sm:$0xff]
        %v276 = vld [vmem:[#allocation2 + $0x28] sm:$0xff]
        %v277 = vld [vmem:[#allocation2 + $0x30] sm:$0xff]
        %v278 = vld [vmem:[#allocation2 + $0x38] sm:$0xff]
        %v279 = vld [vmem:[#allocation2 + $0x40] sm:$0xff]
        %v280 = vld [vmem:[#allocation2 + $0x48] sm:$0xff]
        %v281 = vld [vmem:[#allocation2 + $0x50] sm:$0xff]
        %v282 = vld [vmem:[#allocation2 + $0x58] sm:$0xff]
        %v283 = vld [vmem:[#allocation2 + $0x60] sm:$0xff]
        %v284 = vld [vmem:[#allocation2 + $0x68] sm:$0xff]
        %v285 = vld [vmem:[#allocation2 + $0x70] sm:$0xff]
        %v286 = vld [vmem:[#allocation2 + $0x78] sm:$0xff]
        %v287 = vld [vmem:[#allocation2 + $0x80] sm:$0xff]
        %v288 = vld [vmem:[#allocation2 + $0x88] sm:$0xff]
        %v289 = vld [vmem:[#allocation2 + $0x90] sm:$0xff]
        %v290 = vld [vmem:[#allocation2 + $0x98] sm:$0xff]
        %v291 = vld [vmem:[#allocation2 + $0xa0] sm:$0xff]
        %v292 = vld [vmem:[#allocation2 + $0xa8] sm:$0xff]
        %v293 = vld [vmem:[#allocation2 + $0xb0] sm:$0xff]
        %v294 = vld [vmem:[#allocation2 + $0xb8] sm:$0xff]
        %v295 = vld [vmem:[#allocation2 + $0xc0] sm:$0xff]
        %v296 = vld [vmem:[#allocation2 + $0xc8] sm:$0xff]
        %v297 = vld [vmem:[#allocation2 + $0xd0] sm:$0xff]
        %v298 = vld [vmem:[#allocation2 + $0xd8] sm:$0xff]
        %v299 = vld [vmem:[#allocation2 + $0xe0] sm:$0xff]
        %v300 = vld [vmem:[#allocation2 + $0xe8] sm:$0xff]
        %v301 = vld [vmem:[#allocation2 + $0xf0] sm:$0xff]
        %v302 = vld [vmem:[#allocation2 + $0xf8] sm:$0xff]
        %v303 = vld [vmem:[#allocation2 + $0x100] sm:$0xff]
        %v304 = vld [vmem:[#allocation2 + $0x108] sm:$0xff]
        %v305 = vld [vmem:[#allocation2 + $0x110] sm:$0xff]
        %v306 = vld [vmem:[#allocation2 + $0x118] sm:$0xff]
        %v307 = vld [vmem:[#allocation2 + $0x120] sm:$0xff]
        %v308 = vld [vmem:[#allocation2 + $0x128] sm:$0xff]
        %v309 = vld [vmem:[#allocation2 + $0x130] sm:$0xff]
        %v310 = vld [vmem:[#allocation2 + $0x138] sm:$0xff]
        %v311 = vld [vmem:[#allocation2 + $0x140] sm:$0xff]
        %v312 = vld [vmem:[#allocation2 + $0x148] sm:$0xff]
        %v313 = vld [vmem:[#allocation2 + $0x150] sm:$0xff]
        %v314 = vld [vmem:[#allocation2 + $0x158] sm:$0xff]
        %v315 = vld [vmem:[#allocation2 + $0x160] sm:$0xff]
        %v316 = vld [vmem:[#allocation2 + $0x168] sm:$0xff]
        %v317 = vld [vmem:[#allocation2 + $0x170] sm:$0xff]
        %v318 = vld [vmem:[#allocation2 + $0x178] sm:$0xff]
        %v319 = vld [vmem:[#allocation2 + $0x180] sm:$0xff]
        %v320 = vld [vmem:[#allocation2 + $0x188] sm:$0xff]
        %v321 = vld [vmem:[#allocation2 + $0x190] sm:$0xff]
        %v322 = vld [vmem:[#allocation2 + $0x198] sm:$0xff]
        %v323 = vld [vmem:[#allocation2 + $0x1a0] sm:$0xff]
        %v324 = vld [vmem:[#allocation2 + $0x1a8] sm:$0xff]
        %v325 = vld [vmem:[#allocation2 + $0x1b0] sm:$0xff]
        %v326 = vld [vmem:[#allocation2 + $0x1b8] sm:$0xff]
        %v327 = vld [vmem:[#allocation2 + $0x1c0] sm:$0xff]
        %v328 = vld [vmem:[#allocation2 + $0x1c8] sm:$0xff]
        %v329 = vld [vmem:[#allocation2 + $0x1d0] sm:$0xff]
        %v330 = vld [vmem:[#allocation2 + $0x1d8] sm:$0xff]
        %v331 = vld [vmem:[#allocation2 + $0x1e0] sm:$0xff]
        %v332 = vld [vmem:[#allocation2 + $0x1e8] sm:$0xff]
        %v333 = vld [vmem:[#allocation2 + $0x1f0] sm:$0xff]
        %v334 = vld [vmem:[#allocation2 + $0x1f8] sm:$0xff]
        %v335 = vld [vmem:[#allocation2 + $0x200] sm:$0xff]
        %v336 = vld [vmem:[#allocation2 + $0x208] sm:$0xff]
        %v337 = vld [vmem:[#allocation2 + $0x210] sm:$0xff]
        %v338 = vld [vmem:[#allocation2 + $0x218] sm:$0xff]
        %v339 = vld [vmem:[#allocation2 + $0x220] sm:$0xff]
        %v340 = vld [vmem:[#allocation2 + $0x228] sm:$0xff]
        %v341 = vld [vmem:[#allocation2 + $0x230] sm:$0xff]
        %v342 = vld [vmem:[#allocation2 + $0x238] sm:$0xff]
        %v343 = vld [vmem:[#allocation2 + $0x240] sm:$0xff]
        %v344 = vld [vmem:[#allocation2 + $0x248] sm:$0xff]
        %v345 = vld [vmem:[#allocation2 + $0x250] sm:$0xff]
        %v346 = vld [vmem:[#allocation2 + $0x258] sm:$0xff]
        %v347 = vld [vmem:[#allocation2 + $0x260] sm:$0xff]
        %v348 = vld [vmem:[#allocation2 + $0x268] sm:$0xff]
        %v349 = vld [vmem:[#allocation2 + $0x270] sm:$0xff]
        %v350 = vld [vmem:[#allocation2 + $0x278] sm:$0xff]
        %v351 = vld [vmem:[#allocation2 + $0x280] sm:$0xff]
        %v352 = vld [vmem:[#allocation2 + $0x288] sm:$0xff]
        %v353 = vld [vmem:[#allocation2 + $0x290] sm:$0xff]
        %v354 = vld [vmem:[#allocation2 + $0x298] sm:$0xff]
        %v355 = vld [vmem:[#allocation2 + $0x2a0] sm:$0xff]
        %v356 = vld [vmem:[#allocation2 + $0x2a8] sm:$0xff]
        %v357 = vld [vmem:[#allocation2 + $0x2b0] sm:$0xff]
        %v358 = vld [vmem:[#allocation2 + $0x2b8] sm:$0xff]
        %v359 = vld [vmem:[#allocation2 + $0x2c0] sm:$0xff]
        %v360 = vld [vmem:[#allocation2 + $0x2c8] sm:$0xff]
        %v361 = vld [vmem:[#allocation2 + $0x2d0] sm:$0xff]
        %v362 = vld [vmem:[#allocation2 + $0x2d8] sm:$0xff]
        %v363 = vld [vmem:[#allocation2 + $0x2e0] sm:$0xff]
        %v364 = vld [vmem:[#allocation2 + $0x2e8] sm:$0xff]
        %v365 = vld [vmem:[#allocation2 + $0x2f0] sm:$0xff]
        %v366 = vld [vmem:[#allocation2 + $0x2f8] sm:$0xff]
        %v367 = vld [vmem:[#allocation2 + $0x300] sm:$0xff]
        %v368 = vld [vmem:[#allocation2 + $0x308] sm:$0xff]
        %v369 = vld [vmem:[#allocation2 + $0x310] sm:$0xff]
        %v370 = vld [vmem:[#allocation2 + $0x318] sm:$0xff]
        %v371 = vld [vmem:[#allocation2 + $0x320] sm:$0xff]
        %v372 = vld [vmem:[#allocation2 + $0x328] sm:$0xff]
        %v373 = vld [vmem:[#allocation2 + $0x330] sm:$0xff]
        %v374 = vld [vmem:[#allocation2 + $0x338] sm:$0xff]
        %v375 = vld [vmem:[#allocation2 + $0x340] sm:$0xff]
        %v376 = vld [vmem:[#allocation2 + $0x348] sm:$0xff]
        %v377 = vld [vmem:[#allocation2 + $0x350] sm:$0xff]
        %v378 = vld [vmem:[#allocation2 + $0x358] sm:$0xff]
        %v379 = vld [vmem:[#allocation2 + $0x360] sm:$0xff]
        %v380 = vld [vmem:[#allocation2 + $0x368] sm:$0xff]
        %v381 = vld [vmem:[#allocation2 + $0x370] sm:$0xff]
        %v382 = vld [vmem:[#allocation2 + $0x378] sm:$0xff]
        %v383 = vld [vmem:[#allocation2 + $0x380] sm:$0xff]
        %v384 = vld [vmem:[#allocation2 + $0x388] sm:$0xff]
        %v385 = vld [vmem:[#allocation2 + $0x390] sm:$0xff]
        %v386 = vld [vmem:[#allocation2 + $0x398] sm:$0xff]
        %v387 = vld [vmem:[#allocation2 + $0x3a0] sm:$0xff]
        %v388 = vld [vmem:[#allocation2 + $0x3a8] sm:$0xff]
        %v389 = vld [vmem:[#allocation2 + $0x3b0] sm:$0xff]
        %v390 = vld [vmem:[#allocation2 + $0x3b8] sm:$0xff]
        %v391 = vld [vmem:[#allocation2 + $0x3c0] sm:$0xff]
        %v392 = vld [vmem:[#allocation2 + $0x3c8] sm:$0xff]
        %v393 = vld [vmem:[#allocation2 + $0x3d0] sm:$0xff]
        %v394 = vld [vmem:[#allocation2 + $0x3d8] sm:$0xff]
        %v395 = vld [vmem:[#allocation2 + $0x3e0] sm:$0xff]
        %v396 = vld [vmem:[#allocation2 + $0x3e8] sm:$0xff]
        %v397 = vld [vmem:[#allocation2 + $0x3f0] sm:$0xff]
        %v398 = vld [vmem:[#allocation2 + $0x3f8] sm:$0xff]
        %v399 = vld [vmem:[#allocation2 + $0x400] sm:$0xff]
        %v400 = vld [vmem:[#allocation2 + $0x408] sm:$0xff]
        %v401 = vld [vmem:[#allocation2 + $0x410] sm:$0xff]
        %v402 = vld [vmem:[#allocation2 + $0x418] sm:$0xff]
        %v403 = vld [vmem:[#allocation2 + $0x420] sm:$0xff]
        %v404 = vld [vmem:[#allocation2 + $0x428] sm:$0xff]
        %v405 = vld [vmem:[#allocation2 + $0x430] sm:$0xff]
        %v406 = vld [vmem:[#allocation2 + $0x438] sm:$0xff]
        %v407 = vld [vmem:[#allocation2 + $0x440] sm:$0xff]
        %v408 = vld [vmem:[#allocation2 + $0x448] sm:$0xff]
        %v409 = vld [vmem:[#allocation2 + $0x450] sm:$0xff]
        %v410 = vld [vmem:[#allocation2 + $0x458] sm:$0xff]
        %v411 = vld [vmem:[#allocation2 + $0x460] sm:$0xff]
        %v412 = vld [vmem:[#allocation2 + $0x468] sm:$0xff]
        %v413 = vld [vmem:[#allocation2 + $0x470] sm:$0xff]
        %v414 = vld [vmem:[#allocation2 + $0x478] sm:$0xff]
        %v415 = vld [vmem:[#allocation2 + $0x480] sm:$0xff]
        %v416 = vld [vmem:[#allocation2 + $0x488] sm:$0xff]
        %v417 = vld [vmem:[#allocation2 + $0x490] sm:$0xff]
        %v418 = vld [vmem:[#allocation2 + $0x498] sm:$0xff]
        %v419 = vld [vmem:[#allocation2 + $0x4a0] sm:$0xff]
        %v420 = vld [vmem:[#allocation2 + $0x4a8] sm:$0xff]
        %v421 = vld [vmem:[#allocation2 + $0x4b0] sm:$0xff]
        %v422 = vld [vmem:[#allocation2 + $0x4b8] sm:$0xff]
        %v423 = vld [vmem:[#allocation2 + $0x4c0] sm:$0xff]
        %v424 = vld [vmem:[#allocation2 + $0x4c8] sm:$0xff]
        %v425 = vld [vmem:[#allocation2 + $0x4d0] sm:$0xff]
        %v426 = vld [vmem:[#allocation2 + $0x4d8] sm:$0xff]
        %v427 = vld [vmem:[#allocation2 + $0x4e0] sm:$0xff]
        %v428 = vld [vmem:[#allocation2 + $0x4e8] sm:$0xff]
        %v429 = vld [vmem:[#allocation2 + $0x4f0] sm:$0xff]
        %v430 = vld [vmem:[#allocation2 + $0x4f8] sm:$0xff]
        %v431 = vld [vmem:[#allocation2 + $0x500] sm:$0xff]
        %v432 = vld [vmem:[#allocation2 + $0x508] sm:$0xff]
        %v433 = vld [vmem:[#allocation2 + $0x510] sm:$0xff]
        %v434 = vld [vmem:[#allocation2 + $0x518] sm:$0xff]
        %v435 = vld [vmem:[#allocation2 + $0x520] sm:$0xff]
        %v436 = vld [vmem:[#allocation2 + $0x528] sm:$0xff]
        %v437 = vld [vmem:[#allocation2 + $0x530] sm:$0xff]
        %v438 = vld [vmem:[#allocation2 + $0x538] sm:$0xff]
        %v439 = vld [vmem:[#allocation2 + $0x540] sm:$0xff]
        %v440 = vld [vmem:[#allocation2 + $0x548] sm:$0xff]
        %v441 = vld [vmem:[#allocation2 + $0x550] sm:$0xff]
        %v442 = vld [vmem:[#allocation2 + $0x558] sm:$0xff]
        %v443 = vld [vmem:[#allocation2 + $0x560] sm:$0xff]
        %v444 = vld [vmem:[#allocation2 + $0x568] sm:$0xff]
        %v445 = vld [vmem:[#allocation2 + $0x570] sm:$0xff]
        %v446 = vld [vmem:[#allocation2 + $0x578] sm:$0xff]
        %v447 = vld [vmem:[#allocation2 + $0x580] sm:$0xff]
        %v448 = vld [vmem:[#allocation2 + $0x588] sm:$0xff]
        %v449 = vld [vmem:[#allocation2 + $0x590] sm:$0xff]
        %v450 = vld [vmem:[#allocation2 + $0x598] sm:$0xff]
        %v451 = vld [vmem:[#allocation2 + $0x5a0] sm:$0xff]
        %v452 = vld [vmem:[#allocation2 + $0x5a8] sm:$0xff]
        %v453 = vld [vmem:[#allocation2 + $0x5b0] sm:$0xff]
        %v454 = vld [vmem:[#allocation2 + $0x5b8] sm:$0xff]
        %v455 = vld [vmem:[#allocation2 + $0x5c0] sm:$0xff]
        %v456 = vld [vmem:[#allocation2 + $0x5c8] sm:$0xff]
        %v457 = vld [vmem:[#allocation2 + $0x5d0] sm:$0xff]
        %v458 = vld [vmem:[#allocation2 + $0x5d8] sm:$0xff]
        %v459 = vld [vmem:[#allocation2 + $0x5e0] sm:$0xff]
        %v460 = vld [vmem:[#allocation2 + $0x5e8] sm:$0xff]
        %v461 = vld [vmem:[#allocation2 + $0x5f0] sm:$0xff]
        %v462 = vld [vmem:[#allocation2 + $0x5f8] sm:$0xff]
        %v463 = vld [vmem:[#allocation2 + $0x600] sm:$0xff]
        %v464 = vld [vmem:[#allocation2 + $0x608] sm:$0xff]
        %v465 = vld [vmem:[#allocation2 + $0x610] sm:$0xff]
        %v466 = vld [vmem:[#allocation2 + $0x618] sm:$0xff]
        %v467 = vld [vmem:[#allocation2 + $0x620] sm:$0xff]
        %v468 = vld [vmem:[#allocation2 + $0x628] sm:$0xff]
        %v469 = vld [vmem:[#allocation2 + $0x630] sm:$0xff]
        %v470 = vld [vmem:[#allocation2 + $0x638] sm:$0xff]
        %v471 = vld [vmem:[#allocation2 + $0x640] sm:$0xff]
        %v472 = vld [vmem:[#allocation2 + $0x648] sm:$0xff]
        %v473 = vld [vmem:[#allocation2 + $0x650] sm:$0xff]
        %v474 = vld [vmem:[#allocation2 + $0x658] sm:$0xff]
        %v475 = vld [vmem:[#allocation2 + $0x660] sm:$0xff]
        %v476 = vld [vmem:[#allocation2 + $0x668] sm:$0xff]
        %v477 = vld [vmem:[#allocation2 + $0x670] sm:$0xff]
        %v478 = vld [vmem:[#allocation2 + $0x678] sm:$0xff]
        %v479 = vld [vmem:[#allocation2 + $0x680] sm:$0xff]
        %v480 = vld [vmem:[#allocation2 + $0x688] sm:$0xff]
        %v481 = vld [vmem:[#allocation2 + $0x690] sm:$0xff]
        %v482 = vld [vmem:[#allocation2 + $0x698] sm:$0xff]
        %v483 = vld [vmem:[#allocation2 + $0x6a0] sm:$0xff]
        %v484 = vld [vmem:[#allocation2 + $0x6a8] sm:$0xff]
        %v485 = vld [vmem:[#allocation2 + $0x6b0] sm:$0xff]
        %v486 = vld [vmem:[#allocation2 + $0x6b8] sm:$0xff]
        %v487 = vld [vmem:[#allocation2 + $0x6c0] sm:$0xff]
        %v488 = vld [vmem:[#allocation2 + $0x6c8] sm:$0xff]
        %v489 = vld [vmem:[#allocation2 + $0x6d0] sm:$0xff]
        %v490 = vld [vmem:[#allocation2 + $0x6d8] sm:$0xff]
        %v491 = vld [vmem:[#allocation2 + $0x6e0] sm:$0xff]
        %v492 = vld [vmem:[#allocation2 + $0x6e8] sm:$0xff]
        %v493 = vld [vmem:[#allocation2 + $0x6f0] sm:$0xff]
        %v494 = vld [vmem:[#allocation2 + $0x6f8] sm:$0xff]
        %v495 = vld [vmem:[#allocation2 + $0x700] sm:$0xff]
        %v496 = vld [vmem:[#allocation2 + $0x708] sm:$0xff]
        %v497 = vld [vmem:[#allocation2 + $0x710] sm:$0xff]
        %v498 = vld [vmem:[#allocation2 + $0x718] sm:$0xff]
        %v499 = vld [vmem:[#allocation2 + $0x720] sm:$0xff]
        %v500 = vld [vmem:[#allocation2 + $0x728] sm:$0xff]
        %v501 = vld [vmem:[#allocation2 + $0x730] sm:$0xff]
        %v502 = vld [vmem:[#allocation2 + $0x738] sm:$0xff]
        %v503 = vld [vmem:[#allocation2 + $0x740] sm:$0xff]
        %v504 = vld [vmem:[#allocation2 + $0x748] sm:$0xff]
        %v505 = vld [vmem:[#allocation2 + $0x750] sm:$0xff]
        %v506 = vld [vmem:[#allocation2 + $0x758] sm:$0xff]
        %v507 = vld [vmem:[#allocation2 + $0x760] sm:$0xff]
        %v508 = vld [vmem:[#allocation2 + $0x768] sm:$0xff]
        %v509 = vld [vmem:[#allocation2 + $0x770] sm:$0xff]
        %v510 = vld [vmem:[#allocation2 + $0x778] sm:$0xff]
        %v511 = vld [vmem:[#allocation2 + $0x780] sm:$0xff]
        %v512 = vld [vmem:[#allocation2 + $0x788] sm:$0xff]
        %v513 = vld [vmem:[#allocation2 + $0x790] sm:$0xff]
        %v514 = vld [vmem:[#allocation2 + $0x798] sm:$0xff]
        %v515 = vld [vmem:[#allocation2 + $0x7a0] sm:$0xff]
        %v516 = vld [vmem:[#allocation2 + $0x7a8] sm:$0xff]
        %v517 = vld [vmem:[#allocation2 + $0x7b0] sm:$0xff]
        %v518 = vld [vmem:[#allocation2 + $0x7b8] sm:$0xff]
        %v519 = vld [vmem:[#allocation2 + $0x7c0] sm:$0xff]
        %v520 = vld [vmem:[#allocation2 + $0x7c8] sm:$0xff]
        %v521 = vld [vmem:[#allocation2 + $0x7d0] sm:$0xff]
        %v522 = vld [vmem:[#allocation2 + $0x7d8] sm:$0xff]
        %v523 = vld [vmem:[#allocation2 + $0x7e0] sm:$0xff]
        %v524 = vld [vmem:[#allocation2 + $0x7e8] sm:$0xff]
        %v525 = vld [vmem:[#allocation2 + $0x7f0] sm:$0xff]
        %v526 = vld [vmem:[#allocation2 + $0x7f8] sm:$0xff]
        %v527 = vld [vmem:[#allocation2 + $0x800] sm:$0xff]
        %v528 = vld [vmem:[#allocation2 + $0x808] sm:$0xff]
        %v529 = vld [vmem:[#allocation2 + $0x810] sm:$0xff]
        %v530 = vld [vmem:[#allocation2 + $0x818] sm:$0xff]
        %v531 = vld [vmem:[#allocation2 + $0x820] sm:$0xff]
        %v532 = vld [vmem:[#allocation2 + $0x828] sm:$0xff]
        %v533 = vld [vmem:[#allocation2 + $0x830] sm:$0xff]
        %v534 = vld [vmem:[#allocation2 + $0x838] sm:$0xff]
        %v535 = vld [vmem:[#allocation2 + $0x840] sm:$0xff]
        %v536 = vld [vmem:[#allocation2 + $0x848] sm:$0xff]
        %v537 = vld [vmem:[#allocation2 + $0x850] sm:$0xff]
        %v538 = vld [vmem:[#allocation2 + $0x858] sm:$0xff]
        %v539 = vld [vmem:[#allocation2 + $0x860] sm:$0xff]
        %v540 = vld [vmem:[#allocation2 + $0x868] sm:$0xff]
        %v541 = vld [vmem:[#allocation2 + $0x870] sm:$0xff]
        %v542 = vld [vmem:[#allocation2 + $0x878] sm:$0xff]
        %v543 = vld [vmem:[#allocation2 + $0x880] sm:$0xff]
        %v544 = vld [vmem:[#allocation2 + $0x888] sm:$0xff]
        %v545 = vld [vmem:[#allocation2 + $0x890] sm:$0xff]
        %v546 = vld [vmem:[#allocation2 + $0x898] sm:$0xff]
        %v547 = vld [vmem:[#allocation2 + $0x8a0] sm:$0xff]
        %v548 = vld [vmem:[#allocation2 + $0x8a8] sm:$0xff]
        %v549 = vld [vmem:[#allocation2 + $0x8b0] sm:$0xff]
        %v550 = vld [vmem:[#allocation2 + $0x8b8] sm:$0xff]
        %v551 = vld [vmem:[#allocation2 + $0x8c0] sm:$0xff]
        %v552 = vld [vmem:[#allocation2 + $0x8c8] sm:$0xff]
        %v553 = vld [vmem:[#allocation2 + $0x8d0] sm:$0xff]
        %v554 = vld [vmem:[#allocation2 + $0x8d8] sm:$0xff]
        %v555 = vld [vmem:[#allocation2 + $0x8e0] sm:$0xff]
        %v556 = vld [vmem:[#allocation2 + $0x8e8] sm:$0xff]
        %v557 = vld [vmem:[#allocation2 + $0x8f0] sm:$0xff]
        %v558 = vld [vmem:[#allocation2 + $0x8f8] sm:$0xff]
        %v559 = vld [vmem:[#allocation2 + $0x900] sm:$0xff]
        %v560 = vld [vmem:[#allocation2 + $0x908] sm:$0xff]
        %v561 = vld [vmem:[#allocation2 + $0x910] sm:$0xff]
        %v562 = vld [vmem:[#allocation2 + $0x918] sm:$0xff]
        %v563 = vld [vmem:[#allocation2 + $0x920] sm:$0xff]
        %v564 = vld [vmem:[#allocation2 + $0x928] sm:$0xff]
        %v565 = vld [vmem:[#allocation2 + $0x930] sm:$0xff]
        %v566 = vld [vmem:[#allocation2 + $0x938] sm:$0xff]
        %v567 = vld [vmem:[#allocation2 + $0x940] sm:$0xff]
        %v568 = vld [vmem:[#allocation2 + $0x948] sm:$0xff]
        %v569 = vld [vmem:[#allocation2 + $0x950] sm:$0xff]
        %v570 = vld [vmem:[#allocation2 + $0x958] sm:$0xff]
        %v571 = vld [vmem:[#allocation2 + $0x960] sm:$0xff]
        %v572 = vld [vmem:[#allocation2 + $0x968] sm:$0xff]
        %v573 = vld [vmem:[#allocation2 + $0x970] sm:$0xff]
        %v574 = vld [vmem:[#allocation2 + $0x978] sm:$0xff]
        %v575 = vld [vmem:[#allocation2 + $0x980] sm:$0xff]
        %v576 = vld [vmem:[#allocation2 + $0x988] sm:$0xff]
        %v577 = vld [vmem:[#allocation2 + $0x990] sm:$0xff]
        %v578 = vld [vmem:[#allocation2 + $0x998] sm:$0xff]
        %v579 = vld [vmem:[#allocation2 + $0x9a0] sm:$0xff]
        %v580 = vld [vmem:[#allocation2 + $0x9a8] sm:$0xff]
        %v581 = vld [vmem:[#allocation2 + $0x9b0] sm:$0xff]
        %v582 = vld [vmem:[#allocation2 + $0x9b8] sm:$0xff]
        %v583 = vld [vmem:[#allocation2 + $0x9c0] sm:$0xff]
        %v584 = vld [vmem:[#allocation2 + $0x9c8] sm:$0xff]
        %v585 = vld [vmem:[#allocation2 + $0x9d0] sm:$0xff]
        %v586 = vld [vmem:[#allocation2 + $0x9d8] sm:$0xff]
        %v587 = vld [vmem:[#allocation2 + $0x9e0] sm:$0xff]
        %v588 = vld [vmem:[#allocation2 + $0x9e8] sm:$0xff]
        %v589 = vld [vmem:[#allocation2 + $0x9f0] sm:$0xff]
        %v590 = vld [vmem:[#allocation2 + $0x9f8] sm:$0xff]
        %v591 = vld [vmem:[#allocation2 + $0xa00] sm:$0xff]
        %v592 = vld [vmem:[#allocation2 + $0xa08] sm:$0xff]
        %v593 = vld [vmem:[#allocation2 + $0xa10] sm:$0xff]
        %v594 = vld [vmem:[#allocation2 + $0xa18] sm:$0xff]
        %v595 = vld [vmem:[#allocation2 + $0xa20] sm:$0xff]
        %v596 = vld [vmem:[#allocation2 + $0xa28] sm:$0xff]
        %v597 = vld [vmem:[#allocation2 + $0xa30] sm:$0xff]
        %v598 = vld [vmem:[#allocation2 + $0xa38] sm:$0xff]
        %v599 = vld [vmem:[#allocation2 + $0xa40] sm:$0xff]
        %v600 = vld [vmem:[#allocation2 + $0xa48] sm:$0xff]
        %v601 = vld [vmem:[#allocation2 + $0xa50] sm:$0xff]
        %v602 = vld [vmem:[#allocation2 + $0xa58] sm:$0xff]
        %v603 = vld [vmem:[#allocation2 + $0xa60] sm:$0xff]
        %v604 = vld [vmem:[#allocation2 + $0xa68] sm:$0xff]
        %v605 = vld [vmem:[#allocation2 + $0xa70] sm:$0xff]
        %v606 = vld [vmem:[#allocation2 + $0xa78] sm:$0xff]
        %v607 = vld [vmem:[#allocation2 + $0xa80] sm:$0xff]
        %v608 = vld [vmem:[#allocation2 + $0xa88] sm:$0xff]
        %v609 = vld [vmem:[#allocation2 + $0xa90] sm:$0xff]
        %v610 = vld [vmem:[#allocation2 + $0xa98] sm:$0xff]
        %v611 = vld [vmem:[#allocation2 + $0xaa0] sm:$0xff]
        %v612 = vld [vmem:[#allocation2 + $0xaa8] sm:$0xff]
        %v613 = vld [vmem:[#allocation2 + $0xab0] sm:$0xff]
        %v614 = vld [vmem:[#allocation2 + $0xab8] sm:$0xff]
        %v615 = vld [vmem:[#allocation2 + $0xac0] sm:$0xff]
        %v616 = vld [vmem:[#allocation2 + $0xac8] sm:$0xff]
        %v617 = vld [vmem:[#allocation2 + $0xad0] sm:$0xff]
        %v618 = vld [vmem:[#allocation2 + $0xad8] sm:$0xff]
        %v619 = vld [vmem:[#allocation2 + $0xae0] sm:$0xff]
        %v620 = vld [vmem:[#allocation2 + $0xae8] sm:$0xff]
        %v621 = vld [vmem:[#allocation2 + $0xaf0] sm:$0xff]
        %v622 = vld [vmem:[#allocation2 + $0xaf8] sm:$0xff]
        %v623 = vld [vmem:[#allocation2 + $0xb00] sm:$0xff]
        %v624 = vld [vmem:[#allocation2 + $0xb08] sm:$0xff]
        %v625 = vld [vmem:[#allocation2 + $0xb10] sm:$0xff]
        %v626 = vld [vmem:[#allocation2 + $0xb18] sm:$0xff]
        %v627 = vld [vmem:[#allocation2 + $0xb20] sm:$0xff]
        %v628 = vld [vmem:[#allocation2 + $0xb28] sm:$0xff]
        %v629 = vld [vmem:[#allocation2 + $0xb30] sm:$0xff]
        %v630 = vld [vmem:[#allocation2 + $0xb38] sm:$0xff]
        %v631 = vld [vmem:[#allocation2 + $0xb40] sm:$0xff]
        %v632 = vld [vmem:[#allocation2 + $0xb48] sm:$0xff]
        %v633 = vld [vmem:[#allocation2 + $0xb50] sm:$0xff]
        %v634 = vld [vmem:[#allocation2 + $0xb58] sm:$0xff]
        %v635 = vld [vmem:[#allocation2 + $0xb60] sm:$0xff]
        %v636 = vld [vmem:[#allocation2 + $0xb68] sm:$0xff]
        %v637 = vld [vmem:[#allocation2 + $0xb70] sm:$0xff]
        %v638 = vld [vmem:[#allocation2 + $0xb78] sm:$0xff]
        %v639 = vld [vmem:[#allocation2 + $0xb80] sm:$0xff]
        %v640 = vld [vmem:[#allocation2 + $0xb88] sm:$0xff]
        %v641 = vld [vmem:[#allocation2 + $0xb90] sm:$0xff]
        %v642 = vld [vmem:[#allocation2 + $0xb98] sm:$0xff]
        %v643 = vld [vmem:[#allocation2 + $0xba0] sm:$0xff]
        %v644 = vld [vmem:[#allocation2 + $0xba8] sm:$0xff]
        %v645 = vld [vmem:[#allocation2 + $0xbb0] sm:$0xff]
        %v646 = vld [vmem:[#allocation2 + $0xbb8] sm:$0xff]
        %v647 = vld [vmem:[#allocation2 + $0xbc0] sm:$0xff]
        %v648 = vld [vmem:[#allocation2 + $0xbc8] sm:$0xff]
        %v649 = vld [vmem:[#allocation2 + $0xbd0] sm:$0xff]
        %v650 = vld [vmem:[#allocation2 + $0xbd8] sm:$0xff]
        %v651 = vld [vmem:[#allocation2 + $0xbe0] sm:$0xff]
        %v652 = vld [vmem:[#allocation2 + $0xbe8] sm:$0xff]
        %v653 = vld [vmem:[#allocation2 + $0xbf0] sm:$0xff]
        %v654 = vld [vmem:[#allocation2 + $0xbf8] sm:$0xff]
        %v655 = vld [vmem:[#allocation2 + $0xc00] sm:$0xff]
        %v656 = vld [vmem:[#allocation2 + $0xc08] sm:$0xff]
        %v657 = vld [vmem:[#allocation2 + $0xc10] sm:$0xff]
        %v658 = vld [vmem:[#allocation2 + $0xc18] sm:$0xff]
        %v659 = vld [vmem:[#allocation2 + $0xc20] sm:$0xff]
        %v660 = vld [vmem:[#allocation2 + $0xc28] sm:$0xff]
        %v661 = vld [vmem:[#allocation2 + $0xc30] sm:$0xff]
        %v662 = vld [vmem:[#allocation2 + $0xc38] sm:$0xff]
        %v663 = vld [vmem:[#allocation2 + $0xc40] sm:$0xff]
        %v664 = vld [vmem:[#allocation2 + $0xc48] sm:$0xff]
        %v665 = vld [vmem:[#allocation2 + $0xc50] sm:$0xff]
        %v666 = vld [vmem:[#allocation2 + $0xc58] sm:$0xff]
        %v667 = vld [vmem:[#allocation2 + $0xc60] sm:$0xff]
        %v668 = vld [vmem:[#allocation2 + $0xc68] sm:$0xff]
        %v669 = vld [vmem:[#allocation2 + $0xc70] sm:$0xff]
        %v670 = vld [vmem:[#allocation2 + $0xc78] sm:$0xff]
        %v671 = vld [vmem:[#allocation2 + $0xc80] sm:$0xff]
        %v672 = vld [vmem:[#allocation2 + $0xc88] sm:$0xff]
        %v673 = vld [vmem:[#allocation2 + $0xc90] sm:$0xff]
        %v674 = vld [vmem:[#allocation2 + $0xc98] sm:$0xff]
        %v675 = vld [vmem:[#allocation2 + $0xca0] sm:$0xff]
        %v676 = vld [vmem:[#allocation2 + $0xca8] sm:$0xff]
        %v677 = vld [vmem:[#allocation2 + $0xcb0] sm:$0xff]
        %v678 = vld [vmem:[#allocation2 + $0xcb8] sm:$0xff]
        %v679 = vld [vmem:[#allocation2 + $0xcc0] sm:$0xff]
        %v680 = vld [vmem:[#allocation2 + $0xcc8] sm:$0xff]
        %v681 = vld [vmem:[#allocation2 + $0xcd0] sm:$0xff]
        %v682 = vld [vmem:[#allocation2 + $0xcd8] sm:$0xff]
        %v683 = vld [vmem:[#allocation2 + $0xce0] sm:$0xff]
        %v684 = vld [vmem:[#allocation2 + $0xce8] sm:$0xff]
        %v685 = vld [vmem:[#allocation2 + $0xcf0] sm:$0xff]
        %v686 = vld [vmem:[#allocation2 + $0xcf8] sm:$0xff]
        %v687 = vld [vmem:[#allocation2 + $0xd00] sm:$0xff]
        %v688 = vld [vmem:[#allocation2 + $0xd08] sm:$0xff]
        %v689 = vld [vmem:[#allocation2 + $0xd10] sm:$0xff]
        %v690 = vld [vmem:[#allocation2 + $0xd18] sm:$0xff]
        %v691 = vld [vmem:[#allocation2 + $0xd20] sm:$0xff]
        %v692 = vld [vmem:[#allocation2 + $0xd28] sm:$0xff]
        %v693 = vld [vmem:[#allocation2 + $0xd30] sm:$0xff]
        %v694 = vld [vmem:[#allocation2 + $0xd38] sm:$0xff]
        %v695 = vld [vmem:[#allocation2 + $0xd40] sm:$0xff]
        %v696 = vld [vmem:[#allocation2 + $0xd48] sm:$0xff]
        %v697 = vld [vmem:[#allocation2 + $0xd50] sm:$0xff]
        %v698 = vld [vmem:[#allocation2 + $0xd58] sm:$0xff]
        %v699 = vld [vmem:[#allocation2 + $0xd60] sm:$0xff]
        %v700 = vld [vmem:[#allocation2 + $0xd68] sm:$0xff]
        %v701 = vld [vmem:[#allocation2 + $0xd70] sm:$0xff]
        %v702 = vld [vmem:[#allocation2 + $0xd78] sm:$0xff]
        %v703 = vld [vmem:[#allocation2 + $0xd80] sm:$0xff]
        %v704 = vld [vmem:[#allocation2 + $0xd88] sm:$0xff]
        %v705 = vld [vmem:[#allocation2 + $0xd90] sm:$0xff]
        %v706 = vld [vmem:[#allocation2 + $0xd98] sm:$0xff]
        %v707 = vld [vmem:[#allocation2 + $0xda0] sm:$0xff]
        %v708 = vld [vmem:[#allocation2 + $0xda8] sm:$0xff]
        %v709 = vld [vmem:[#allocation2 + $0xdb0] sm:$0xff]
        %v710 = vld [vmem:[#allocation2 + $0xdb8] sm:$0xff]
        %v711 = vld [vmem:[#allocation2 + $0xdc0] sm:$0xff]
        %v712 = vld [vmem:[#allocation2 + $0xdc8] sm:$0xff]
        %v713 = vld [vmem:[#allocation2 + $0xdd0] sm:$0xff]
        %v714 = vld [vmem:[#allocation2 + $0xdd8] sm:$0xff]
        %v715 = vld [vmem:[#allocation2 + $0xde0] sm:$0xff]
        %v716 = vld [vmem:[#allocation2 + $0xde8] sm:$0xff]
        %v717 = vld [vmem:[#allocation2 + $0xdf0] sm:$0xff]
        %v718 = vld [vmem:[#allocation2 + $0xdf8] sm:$0xff]
        %v719 = vld [vmem:[#allocation2 + $0xe00] sm:$0xff]
        %v720 = vld [vmem:[#allocation2 + $0xe08] sm:$0xff]
        %v721 = vld [vmem:[#allocation2 + $0xe10] sm:$0xff]
        %v722 = vld [vmem:[#allocation2 + $0xe18] sm:$0xff]
        %v723 = vld [vmem:[#allocation2 + $0xe20] sm:$0xff]
        %v724 = vld [vmem:[#allocation2 + $0xe28] sm:$0xff]
        %v725 = vld [vmem:[#allocation2 + $0xe30] sm:$0xff]
        %v726 = vld [vmem:[#allocation2 + $0xe38] sm:$0xff]
        %v727 = vld [vmem:[#allocation2 + $0xe40] sm:$0xff]
        %v728 = vld [vmem:[#allocation2 + $0xe48] sm:$0xff]
        %v729 = vld [vmem:[#allocation2 + $0xe50] sm:$0xff]
        %v730 = vld [vmem:[#allocation2 + $0xe58] sm:$0xff]
        %v731 = vld [vmem:[#allocation2 + $0xe60] sm:$0xff]
        %v732 = vld [vmem:[#allocation2 + $0xe68] sm:$0xff]
        %v733 = vld [vmem:[#allocation2 + $0xe70] sm:$0xff]
        %v734 = vld [vmem:[#allocation2 + $0xe78] sm:$0xff]
        %v735 = vld [vmem:[#allocation2 + $0xe80] sm:$0xff]
        %v736 = vld [vmem:[#allocation2 + $0xe88] sm:$0xff]
        %v737 = vld [vmem:[#allocation2 + $0xe90] sm:$0xff]
        %v738 = vld [vmem:[#allocation2 + $0xe98] sm:$0xff]
        %v739 = vld [vmem:[#allocation2 + $0xea0] sm:$0xff]
        %v740 = vld [vmem:[#allocation2 + $0xea8] sm:$0xff]
        %v741 = vld [vmem:[#allocation2 + $0xeb0] sm:$0xff]
        %v742 = vld [vmem:[#allocation2 + $0xeb8] sm:$0xff]
        %v743 = vld [vmem:[#allocation2 + $0xec0] sm:$0xff]
        %v744 = vld [vmem:[#allocation2 + $0xec8] sm:$0xff]
        %v745 = vld [vmem:[#allocation2 + $0xed0] sm:$0xff]
        %v746 = vld [vmem:[#allocation2 + $0xed8] sm:$0xff]
        %v747 = vld [vmem:[#allocation2 + $0xee0] sm:$0xff]
        %v748 = vld [vmem:[#allocation2 + $0xee8] sm:$0xff]
        %v749 = vld [vmem:[#allocation2 + $0xef0] sm:$0xff]
        %v750 = vld [vmem:[#allocation2 + $0xef8] sm:$0xff]
        %v751 = vld [vmem:[#allocation2 + $0xf00] sm:$0xff]
        %v752 = vld [vmem:[#allocation2 + $0xf08] sm:$0xff]
        %v753 = vld [vmem:[#allocation2 + $0xf10] sm:$0xff]
        %v754 = vld [vmem:[#allocation2 + $0xf18] sm:$0xff]
        %v755 = vld [vmem:[#allocation2 + $0xf20] sm:$0xff]
        %v756 = vld [vmem:[#allocation2 + $0xf28] sm:$0xff]
        %v757 = vld [vmem:[#allocation2 + $0xf30] sm:$0xff]
        %v758 = vld [vmem:[#allocation2 + $0xf38] sm:$0xff]
        %v759 = vld [vmem:[#allocation2 + $0xf40] sm:$0xff]
        %v760 = vld [vmem:[#allocation2 + $0xf48] sm:$0xff]
        %v761 = vld [vmem:[#allocation2 + $0xf50] sm:$0xff]
        %v762 = vld [vmem:[#allocation2 + $0xf58] sm:$0xff]
        %v763 = vld [vmem:[#allocation2 + $0xf60] sm:$0xff]
        %v764 = vld [vmem:[#allocation2 + $0xf68] sm:$0xff]
        %v765 = vld [vmem:[#allocation2 + $0xf70] sm:$0xff]
        %v766 = vld [vmem:[#allocation2 + $0xf78] sm:$0xff]
        %v767 = vld [vmem:[#allocation2 + $0xf80] sm:$0xff]
        %v768 = vld [vmem:[#allocation2 + $0xf88] sm:$0xff]
        %v769 = vld [vmem:[#allocation2 + $0xf90] sm:$0xff]
        %v770 = vld [vmem:[#allocation2 + $0xf98] sm:$0xff]
        %v771 = vld [vmem:[#allocation2 + $0xfa0] sm:$0xff]
        %v772 = vld [vmem:[#allocation2 + $0xfa8] sm:$0xff]
        %v773 = vld [vmem:[#allocation2 + $0xfb0] sm:$0xff]
        %v774 = vld [vmem:[#allocation2 + $0xfb8] sm:$0xff]
        %v775 = vld [vmem:[#allocation2 + $0xfc0] sm:$0xff]
        %v776 = vld [vmem:[#allocation2 + $0xfc8] sm:$0xff]
        %v777 = vld [vmem:[#allocation2 + $0xfd0] sm:$0xff]
        %v778 = vld [vmem:[#allocation2 + $0xfd8] sm:$0xff]
        %v779 = vld [vmem:[#allocation2 + $0xfe0] sm:$0xff]
        %v780 = vld [vmem:[#allocation2 + $0xfe8] sm:$0xff]
        %v781 = vld [vmem:[#allocation2 + $0xff0] sm:$0xff]
        %v782 = vld [vmem:[#allocation2 + $0xff8] sm:$0xff]
        %s783 = scalar_lea.vmem [#allocation2], 4096
        %v784 = vld [vmem:[%s783] sm:$0xff]
        %v785 = vld [vmem:[%s783 + $0x8] sm:$0xff]
        %v786 = vld [vmem:[%s783 + $0x10] sm:$0xff]
        %v787 = vld [vmem:[%s783 + $0x18] sm:$0xff]
        %v788 = vld [vmem:[%s783 + $0x20] sm:$0xff]
        %v789 = vld [vmem:[%s783 + $0x28] sm:$0xff]
        %v790 = vld [vmem:[%s783 + $0x30] sm:$0xff]
        %v791 = vld [vmem:[%s783 + $0x38] sm:$0xff]
        %v792 = vld [vmem:[%s783 + $0x40] sm:$0xff]
        %v793 = vld [vmem:[%s783 + $0x48] sm:$0xff]
        %v794 = vld [vmem:[%s783 + $0x50] sm:$0xff]
        %v795 = vld [vmem:[%s783 + $0x58] sm:$0xff]
        %v796 = vld [vmem:[%s783 + $0x60] sm:$0xff]
        %v797 = vld [vmem:[%s783 + $0x68] sm:$0xff]
        %v798 = vld [vmem:[%s783 + $0x70] sm:$0xff]
        %v799 = vld [vmem:[%s783 + $0x78] sm:$0xff]
        %v800 = vld [vmem:[%s783 + $0x80] sm:$0xff]
        %v801 = vld [vmem:[%s783 + $0x88] sm:$0xff]
        %v802 = vld [vmem:[%s783 + $0x90] sm:$0xff]
        %v803 = vld [vmem:[%s783 + $0x98] sm:$0xff]
        %v804 = vld [vmem:[%s783 + $0xa0] sm:$0xff]
        %v805 = vld [vmem:[%s783 + $0xa8] sm:$0xff]
        %v806 = vld [vmem:[%s783 + $0xb0] sm:$0xff]
        %v807 = vld [vmem:[%s783 + $0xb8] sm:$0xff]
        %v808 = vld [vmem:[%s783 + $0xc0] sm:$0xff]
        %v809 = vld [vmem:[%s783 + $0xc8] sm:$0xff]
        %v810 = vld [vmem:[%s783 + $0xd0] sm:$0xff]
        %v811 = vld [vmem:[%s783 + $0xd8] sm:$0xff]
        %v812 = vld [vmem:[%s783 + $0xe0] sm:$0xff]
        %v813 = vld [vmem:[%s783 + $0xe8] sm:$0xff]
        %v814 = vld [vmem:[%s783 + $0xf0] sm:$0xff]
        %v815 = vld [vmem:[%s783 + $0xf8] sm:$0xff]
        %v816 = vld [vmem:[%s783 + $0x100] sm:$0xff]
        %v817 = vld [vmem:[%s783 + $0x108] sm:$0xff]
        %v818 = vld [vmem:[%s783 + $0x110] sm:$0xff]
        %v819 = vld [vmem:[%s783 + $0x118] sm:$0xff]
        %v820 = vld [vmem:[%s783 + $0x120] sm:$0xff]
        %v821 = vld [vmem:[%s783 + $0x128] sm:$0xff]
        %v822 = vld [vmem:[%s783 + $0x130] sm:$0xff]
        %v823 = vld [vmem:[%s783 + $0x138] sm:$0xff]
        %v824 = vld [vmem:[%s783 + $0x140] sm:$0xff]
        %v825 = vld [vmem:[%s783 + $0x148] sm:$0xff]
        %v826 = vld [vmem:[%s783 + $0x150] sm:$0xff]
        %v827 = vld [vmem:[%s783 + $0x158] sm:$0xff]
        %v828 = vld [vmem:[%s783 + $0x160] sm:$0xff]
        %v829 = vld [vmem:[%s783 + $0x168] sm:$0xff]
        %v830 = vld [vmem:[%s783 + $0x170] sm:$0xff]
        %v831 = vld [vmem:[%s783 + $0x178] sm:$0xff]
        %v832 = vld [vmem:[%s783 + $0x180] sm:$0xff]
        %v833 = vld [vmem:[%s783 + $0x188] sm:$0xff]
        %v834 = vld [vmem:[%s783 + $0x190] sm:$0xff]
        %v835 = vld [vmem:[%s783 + $0x198] sm:$0xff]
        %v836 = vld [vmem:[%s783 + $0x1a0] sm:$0xff]
        %v837 = vld [vmem:[%s783 + $0x1a8] sm:$0xff]
        %v838 = vld [vmem:[%s783 + $0x1b0] sm:$0xff]
        %v839 = vld [vmem:[%s783 + $0x1b8] sm:$0xff]
        %v840 = vld [vmem:[%s783 + $0x1c0] sm:$0xff]
        %v841 = vld [vmem:[%s783 + $0x1c8] sm:$0xff]
        %v842 = vld [vmem:[%s783 + $0x1d0] sm:$0xff]
        %v843 = vld [vmem:[%s783 + $0x1d8] sm:$0xff]
        %v844 = vld [vmem:[%s783 + $0x1e0] sm:$0xff]
        %v845 = vld [vmem:[%s783 + $0x1e8] sm:$0xff]
        %v846 = vld [vmem:[%s783 + $0x1f0] sm:$0xff]
        %v847 = vld [vmem:[%s783 + $0x1f8] sm:$0xff]
        %v848 = vld [vmem:[%s783 + $0x200] sm:$0xff]
        %v849 = vld [vmem:[%s783 + $0x208] sm:$0xff]
        %v850 = vld [vmem:[%s783 + $0x210] sm:$0xff]
        %v851 = vld [vmem:[%s783 + $0x218] sm:$0xff]
        %v852 = vld [vmem:[%s783 + $0x220] sm:$0xff]
        %v853 = vld [vmem:[%s783 + $0x228] sm:$0xff]
        %v854 = vld [vmem:[%s783 + $0x230] sm:$0xff]
        %v855 = vld [vmem:[%s783 + $0x238] sm:$0xff]
        %v856 = vld [vmem:[%s783 + $0x240] sm:$0xff]
        %v857 = vld [vmem:[%s783 + $0x248] sm:$0xff]
        %v858 = vld [vmem:[%s783 + $0x250] sm:$0xff]
        %v859 = vld [vmem:[%s783 + $0x258] sm:$0xff]
        %v860 = vld [vmem:[%s783 + $0x260] sm:$0xff]
        %v861 = vld [vmem:[%s783 + $0x268] sm:$0xff]
        %v862 = vld [vmem:[%s783 + $0x270] sm:$0xff]
        %v863 = vld [vmem:[%s783 + $0x278] sm:$0xff]
        %v864 = vld [vmem:[%s783 + $0x280] sm:$0xff]
        %v865 = vld [vmem:[%s783 + $0x288] sm:$0xff]
        %v866 = vld [vmem:[%s783 + $0x290] sm:$0xff]
        %v867 = vld [vmem:[%s783 + $0x298] sm:$0xff]
        %v868 = vld [vmem:[%s783 + $0x2a0] sm:$0xff]
        %v869 = vld [vmem:[%s783 + $0x2a8] sm:$0xff]
        %v870 = vld [vmem:[%s783 + $0x2b0] sm:$0xff]
        %v871 = vld [vmem:[%s783 + $0x2b8] sm:$0xff]
        %v872 = vld [vmem:[%s783 + $0x2c0] sm:$0xff]
        %v873 = vld [vmem:[%s783 + $0x2c8] sm:$0xff]
        %v874 = vld [vmem:[%s783 + $0x2d0] sm:$0xff]
        %v875 = vld [vmem:[%s783 + $0x2d8] sm:$0xff]
        %v876 = vld [vmem:[%s783 + $0x2e0] sm:$0xff]
        %v877 = vld [vmem:[%s783 + $0x2e8] sm:$0xff]
        %v878 = vld [vmem:[%s783 + $0x2f0] sm:$0xff]
        %v879 = vld [vmem:[%s783 + $0x2f8] sm:$0xff]
        %v880 = vld [vmem:[%s783 + $0x300] sm:$0xff]
        %v881 = vld [vmem:[%s783 + $0x308] sm:$0xff]
        %v882 = vld [vmem:[%s783 + $0x310] sm:$0xff]
        %v883 = vld [vmem:[%s783 + $0x318] sm:$0xff]
        %v884 = vld [vmem:[%s783 + $0x320] sm:$0xff]
        %v885 = vld [vmem:[%s783 + $0x328] sm:$0xff]
        %v886 = vld [vmem:[%s783 + $0x330] sm:$0xff]
        %v887 = vld [vmem:[%s783 + $0x338] sm:$0xff]
        %v888 = vld [vmem:[%s783 + $0x340] sm:$0xff]
        %v889 = vld [vmem:[%s783 + $0x348] sm:$0xff]
        %v890 = vld [vmem:[%s783 + $0x350] sm:$0xff]
        %v891 = vld [vmem:[%s783 + $0x358] sm:$0xff]
        %v892 = vld [vmem:[%s783 + $0x360] sm:$0xff]
        %v893 = vld [vmem:[%s783 + $0x368] sm:$0xff]
        %v894 = vld [vmem:[%s783 + $0x370] sm:$0xff]
        %v895 = vld [vmem:[%s783 + $0x378] sm:$0xff]
        %v896 = vld [vmem:[%s783 + $0x380] sm:$0xff]
        %v897 = vld [vmem:[%s783 + $0x388] sm:$0xff]
        %v898 = vld [vmem:[%s783 + $0x390] sm:$0xff]
        %v899 = vld [vmem:[%s783 + $0x398] sm:$0xff]
        %v900 = vld [vmem:[%s783 + $0x3a0] sm:$0xff]
        %v901 = vld [vmem:[%s783 + $0x3a8] sm:$0xff]
        %v902 = vld [vmem:[%s783 + $0x3b0] sm:$0xff]
        %v903 = vld [vmem:[%s783 + $0x3b8] sm:$0xff]
        %v904 = vld [vmem:[%s783 + $0x3c0] sm:$0xff]
        %v905 = vld [vmem:[%s783 + $0x3c8] sm:$0xff]
        %v906 = vld [vmem:[%s783 + $0x3d0] sm:$0xff]
        %v907 = vld [vmem:[%s783 + $0x3d8] sm:$0xff]
        %v908 = vld [vmem:[%s783 + $0x3e0] sm:$0xff]
        %v909 = vld [vmem:[%s783 + $0x3e8] sm:$0xff]
        %v910 = vld [vmem:[%s783 + $0x3f0] sm:$0xff]
        %v911 = vld [vmem:[%s783 + $0x3f8] sm:$0xff]
        %v912 = vld [vmem:[%s783 + $0x400] sm:$0xff]
        %v913 = vld [vmem:[%s783 + $0x408] sm:$0xff]
        %v914 = vld [vmem:[%s783 + $0x410] sm:$0xff]
        %v915 = vld [vmem:[%s783 + $0x418] sm:$0xff]
        %v916 = vld [vmem:[%s783 + $0x420] sm:$0xff]
        %v917 = vld [vmem:[%s783 + $0x428] sm:$0xff]
        %v918 = vld [vmem:[%s783 + $0x430] sm:$0xff]
        %v919 = vld [vmem:[%s783 + $0x438] sm:$0xff]
        %v920 = vld [vmem:[%s783 + $0x440] sm:$0xff]
        %v921 = vld [vmem:[%s783 + $0x448] sm:$0xff]
        %v922 = vld [vmem:[%s783 + $0x450] sm:$0xff]
        %v923 = vld [vmem:[%s783 + $0x458] sm:$0xff]
        %v924 = vld [vmem:[%s783 + $0x460] sm:$0xff]
        %v925 = vld [vmem:[%s783 + $0x468] sm:$0xff]
        %v926 = vld [vmem:[%s783 + $0x470] sm:$0xff]
        %v927 = vld [vmem:[%s783 + $0x478] sm:$0xff]
        %v928 = vld [vmem:[%s783 + $0x480] sm:$0xff]
        %v929 = vld [vmem:[%s783 + $0x488] sm:$0xff]
        %v930 = vld [vmem:[%s783 + $0x490] sm:$0xff]
        %v931 = vld [vmem:[%s783 + $0x498] sm:$0xff]
        %v932 = vld [vmem:[%s783 + $0x4a0] sm:$0xff]
        %v933 = vld [vmem:[%s783 + $0x4a8] sm:$0xff]
        %v934 = vld [vmem:[%s783 + $0x4b0] sm:$0xff]
        %v935 = vld [vmem:[%s783 + $0x4b8] sm:$0xff]
        %v936 = vld [vmem:[%s783 + $0x4c0] sm:$0xff]
        %v937 = vld [vmem:[%s783 + $0x4c8] sm:$0xff]
        %v938 = vld [vmem:[%s783 + $0x4d0] sm:$0xff]
        %v939 = vld [vmem:[%s783 + $0x4d8] sm:$0xff]
        %v940 = vld [vmem:[%s783 + $0x4e0] sm:$0xff]
        %v941 = vld [vmem:[%s783 + $0x4e8] sm:$0xff]
        %v942 = vld [vmem:[%s783 + $0x4f0] sm:$0xff]
        %v943 = vld [vmem:[%s783 + $0x4f8] sm:$0xff]
        %v944 = vld [vmem:[%s783 + $0x500] sm:$0xff]
        %v945 = vld [vmem:[%s783 + $0x508] sm:$0xff]
        %v946 = vld [vmem:[%s783 + $0x510] sm:$0xff]
        %v947 = vld [vmem:[%s783 + $0x518] sm:$0xff]
        %v948 = vld [vmem:[%s783 + $0x520] sm:$0xff]
        %v949 = vld [vmem:[%s783 + $0x528] sm:$0xff]
        %v950 = vld [vmem:[%s783 + $0x530] sm:$0xff]
        %v951 = vld [vmem:[%s783 + $0x538] sm:$0xff]
        %v952 = vld [vmem:[%s783 + $0x540] sm:$0xff]
        %v953 = vld [vmem:[%s783 + $0x548] sm:$0xff]
        %v954 = vld [vmem:[%s783 + $0x550] sm:$0xff]
        %v955 = vld [vmem:[%s783 + $0x558] sm:$0xff]
        %v956 = vld [vmem:[%s783 + $0x560] sm:$0xff]
        %v957 = vld [vmem:[%s783 + $0x568] sm:$0xff]
        %v958 = vld [vmem:[%s783 + $0x570] sm:$0xff]
        %v959 = vld [vmem:[%s783 + $0x578] sm:$0xff]
        %v960 = vld [vmem:[%s783 + $0x580] sm:$0xff]
        %v961 = vld [vmem:[%s783 + $0x588] sm:$0xff]
        %v962 = vld [vmem:[%s783 + $0x590] sm:$0xff]
        %v963 = vld [vmem:[%s783 + $0x598] sm:$0xff]
        %v964 = vld [vmem:[%s783 + $0x5a0] sm:$0xff]
        %v965 = vld [vmem:[%s783 + $0x5a8] sm:$0xff]
        %v966 = vld [vmem:[%s783 + $0x5b0] sm:$0xff]
        %v967 = vld [vmem:[%s783 + $0x5b8] sm:$0xff]
        %v968 = vld [vmem:[%s783 + $0x5c0] sm:$0xff]
        %v969 = vld [vmem:[%s783 + $0x5c8] sm:$0xff]
        %v970 = vld [vmem:[%s783 + $0x5d0] sm:$0xff]
        %v971 = vld [vmem:[%s783 + $0x5d8] sm:$0xff]
        %v972 = vld [vmem:[%s783 + $0x5e0] sm:$0xff]
        %v973 = vld [vmem:[%s783 + $0x5e8] sm:$0xff]
        %v974 = vld [vmem:[%s783 + $0x5f0] sm:$0xff]
        %v975 = vld [vmem:[%s783 + $0x5f8] sm:$0xff]
        %v976 = vld [vmem:[%s783 + $0x600] sm:$0xff]
        %v977 = vld [vmem:[%s783 + $0x608] sm:$0xff]
        %v978 = vld [vmem:[%s783 + $0x610] sm:$0xff]
        %v979 = vld [vmem:[%s783 + $0x618] sm:$0xff]
        %v980 = vld [vmem:[%s783 + $0x620] sm:$0xff]
        %v981 = vld [vmem:[%s783 + $0x628] sm:$0xff]
        %v982 = vld [vmem:[%s783 + $0x630] sm:$0xff]
        %v983 = vld [vmem:[%s783 + $0x638] sm:$0xff]
        %v984 = vld [vmem:[%s783 + $0x640] sm:$0xff]
        %v985 = vld [vmem:[%s783 + $0x648] sm:$0xff]
        %v986 = vld [vmem:[%s783 + $0x650] sm:$0xff]
        %v987 = vld [vmem:[%s783 + $0x658] sm:$0xff]
        %v988 = vld [vmem:[%s783 + $0x660] sm:$0xff]
        %v989 = vld [vmem:[%s783 + $0x668] sm:$0xff]
        %v990 = vld [vmem:[%s783 + $0x670] sm:$0xff]
        %v991 = vld [vmem:[%s783 + $0x678] sm:$0xff]
        %v992 = vld [vmem:[%s783 + $0x680] sm:$0xff]
        %v993 = vld [vmem:[%s783 + $0x688] sm:$0xff]
        %v994 = vld [vmem:[%s783 + $0x690] sm:$0xff]
        %v995 = vld [vmem:[%s783 + $0x698] sm:$0xff]
        %v996 = vld [vmem:[%s783 + $0x6a0] sm:$0xff]
        %v997 = vld [vmem:[%s783 + $0x6a8] sm:$0xff]
        %v998 = vld [vmem:[%s783 + $0x6b0] sm:$0xff]
        %v999 = vld [vmem:[%s783 + $0x6b8] sm:$0xff]
        %v1000 = vld [vmem:[%s783 + $0x6c0] sm:$0xff]
        %v1001 = vld [vmem:[%s783 + $0x6c8] sm:$0xff]
        %v1002 = vld [vmem:[%s783 + $0x6d0] sm:$0xff]
        %v1003 = vld [vmem:[%s783 + $0x6d8] sm:$0xff]
        %v1004 = vld [vmem:[%s783 + $0x6e0] sm:$0xff]
        %v1005 = vld [vmem:[%s783 + $0x6e8] sm:$0xff]
        %v1006 = vld [vmem:[%s783 + $0x6f0] sm:$0xff]
        %v1007 = vld [vmem:[%s783 + $0x6f8] sm:$0xff]
        %v1008 = vld [vmem:[%s783 + $0x700] sm:$0xff]
        %v1009 = vld [vmem:[%s783 + $0x708] sm:$0xff]
        %v1010 = vld [vmem:[%s783 + $0x710] sm:$0xff]
        %v1011 = vld [vmem:[%s783 + $0x718] sm:$0xff]
        %v1012 = vld [vmem:[%s783 + $0x720] sm:$0xff]
        %v1013 = vld [vmem:[%s783 + $0x728] sm:$0xff]
        %v1014 = vld [vmem:[%s783 + $0x730] sm:$0xff]
        %v1015 = vld [vmem:[%s783 + $0x738] sm:$0xff]
        %v1016 = vld [vmem:[%s783 + $0x740] sm:$0xff]
        %v1017 = vld [vmem:[%s783 + $0x748] sm:$0xff]
        %v1018 = vld [vmem:[%s783 + $0x750] sm:$0xff]
        %v1019 = vld [vmem:[%s783 + $0x758] sm:$0xff]
        %v1020 = vld [vmem:[%s783 + $0x760] sm:$0xff]
        %v1021 = vld [vmem:[%s783 + $0x768] sm:$0xff]
        %v1022 = vld [vmem:[%s783 + $0x770] sm:$0xff]
        %v1023 = vld [vmem:[%s783 + $0x778] sm:$0xff]
        %v1024 = vld [vmem:[%s783 + $0x780] sm:$0xff]
        %v1025 = vld [vmem:[%s783 + $0x788] sm:$0xff]
        %v1026 = vld [vmem:[%s783 + $0x790] sm:$0xff]
        %v1027 = vld [vmem:[%s783 + $0x798] sm:$0xff]
        %v1028 = vld [vmem:[%s783 + $0x7a0] sm:$0xff]
        %v1029 = vld [vmem:[%s783 + $0x7a8] sm:$0xff]
        %v1030 = vld [vmem:[%s783 + $0x7b0] sm:$0xff]
        %v1031 = vld [vmem:[%s783 + $0x7b8] sm:$0xff]
        %v1032 = vld [vmem:[%s783 + $0x7c0] sm:$0xff]
        %v1033 = vld [vmem:[%s783 + $0x7c8] sm:$0xff]
        %v1034 = vld [vmem:[%s783 + $0x7d0] sm:$0xff]
        %v1035 = vld [vmem:[%s783 + $0x7d8] sm:$0xff]
        %v1036 = vld [vmem:[%s783 + $0x7e0] sm:$0xff]
        %v1037 = vld [vmem:[%s783 + $0x7e8] sm:$0xff]
        %v1038 = vld [vmem:[%s783 + $0x7f0] sm:$0xff]
        %v1039 = vld [vmem:[%s783 + $0x7f8] sm:$0xff]
        %v1040 = vld [vmem:[%s783 + $0x800] sm:$0xff]
        %v1041 = vld [vmem:[%s783 + $0x808] sm:$0xff]
        %v1042 = vld [vmem:[%s783 + $0x810] sm:$0xff]
        %v1043 = vld [vmem:[%s783 + $0x818] sm:$0xff]
        %v1044 = vld [vmem:[%s783 + $0x820] sm:$0xff]
        %v1045 = vld [vmem:[%s783 + $0x828] sm:$0xff]
        %v1046 = vld [vmem:[%s783 + $0x830] sm:$0xff]
        %v1047 = vld [vmem:[%s783 + $0x838] sm:$0xff]
        %v1048 = vld [vmem:[%s783 + $0x840] sm:$0xff]
        %v1049 = vld [vmem:[%s783 + $0x848] sm:$0xff]
        %v1050 = vld [vmem:[%s783 + $0x850] sm:$0xff]
        %v1051 = vld [vmem:[%s783 + $0x858] sm:$0xff]
        %v1052 = vld [vmem:[%s783 + $0x860] sm:$0xff]
        %v1053 = vld [vmem:[%s783 + $0x868] sm:$0xff]
        %v1054 = vld [vmem:[%s783 + $0x870] sm:$0xff]
        %v1055 = vld [vmem:[%s783 + $0x878] sm:$0xff]
        %v1056 = vld [vmem:[%s783 + $0x880] sm:$0xff]
        %v1057 = vld [vmem:[%s783 + $0x888] sm:$0xff]
        %v1058 = vld [vmem:[%s783 + $0x890] sm:$0xff]
        %v1059 = vld [vmem:[%s783 + $0x898] sm:$0xff]
        %v1060 = vld [vmem:[%s783 + $0x8a0] sm:$0xff]
        %v1061 = vld [vmem:[%s783 + $0x8a8] sm:$0xff]
        %v1062 = vld [vmem:[%s783 + $0x8b0] sm:$0xff]
        %v1063 = vld [vmem:[%s783 + $0x8b8] sm:$0xff]
        %v1064 = vld [vmem:[%s783 + $0x8c0] sm:$0xff]
        %v1065 = vld [vmem:[%s783 + $0x8c8] sm:$0xff]
        %v1066 = vld [vmem:[%s783 + $0x8d0] sm:$0xff]
        %v1067 = vld [vmem:[%s783 + $0x8d8] sm:$0xff]
        %v1068 = vld [vmem:[%s783 + $0x8e0] sm:$0xff]
        %v1069 = vld [vmem:[%s783 + $0x8e8] sm:$0xff]
        %v1070 = vld [vmem:[%s783 + $0x8f0] sm:$0xff]
        %v1071 = vld [vmem:[%s783 + $0x8f8] sm:$0xff]
        %v1072 = vld [vmem:[%s783 + $0x900] sm:$0xff]
        %v1073 = vld [vmem:[%s783 + $0x908] sm:$0xff]
        %v1074 = vld [vmem:[%s783 + $0x910] sm:$0xff]
        %v1075 = vld [vmem:[%s783 + $0x918] sm:$0xff]
        %v1076 = vld [vmem:[%s783 + $0x920] sm:$0xff]
        %v1077 = vld [vmem:[%s783 + $0x928] sm:$0xff]
        %v1078 = vld [vmem:[%s783 + $0x930] sm:$0xff]
        %v1079 = vld [vmem:[%s783 + $0x938] sm:$0xff]
        %v1080 = vld [vmem:[%s783 + $0x940] sm:$0xff]
        %v1081 = vld [vmem:[%s783 + $0x948] sm:$0xff]
        %v1082 = vld [vmem:[%s783 + $0x950] sm:$0xff]
        %v1083 = vld [vmem:[%s783 + $0x958] sm:$0xff]
        %v1084 = vld [vmem:[%s783 + $0x960] sm:$0xff]
        %v1085 = vld [vmem:[%s783 + $0x968] sm:$0xff]
        %v1086 = vld [vmem:[%s783 + $0x970] sm:$0xff]
        %v1087 = vld [vmem:[%s783 + $0x978] sm:$0xff]
        %v1088 = vld [vmem:[%s783 + $0x980] sm:$0xff]
        %v1089 = vld [vmem:[%s783 + $0x988] sm:$0xff]
        %v1090 = vld [vmem:[%s783 + $0x990] sm:$0xff]
        %v1091 = vld [vmem:[%s783 + $0x998] sm:$0xff]
        %v1092 = vld [vmem:[%s783 + $0x9a0] sm:$0xff]
        %v1093 = vld [vmem:[%s783 + $0x9a8] sm:$0xff]
        %v1094 = vld [vmem:[%s783 + $0x9b0] sm:$0xff]
        %v1095 = vld [vmem:[%s783 + $0x9b8] sm:$0xff]
        %v1096 = vld [vmem:[%s783 + $0x9c0] sm:$0xff]
        %v1097 = vld [vmem:[%s783 + $0x9c8] sm:$0xff]
        %v1098 = vld [vmem:[%s783 + $0x9d0] sm:$0xff]
        %v1099 = vld [vmem:[%s783 + $0x9d8] sm:$0xff]
        %v1100 = vld [vmem:[%s783 + $0x9e0] sm:$0xff]
        %v1101 = vld [vmem:[%s783 + $0x9e8] sm:$0xff]
        %v1102 = vld [vmem:[%s783 + $0x9f0] sm:$0xff]
        %v1103 = vld [vmem:[%s783 + $0x9f8] sm:$0xff]
        %v1104 = vld [vmem:[%s783 + $0xa00] sm:$0xff]
        %v1105 = vld [vmem:[%s783 + $0xa08] sm:$0xff]
        %v1106 = vld [vmem:[%s783 + $0xa10] sm:$0xff]
        %v1107 = vld [vmem:[%s783 + $0xa18] sm:$0xff]
        %v1108 = vld [vmem:[%s783 + $0xa20] sm:$0xff]
        %v1109 = vld [vmem:[%s783 + $0xa28] sm:$0xff]
        %v1110 = vld [vmem:[%s783 + $0xa30] sm:$0xff]
        %v1111 = vld [vmem:[%s783 + $0xa38] sm:$0xff]
        %v1112 = vld [vmem:[%s783 + $0xa40] sm:$0xff]
        %v1113 = vld [vmem:[%s783 + $0xa48] sm:$0xff]
        %v1114 = vld [vmem:[%s783 + $0xa50] sm:$0xff]
        %v1115 = vld [vmem:[%s783 + $0xa58] sm:$0xff]
        %v1116 = vld [vmem:[%s783 + $0xa60] sm:$0xff]
        %v1117 = vld [vmem:[%s783 + $0xa68] sm:$0xff]
        %v1118 = vld [vmem:[%s783 + $0xa70] sm:$0xff]
        %v1119 = vld [vmem:[%s783 + $0xa78] sm:$0xff]
        %v1120 = vld [vmem:[%s783 + $0xa80] sm:$0xff]
        %v1121 = vld [vmem:[%s783 + $0xa88] sm:$0xff]
        %v1122 = vld [vmem:[%s783 + $0xa90] sm:$0xff]
        %v1123 = vld [vmem:[%s783 + $0xa98] sm:$0xff]
        %v1124 = vld [vmem:[%s783 + $0xaa0] sm:$0xff]
        %v1125 = vld [vmem:[%s783 + $0xaa8] sm:$0xff]
        %v1126 = vld [vmem:[%s783 + $0xab0] sm:$0xff]
        %v1127 = vld [vmem:[%s783 + $0xab8] sm:$0xff]
        %v1128 = vld [vmem:[%s783 + $0xac0] sm:$0xff]
        %v1129 = vld [vmem:[%s783 + $0xac8] sm:$0xff]
        %v1130 = vld [vmem:[%s783 + $0xad0] sm:$0xff]
        %v1131 = vld [vmem:[%s783 + $0xad8] sm:$0xff]
        %v1132 = vld [vmem:[%s783 + $0xae0] sm:$0xff]
        %v1133 = vld [vmem:[%s783 + $0xae8] sm:$0xff]
        %v1134 = vld [vmem:[%s783 + $0xaf0] sm:$0xff]
        %v1135 = vld [vmem:[%s783 + $0xaf8] sm:$0xff]
        %v1136 = vld [vmem:[%s783 + $0xb00] sm:$0xff]
        %v1137 = vld [vmem:[%s783 + $0xb08] sm:$0xff]
        %v1138 = vld [vmem:[%s783 + $0xb10] sm:$0xff]
        %v1139 = vld [vmem:[%s783 + $0xb18] sm:$0xff]
        %v1140 = vld [vmem:[%s783 + $0xb20] sm:$0xff]
        %v1141 = vld [vmem:[%s783 + $0xb28] sm:$0xff]
        %v1142 = vld [vmem:[%s783 + $0xb30] sm:$0xff]
        %v1143 = vld [vmem:[%s783 + $0xb38] sm:$0xff]
        %v1144 = vld [vmem:[%s783 + $0xb40] sm:$0xff]
        %v1145 = vld [vmem:[%s783 + $0xb48] sm:$0xff]
        %v1146 = vld [vmem:[%s783 + $0xb50] sm:$0xff]
        %v1147 = vld [vmem:[%s783 + $0xb58] sm:$0xff]
        %v1148 = vld [vmem:[%s783 + $0xb60] sm:$0xff]
        %v1149 = vld [vmem:[%s783 + $0xb68] sm:$0xff]
        %v1150 = vld [vmem:[%s783 + $0xb70] sm:$0xff]
        %v1151 = vld [vmem:[%s783 + $0xb78] sm:$0xff]
        %v1152 = vld [vmem:[%s783 + $0xb80] sm:$0xff]
        %v1153 = vld [vmem:[%s783 + $0xb88] sm:$0xff]
        %v1154 = vld [vmem:[%s783 + $0xb90] sm:$0xff]
        %v1155 = vld [vmem:[%s783 + $0xb98] sm:$0xff]
        %v1156 = vld [vmem:[%s783 + $0xba0] sm:$0xff]
        %v1157 = vld [vmem:[%s783 + $0xba8] sm:$0xff]
        %v1158 = vld [vmem:[%s783 + $0xbb0] sm:$0xff]
        %v1159 = vld [vmem:[%s783 + $0xbb8] sm:$0xff]
        %v1160 = vld [vmem:[%s783 + $0xbc0] sm:$0xff]
        %v1161 = vld [vmem:[%s783 + $0xbc8] sm:$0xff]
        %v1162 = vld [vmem:[%s783 + $0xbd0] sm:$0xff]
        %v1163 = vld [vmem:[%s783 + $0xbd8] sm:$0xff]
        %v1164 = vld [vmem:[%s783 + $0xbe0] sm:$0xff]
        %v1165 = vld [vmem:[%s783 + $0xbe8] sm:$0xff]
        %v1166 = vld [vmem:[%s783 + $0xbf0] sm:$0xff]
        %v1167 = vld [vmem:[%s783 + $0xbf8] sm:$0xff]
        %v1168 = vld [vmem:[%s783 + $0xc00] sm:$0xff]
        %v1169 = vld [vmem:[%s783 + $0xc08] sm:$0xff]
        %v1170 = vld [vmem:[%s783 + $0xc10] sm:$0xff]
        %v1171 = vld [vmem:[%s783 + $0xc18] sm:$0xff]
        %v1172 = vld [vmem:[%s783 + $0xc20] sm:$0xff]
        %v1173 = vld [vmem:[%s783 + $0xc28] sm:$0xff]
        %v1174 = vld [vmem:[%s783 + $0xc30] sm:$0xff]
        %v1175 = vld [vmem:[%s783 + $0xc38] sm:$0xff]
        %v1176 = vld [vmem:[%s783 + $0xc40] sm:$0xff]
        %v1177 = vld [vmem:[%s783 + $0xc48] sm:$0xff]
        %v1178 = vld [vmem:[%s783 + $0xc50] sm:$0xff]
        %v1179 = vld [vmem:[%s783 + $0xc58] sm:$0xff]
        %v1180 = vld [vmem:[%s783 + $0xc60] sm:$0xff]
        %v1181 = vld [vmem:[%s783 + $0xc68] sm:$0xff]
        %v1182 = vld [vmem:[%s783 + $0xc70] sm:$0xff]
        %v1183 = vld [vmem:[%s783 + $0xc78] sm:$0xff]
        %v1184 = vld [vmem:[%s783 + $0xc80] sm:$0xff]
        %v1185 = vld [vmem:[%s783 + $0xc88] sm:$0xff]
        %v1186 = vld [vmem:[%s783 + $0xc90] sm:$0xff]
        %v1187 = vld [vmem:[%s783 + $0xc98] sm:$0xff]
        %v1188 = vld [vmem:[%s783 + $0xca0] sm:$0xff]
        %v1189 = vld [vmem:[%s783 + $0xca8] sm:$0xff]
        %v1190 = vld [vmem:[%s783 + $0xcb0] sm:$0xff]
        %v1191 = vld [vmem:[%s783 + $0xcb8] sm:$0xff]
        %v1192 = vld [vmem:[%s783 + $0xcc0] sm:$0xff]
        %v1193 = vld [vmem:[%s783 + $0xcc8] sm:$0xff]
        %v1194 = vld [vmem:[%s783 + $0xcd0] sm:$0xff]
        %v1195 = vld [vmem:[%s783 + $0xcd8] sm:$0xff]
        %v1196 = vld [vmem:[%s783 + $0xce0] sm:$0xff]
        %v1197 = vld [vmem:[%s783 + $0xce8] sm:$0xff]
        %v1198 = vld [vmem:[%s783 + $0xcf0] sm:$0xff]
        %v1199 = vld [vmem:[%s783 + $0xcf8] sm:$0xff]
        %v1200 = vld [vmem:[%s783 + $0xd00] sm:$0xff]
        %v1201 = vld [vmem:[%s783 + $0xd08] sm:$0xff]
        %v1202 = vld [vmem:[%s783 + $0xd10] sm:$0xff]
        %v1203 = vld [vmem:[%s783 + $0xd18] sm:$0xff]
        %v1204 = vld [vmem:[%s783 + $0xd20] sm:$0xff]
        %v1205 = vld [vmem:[%s783 + $0xd28] sm:$0xff]
        %v1206 = vld [vmem:[%s783 + $0xd30] sm:$0xff]
        %v1207 = vld [vmem:[%s783 + $0xd38] sm:$0xff]
        %v1208 = vld [vmem:[%s783 + $0xd40] sm:$0xff]
        %v1209 = vld [vmem:[%s783 + $0xd48] sm:$0xff]
        %v1210 = vld [vmem:[%s783 + $0xd50] sm:$0xff]
        %v1211 = vld [vmem:[%s783 + $0xd58] sm:$0xff]
        %v1212 = vld [vmem:[%s783 + $0xd60] sm:$0xff]
        %v1213 = vld [vmem:[%s783 + $0xd68] sm:$0xff]
        %v1214 = vld [vmem:[%s783 + $0xd70] sm:$0xff]
        %v1215 = vld [vmem:[%s783 + $0xd78] sm:$0xff]
        %v1216 = vld [vmem:[%s783 + $0xd80] sm:$0xff]
        %v1217 = vld [vmem:[%s783 + $0xd88] sm:$0xff]
        %v1218 = vld [vmem:[%s783 + $0xd90] sm:$0xff]
        %v1219 = vld [vmem:[%s783 + $0xd98] sm:$0xff]
        %v1220 = vld [vmem:[%s783 + $0xda0] sm:$0xff]
        %v1221 = vld [vmem:[%s783 + $0xda8] sm:$0xff]
        %v1222 = vld [vmem:[%s783 + $0xdb0] sm:$0xff]
        %v1223 = vld [vmem:[%s783 + $0xdb8] sm:$0xff]
        %v1224 = vld [vmem:[%s783 + $0xdc0] sm:$0xff]
        %v1225 = vld [vmem:[%s783 + $0xdc8] sm:$0xff]
        %v1226 = vld [vmem:[%s783 + $0xdd0] sm:$0xff]
        %v1227 = vld [vmem:[%s783 + $0xdd8] sm:$0xff]
        %v1228 = vld [vmem:[%s783 + $0xde0] sm:$0xff]
        %v1229 = vld [vmem:[%s783 + $0xde8] sm:$0xff]
        %v1230 = vld [vmem:[%s783 + $0xdf0] sm:$0xff]
        %v1231 = vld [vmem:[%s783 + $0xdf8] sm:$0xff]
        %v1232 = vld [vmem:[%s783 + $0xe00] sm:$0xff]
        %v1233 = vld [vmem:[%s783 + $0xe08] sm:$0xff]
        %v1234 = vld [vmem:[%s783 + $0xe10] sm:$0xff]
        %v1235 = vld [vmem:[%s783 + $0xe18] sm:$0xff]
        %v1236 = vld [vmem:[%s783 + $0xe20] sm:$0xff]
        %v1237 = vld [vmem:[%s783 + $0xe28] sm:$0xff]
        %v1238 = vld [vmem:[%s783 + $0xe30] sm:$0xff]
        %v1239 = vld [vmem:[%s783 + $0xe38] sm:$0xff]
        %v1240 = vld [vmem:[%s783 + $0xe40] sm:$0xff]
        %v1241 = vld [vmem:[%s783 + $0xe48] sm:$0xff]
        %v1242 = vld [vmem:[%s783 + $0xe50] sm:$0xff]
        %v1243 = vld [vmem:[%s783 + $0xe58] sm:$0xff]
        %v1244 = vld [vmem:[%s783 + $0xe60] sm:$0xff]
        %v1245 = vld [vmem:[%s783 + $0xe68] sm:$0xff]
        %v1246 = vld [vmem:[%s783 + $0xe70] sm:$0xff]
        %v1247 = vld [vmem:[%s783 + $0xe78] sm:$0xff]
        %v1248 = vld [vmem:[%s783 + $0xe80] sm:$0xff]
        %v1249 = vld [vmem:[%s783 + $0xe88] sm:$0xff]
        %v1250 = vld [vmem:[%s783 + $0xe90] sm:$0xff]
        %v1251 = vld [vmem:[%s783 + $0xe98] sm:$0xff]
        %v1252 = vld [vmem:[%s783 + $0xea0] sm:$0xff]
        %v1253 = vld [vmem:[%s783 + $0xea8] sm:$0xff]
        %v1254 = vld [vmem:[%s783 + $0xeb0] sm:$0xff]
        %v1255 = vld [vmem:[%s783 + $0xeb8] sm:$0xff]
        %v1256 = vld [vmem:[%s783 + $0xec0] sm:$0xff]
        %v1257 = vld [vmem:[%s783 + $0xec8] sm:$0xff]
        %v1258 = vld [vmem:[%s783 + $0xed0] sm:$0xff]
        %v1259 = vld [vmem:[%s783 + $0xed8] sm:$0xff]
        %v1260 = vld [vmem:[%s783 + $0xee0] sm:$0xff]
        %v1261 = vld [vmem:[%s783 + $0xee8] sm:$0xff]
        %v1262 = vld [vmem:[%s783 + $0xef0] sm:$0xff]
        %v1263 = vld [vmem:[%s783 + $0xef8] sm:$0xff]
        %v1264 = vld [vmem:[%s783 + $0xf00] sm:$0xff]
        %v1265 = vld [vmem:[%s783 + $0xf08] sm:$0xff]
        %v1266 = vld [vmem:[%s783 + $0xf10] sm:$0xff]
        %v1267 = vld [vmem:[%s783 + $0xf18] sm:$0xff]
        %v1268 = vld [vmem:[%s783 + $0xf20] sm:$0xff]
        %v1269 = vld [vmem:[%s783 + $0xf28] sm:$0xff]
        %v1270 = vld [vmem:[%s783 + $0xf30] sm:$0xff]
        %v1271 = vld [vmem:[%s783 + $0xf38] sm:$0xff]
        %v1272 = vld [vmem:[%s783 + $0xf40] sm:$0xff]
        %v1273 = vld [vmem:[%s783 + $0xf48] sm:$0xff]
        %v1274 = vld [vmem:[%s783 + $0xf50] sm:$0xff]
        %v1275 = vld [vmem:[%s783 + $0xf58] sm:$0xff]
        %v1276 = vld [vmem:[%s783 + $0xf60] sm:$0xff]
        %v1277 = vld [vmem:[%s783 + $0xf68] sm:$0xff]
        %v1278 = vld [vmem:[%s783 + $0xf70] sm:$0xff]
        %v1279 = vld [vmem:[%s783 + $0xf78] sm:$0xff]
        %v1280 = vld [vmem:[%s783 + $0xf80] sm:$0xff]
        %v1281 = vld [vmem:[%s783 + $0xf88] sm:$0xff]
        %v1282 = vld [vmem:[%s783 + $0xf90] sm:$0xff]
        %v1283 = vld [vmem:[%s783 + $0xf98] sm:$0xff]
        %v1284 = vld [vmem:[%s783 + $0xfa0] sm:$0xff]
        %v1285 = vld [vmem:[%s783 + $0xfa8] sm:$0xff]
        %v1286 = vld [vmem:[%s783 + $0xfb0] sm:$0xff]
        %v1287 = vld [vmem:[%s783 + $0xfb8] sm:$0xff]
        %v1288 = vld [vmem:[%s783 + $0xfc0] sm:$0xff]
        %v1289 = vld [vmem:[%s783 + $0xfc8] sm:$0xff]
        %v1290 = vld [vmem:[%s783 + $0xfd0] sm:$0xff]
        %v1291 = vld [vmem:[%s783 + $0xfd8] sm:$0xff]
        %v1292 = vld [vmem:[%s783 + $0xfe0] sm:$0xff]
        %v1293 = vld [vmem:[%s783 + $0xfe8] sm:$0xff]
        %v1294 = vld [vmem:[%s783 + $0xff0] sm:$0xff]
        %v1295 = vld [vmem:[%s783 + $0xff8] sm:$0xff]
        %vm1364 = vcmask 1046528
        %v1365 = vrot.slane %v263, 1
        %v1366 = vrot.slane %v203, 1
        %v1367 = vsel %vm1364, %v1365, %v1366
        %v1368 = vrot.slane %v264, 1
        %v1369 = vrot.slane %v204, 1
        %v1370 = vsel %vm1364, %v1368, %v1369
        %v1371 = vrot.slane %v265, 1
        %v1372 = vrot.slane %v205, 1
        %v1373 = vsel %vm1364, %v1371, %v1372
        %v1374 = vrot.slane %v266, 1
        %v1375 = vrot.slane %v206, 1
        %v1376 = vsel %vm1364, %v1374, %v1375
        %v1377 = vrot.slane %v207, 1
        %v1378 = vsel %vm1364, %v1366, %v1377
        %v1379 = vrot.slane %v208, 1
        %v1380 = vsel %vm1364, %v1369, %v1379
        %v1381 = vrot.slane %v209, 1
        %v1382 = vsel %vm1364, %v1372, %v1381
        %v1383 = vrot.slane %v210, 1
        %v1384 = vsel %vm1364, %v1375, %v1383
        %v1385 = vrot.slane %v211, 1
        %v1386 = vsel %vm1364, %v1377, %v1385
        %v1387 = vrot.slane %v212, 1
        %v1388 = vsel %vm1364, %v1379, %v1387
        %v1389 = vrot.slane %v213, 1
        %v1390 = vsel %vm1364, %v1381, %v1389
        %v1391 = vrot.slane %v214, 1
        %v1392 = vsel %vm1364, %v1383, %v1391
        %v1393 = vrot.slane %v215, 1
        %v1394 = vsel %vm1364, %v1385, %v1393
        %v1395 = vrot.slane %v216, 1
        %v1396 = vsel %vm1364, %v1387, %v1395
        %v1397 = vrot.slane %v217, 1
        %v1398 = vsel %vm1364, %v1389, %v1397
        %v1399 = vrot.slane %v218, 1
        %v1400 = vsel %vm1364, %v1391, %v1399
        %v1401 = vrot.slane %v219, 1
        %v1402 = vsel %vm1364, %v1393, %v1401
        %v1403 = vrot.slane %v220, 1
        %v1404 = vsel %vm1364, %v1395, %v1403
        %v1405 = vrot.slane %v221, 1
        %v1406 = vsel %vm1364, %v1397, %v1405
        %v1407 = vrot.slane %v222, 1
        %v1408 = vsel %vm1364, %v1399, %v1407
        %v1409 = vrot.slane %v223, 1
        %v1410 = vsel %vm1364, %v1401, %v1409
        %v1411 = vrot.slane %v224, 1
        %v1412 = vsel %vm1364, %v1403, %v1411
        %v1413 = vrot.slane %v225, 1
        %v1414 = vsel %vm1364, %v1405, %v1413
        %v1415 = vrot.slane %v226, 1
        %v1416 = vsel %vm1364, %v1407, %v1415
        %v1417 = vrot.slane %v227, 1
        %v1418 = vsel %vm1364, %v1409, %v1417
        %v1419 = vrot.slane %v228, 1
        %v1420 = vsel %vm1364, %v1411, %v1419
        %v1421 = vrot.slane %v229, 1
        %v1422 = vsel %vm1364, %v1413, %v1421
        %v1423 = vrot.slane %v230, 1
        %v1424 = vsel %vm1364, %v1415, %v1423
        %v1425 = vrot.slane %v231, 1
        %v1426 = vsel %vm1364, %v1417, %v1425
        %v1427 = vrot.slane %v232, 1
        %v1428 = vsel %vm1364, %v1419, %v1427
        %v1429 = vrot.slane %v233, 1
        %v1430 = vsel %vm1364, %v1421, %v1429
        %v1431 = vrot.slane %v234, 1
        %v1432 = vsel %vm1364, %v1423, %v1431
        %v1433 = vrot.slane %v235, 1
        %v1434 = vsel %vm1364, %v1425, %v1433
        %v1435 = vrot.slane %v236, 1
        %v1436 = vsel %vm1364, %v1427, %v1435
        %v1437 = vrot.slane %v237, 1
        %v1438 = vsel %vm1364, %v1429, %v1437
        %v1439 = vrot.slane %v238, 1
        %v1440 = vsel %vm1364, %v1431, %v1439
        %v1441 = vrot.slane %v239, 1
        %v1442 = vsel %vm1364, %v1433, %v1441
        %v1443 = vrot.slane %v240, 1
        %v1444 = vsel %vm1364, %v1435, %v1443
        %v1445 = vrot.slane %v241, 1
        %v1446 = vsel %vm1364, %v1437, %v1445
        %v1447 = vrot.slane %v242, 1
        %v1448 = vsel %vm1364, %v1439, %v1447
        %v1449 = vrot.slane %v243, 1
        %v1450 = vsel %vm1364, %v1441, %v1449
        %v1451 = vrot.slane %v244, 1
        %v1452 = vsel %vm1364, %v1443, %v1451
        %v1453 = vrot.slane %v245, 1
        %v1454 = vsel %vm1364, %v1445, %v1453
        %v1455 = vrot.slane %v246, 1
        %v1456 = vsel %vm1364, %v1447, %v1455
        %v1457 = vrot.slane %v247, 1
        %v1458 = vsel %vm1364, %v1449, %v1457
        %v1459 = vrot.slane %v248, 1
        %v1460 = vsel %vm1364, %v1451, %v1459
        %v1461 = vrot.slane %v249, 1
        %v1462 = vsel %vm1364, %v1453, %v1461
        %v1463 = vrot.slane %v250, 1
        %v1464 = vsel %vm1364, %v1455, %v1463
        %v1465 = vrot.slane %v251, 1
        %v1466 = vsel %vm1364, %v1457, %v1465
        %v1467 = vrot.slane %v252, 1
        %v1468 = vsel %vm1364, %v1459, %v1467
        %v1469 = vrot.slane %v253, 1
        %v1470 = vsel %vm1364, %v1461, %v1469
        %v1471 = vrot.slane %v254, 1
        %v1472 = vsel %vm1364, %v1463, %v1471
        %v1473 = vrot.slane %v255, 1
        %v1474 = vsel %vm1364, %v1465, %v1473
        %v1475 = vrot.slane %v256, 1
        %v1476 = vsel %vm1364, %v1467, %v1475
        %v1477 = vrot.slane %v257, 1
        %v1478 = vsel %vm1364, %v1469, %v1477
        %v1479 = vrot.slane %v258, 1
        %v1480 = vsel %vm1364, %v1471, %v1479
        %v1481 = vrot.slane %v259, 1
        %v1482 = vsel %vm1364, %v1473, %v1481
        %v1483 = vrot.slane %v260, 1
        %v1484 = vsel %vm1364, %v1475, %v1483
        %v1485 = vrot.slane %v261, 1
        %v1486 = vsel %vm1364, %v1477, %v1485
        %v1487 = vrot.slane %v262, 1
        %v1488 = vsel %vm1364, %v1479, %v1487
        %v1489 = vrot.slane %v267, 1
        %v1490 = vsel %vm1364, %v1481, %v1489
        %v1491 = vrot.slane %v268, 1
        %v1492 = vsel %vm1364, %v1483, %v1491
        %v1493 = vrot.slane %v269, 1
        %v1494 = vsel %vm1364, %v1485, %v1493
        %v1495 = vrot.slane %v270, 1
        %v1496 = vsel %vm1364, %v1487, %v1495
        %1561 = vmatprep.subr.mxu0 %v785
        %1562 = vmatpush1.msra.mxu0 %v784
        %1563 = vmatprep.subr.mxu0 %v793
        %1564 = vmatpush1.msra.mxu0 %v792
        %1565 = vmatprep.subr.mxu0 %v801
        %1566 = vmatpush1.msra.mxu0 %v800
        %1567 = vmatprep.subr.mxu0 %v809
        %1568 = vmatpush1.msra.mxu0 %v808
        %1569 = vmatprep.subr.mxu0 %v817
        %1570 = vmatpush1.msra.mxu0 %v816
        %1571 = vmatprep.subr.mxu0 %v825
        %1572 = vmatpush1.msra.mxu0 %v824
        %1573 = vmatprep.subr.mxu0 %v833
        %1574 = vmatpush1.msra.mxu0 %v832
        %1575 = vmatprep.subr.mxu0 %v841
        %1576 = vmatpush1.msra.mxu0 %v840
        %1577 = vmatprep.subr.mxu0 %v849
        %1578 = vmatpush1.msra.mxu0 %v848
        %1579 = vmatprep.subr.mxu0 %v857
        %1580 = vmatpush1.msra.mxu0 %v856
        %1581 = vmatprep.subr.mxu0 %v865
        %1582 = vmatpush1.msra.mxu0 %v864
        %1583 = vmatprep.subr.mxu0 %v873
        %1584 = vmatpush1.msra.mxu0 %v872
        %1585 = vmatprep.subr.mxu0 %v881
        %1586 = vmatpush1.msra.mxu0 %v880
        %1587 = vmatprep.subr.mxu0 %v889
        %1588 = vmatpush1.msra.mxu0 %v888
        %1589 = vmatprep.subr.mxu0 %v897
        %1590 = vmatpush1.msra.mxu0 %v896
        %1591 = vmatprep.subr.mxu0 %v905
        %1592 = vmatpush1.msra.mxu0 %v904
        %1593 = vmatprep.subr.mxu0 %v913
        %1594 = vmatpush1.msra.mxu0 %v912
        %1595 = vmatprep.subr.mxu0 %v921
        %1596 = vmatpush1.msra.mxu0 %v920
        %1597 = vmatprep.subr.mxu0 %v929
        %1598 = vmatpush1.msra.mxu0 %v928
        %1599 = vmatprep.subr.mxu0 %v937
        %1600 = vmatpush1.msra.mxu0 %v936
        %1601 = vmatprep.subr.mxu0 %v945
        %1602 = vmatpush1.msra.mxu0 %v944
        %1603 = vmatprep.subr.mxu0 %v953
        %1604 = vmatpush1.msra.mxu0 %v952
        %1605 = vmatprep.subr.mxu0 %v961
        %1606 = vmatpush1.msra.mxu0 %v960
        %1607 = vmatprep.subr.mxu0 %v969
        %1608 = vmatpush1.msra.mxu0 %v968
        %1609 = vmatprep.subr.mxu0 %v977
        %1610 = vmatpush1.msra.mxu0 %v976
        %1611 = vmatprep.subr.mxu0 %v985
        %1612 = vmatpush1.msra.mxu0 %v984
        %1613 = vmatprep.subr.mxu0 %v993
        %1614 = vmatpush1.msra.mxu0 %v992
        %1615 = vmatprep.subr.mxu0 %v1001
        %1616 = vmatpush1.msra.mxu0 %v1000
        %1617 = vmatprep.subr.mxu0 %v1009
        %1618 = vmatpush1.msra.mxu0 %v1008
        %1619 = vmatprep.subr.mxu0 %v1017
        %1620 = vmatpush1.msra.mxu0 %v1016
        %1621 = vmatprep.subr.mxu0 %v1025
        %1622 = vmatpush1.msra.mxu0 %v1024
        %1623 = vmatprep.subr.mxu0 %v1033
        %1624 = vmatpush1.msra.mxu0 %v1032
        %1625 = vmatprep.mubr.f32.mxu0 %v1370
        %1626 = vmatmul.mubr.f32.gmra.mrb[0].mxu0 %v1367
        %v1627 = vpop.f32.mrb[0].mxu0
        %v1628 = vadd.f32 0.0, %v1627
        %v1629 = vpop.f32.mrb[0].mxu0
        %v1630 = vadd.f32 0.0, %v1629
        %1631 = vmatprep.mubr.f32.mxu0 %v1380
        %1632 = vmatmul.mubr.f32.gmra.mrb[0].mxu0 %v1378
        %v1633 = vpop.f32.mrb[0].mxu0
        %v1634 = vadd.f32 0.0, %v1633
        %v1635 = vpop.f32.mrb[0].mxu0
        %v1636 = vadd.f32 0.0, %v1635
        %1637 = vmatprep.mubr.f32.mxu0 %v1388
        %1638 = vmatmul.mubr.f32.gmra.mrb[0].mxu0 %v1386
        %v1639 = vpop.f32.mrb[0].mxu0
        %v1640 = vadd.f32 0.0, %v1639
        %v1641 = vpop.f32.mrb[0].mxu0
        %v1642 = vadd.f32 0.0, %v1641
        %1643 = vmatprep.mubr.f32.mxu0 %v1396
        %1644 = vmatmul.mubr.f32.gmra.mrb[0].mxu0 %v1394
        %v1645 = vpop.f32.mrb[0].mxu0
        %v1646 = vadd.f32 0.0, %v1645
        %v1647 = vpop.f32.mrb[0].mxu0
        %v1648 = vadd.f32 0.0, %v1647
        %1649 = vmatprep.mubr.f32.mxu0 %v1404
        %1650 = vmatmul.mubr.f32.gmra.mrb[0].mxu0 %v1402
        %v1651 = vpop.f32.mrb[0].mxu0
        %v1652 = vadd.f32 0.0, %v1651
        %v1653 = vpop.f32.mrb[0].mxu0
        %v1654 = vadd.f32 0.0, %v1653
        %1655 = vmatprep.mubr.f32.mxu0 %v1412
        %1656 = vmatmul.mubr.f32.gmra.mrb[0].mxu0 %v1410
        %v1657 = vpop.f32.mrb[0].mxu0
        %v1658 = vadd.f32 0.0, %v1657
        %v1659 = vpop.f32.mrb[0].mxu0
        %v1660 = vadd.f32 0.0, %v1659
        %1661 = vmatprep.mubr.f32.mxu0 %v1420
        %1662 = vmatmul.mubr.f32.gmra.mrb[0].mxu0 %v1418
        %v1663 = vpop.f32.mrb[0].mxu0
        %v1664 = vadd.f32 0.0, %v1663
        %v1665 = vpop.f32.mrb[0].mxu0
        %v1666 = vadd.f32 0.0, %v1665
        %1667 = vmatprep.mubr.f32.mxu0 %v1428
        %1668 = vmatmul.mubr.f32.gmra.mrb[0].mxu0 %v1426
        %v1669 = vpop.f32.mrb[0].mxu0
        %v1670 = vadd.f32 0.0, %v1669
        %v1671 = vpop.f32.mrb[0].mxu0
        %v1672 = vadd.f32 0.0, %v1671
        %1673 = vmatprep.mubr.f32.mxu0 %v1436
        %1674 = vmatmul.mubr.f32.gmra.mrb[0].mxu0 %v1434
        %v1675 = vpop.f32.mrb[0].mxu0
        %v1676 = vadd.f32 0.0, %v1675
        %v1677 = vpop.f32.mrb[0].mxu0
        %v1678 = vadd.f32 0.0, %v1677
        %1679 = vmatprep.mubr.f32.mxu0 %v1444
        %1680 = vmatmul.mubr.f32.gmra.mrb[0].mxu0 %v1442
        %v1681 = vpop.f32.mrb[0].mxu0
        %v1682 = vadd.f32 0.0, %v1681
        %v1683 = vpop.f32.mrb[0].mxu0
        %v1684 = vadd.f32 0.0, %v1683
        %1685 = vmatprep.mubr.f32.mxu0 %v1452
        %1686 = vmatmul.mubr.f32.gmra.mrb[0].mxu0 %v1450
        %v1687 = vpop.f32.mrb[0].mxu0
        %v1688 = vadd.f32 0.0, %v1687
        %v1689 = vpop.f32.mrb[0].mxu0
        %v1690 = vadd.f32 0.0, %v1689
        %1691 = vmatprep.mubr.f32.mxu0 %v1460
        %1692 = vmatmul.mubr.f32.gmra.mrb[0].mxu0 %v1458
        %v1693 = vpop.f32.mrb[0].mxu0
        %v1694 = vadd.f32 0.0, %v1693
        %v1695 = vpop.f32.mrb[0].mxu0
        %v1696 = vadd.f32 0.0, %v1695
        %1697 = vmatprep.mubr.f32.mxu0 %v1468
        %1698 = vmatmul.mubr.f32.gmra.mrb[0].mxu0 %v1466
        %v1699 = vpop.f32.mrb[0].mxu0
        %v1700 = vadd.f32 0.0, %v1699
        %v1701 = vpop.f32.mrb[0].mxu0
        %v1702 = vadd.f32 0.0, %v1701
        %1703 = vmatprep.mubr.f32.mxu0 %v1476
        %1704 = vmatmul.mubr.f32.gmra.mrb[0].mxu0 %v1474
        %v1705 = vpop.f32.mrb[0].mxu0
        %v1706 = vadd.f32 0.0, %v1705
        %v1707 = vpop.f32.mrb[0].mxu0
        %v1708 = vadd.f32 0.0, %v1707
        %1709 = vmatprep.mubr.f32.mxu0 %v1484
        %1710 = vmatmul.mubr.f32.gmra.mrb[0].mxu0 %v1482
        %v1711 = vpop.f32.mrb[0].mxu0
        %v1712 = vadd.f32 0.0, %v1711
        %v1713 = vpop.f32.mrb[0].mxu0
        %v1714 = vadd.f32 0.0, %v1713
        %1715 = vmatprep.mubr.f32.mxu0 %v1492
        %1716 = vmatmul.mubr.f32.gmra.mrb[0].mxu0 %v1490
        %v1717 = vpop.f32.mrb[0].mxu0
        %v1718 = vadd.f32 0.0, %v1717
        %v1719 = vpop.f32.mrb[0].mxu0
        %v1720 = vadd.f32 0.0, %v1719
        %1721 = vdwg.mxu0
        %1722 = vmatprep.subr.mxu0 %v1041
        %1723 = vmatpush1.msra.mxu0 %v1040
        %1724 = vmatprep.subr.mxu0 %v1049
        %1725 = vmatpush1.msra.mxu0 %v1048
        %1726 = vmatprep.subr.mxu0 %v1057
        %1727 = vmatpush1.msra.mxu0 %v1056
        %1728 = vmatprep.subr.mxu0 %v1065
        %1729 = vmatpush1.msra.mxu0 %v1064
        %1730 = vmatprep.subr.mxu0 %v1073
        %1731 = vmatpush1.msra.mxu0 %v1072
        %1732 = vmatprep.subr.mxu0 %v1081
        %1733 = vmatpush1.msra.mxu0 %v1080
        %1734 = vmatprep.subr.mxu0 %v1089
        %1735 = vmatpush1.msra.mxu0 %v1088
        %1736 = vmatprep.subr.mxu0 %v1097
        %1737 = vmatpush1.msra.mxu0 %v1096
        %1738 = vmatprep.subr.mxu0 %v1105
        %1739 = vmatpush1.msra.mxu0 %v1104
        %1740 = vmatprep.subr.mxu0 %v1113
        %1741 = vmatpush1.msra.mxu0 %v1112
        %1742 = vmatprep.subr.mxu0 %v1121
        %1743 = vmatpush1.msra.mxu0 %v1120
        %1744 = vmatprep.subr.mxu0 %v1129
        %1745 = vmatpush1.msra.mxu0 %v1128
        %1746 = vmatprep.subr.mxu0 %v1137
        %1747 = vmatpush1.msra.mxu0 %v1136
        %1748 = vmatprep.subr.mxu0 %v1145
        %1749 = vmatpush1.msra.mxu0 %v1144
        %1750 = vmatprep.subr.mxu0 %v1153
        %1751 = vmatpush1.msra.mxu0 %v1152
        %1752 = vmatprep.subr.mxu0 %v1161
        %1753 = vmatpush1.msra.mxu0 %v1160
        %1754 = vmatprep.subr.mxu0 %v1169
        %1755 = vmatpush1.msra.mxu0 %v1168
        %1756 = vmatprep.subr.mxu0 %v1177
        %1757 = vmatpush1.msra.mxu0 %v1176
        %1758 = vmatprep.subr.mxu0 %v1185
        %1759 = vmatpush1.msra.mxu0 %v1184
        %1760 = vmatprep.subr.mxu0 %v1193
        %1761 = vmatpush1.msra.mxu0 %v1192
        %1762 = vmatprep.subr.mxu0 %v1201
        %1763 = vmatpush1.msra.mxu0 %v1200
        %1764 = vmatprep.subr.mxu0 %v1209
        %1765 = vmatpush1.msra.mxu0 %v1208
        %1766 = vmatprep.subr.mxu0 %v1217
        %1767 = vmatpush1.msra.mxu0 %v1216
        %1768 = vmatprep.subr.mxu0 %v1225
        %1769 = vmatpush1.msra.mxu0 %v1224
        %1770 = vmatprep.subr.mxu0 %v1233
        %1771 = vmatpush1.msra.mxu0 %v1232
        %1772 = vmatprep.subr.mxu0 %v1241
        %1773 = vmatpush1.msra.mxu0 %v1240
        %1774 = vmatprep.subr.mxu0 %v1249
        %1775 = vmatpush1.msra.mxu0 %v1248
        %1776 = vmatprep.subr.mxu0 %v1257
        %1777 = vmatpush1.msra.mxu0 %v1256
        %1778 = vmatprep.subr.mxu0 %v1265
        %1779 = vmatpush1.msra.mxu0 %v1264
        %1780 = vmatprep.subr.mxu0 %v1273
        %1781 = vmatpush1.msra.mxu0 %v1272
        %1782 = vmatprep.subr.mxu0 %v1281
        %1783 = vmatpush1.msra.mxu0 %v1280
        %1784 = vmatprep.subr.mxu0 %v1289
        %1785 = vmatpush1.msra.mxu0 %v1288
        %1786 = vmatprep.mubr.f32.mxu0 %v1376
        %1787 = vmatmul.mubr.f32.gmra.mrb[0].mxu0 %v1373
        %v1788 = vpop.f32.mrb[0].mxu0
        %v1789 = vadd.f32 %v1628, %v1788
        %v1790 = vpop.f32.mrb[0].mxu0
        %v1791 = vadd.f32 %v1630, %v1790
        %1792 = vmatprep.mubr.f32.mxu0 %v1384
        %1793 = vmatmul.mubr.f32.gmra.mrb[0].mxu0 %v1382
        %v1794 = vpop.f32.mrb[0].mxu0
        %v1795 = vadd.f32 %v1634, %v1794
        %v1796 = vpop.f32.mrb[0].mxu0
        %v1797 = vadd.f32 %v1636, %v1796
        %1798 = vmatprep.mubr.f32.mxu0 %v1392
        %1799 = vmatmul.mubr.f32.gmra.mrb[0].mxu0 %v1390
        %v1800 = vpop.f32.mrb[0].mxu0
        %v1801 = vadd.f32 %v1640, %v1800
        %v1802 = vpop.f32.mrb[0].mxu0
        %v1803 = vadd.f32 %v1642, %v1802
        %1804 = vmatprep.mubr.f32.mxu0 %v1400
        %1805 = vmatmul.mubr.f32.gmra.mrb[0].mxu0 %v1398
        %v1806 = vpop.f32.mrb[0].mxu0
        %v1807 = vadd.f32 %v1646, %v1806
        %v1808 = vpop.f32.mrb[0].mxu0
        %v1809 = vadd.f32 %v1648, %v1808
        %1810 = vmatprep.mubr.f32.mxu0 %v1408
        %1811 = vmatmul.mubr.f32.gmra.mrb[0].mxu0 %v1406
        %v1812 = vpop.f32.mrb[0].mxu0
        %v1813 = vadd.f32 %v1652, %v1812
        %v1814 = vpop.f32.mrb[0].mxu0
        %v1815 = vadd.f32 %v1654, %v1814
        %1816 = vmatprep.mubr.f32.mxu0 %v1416
        %1817 = vmatmul.mubr.f32.gmra.mrb[0].mxu0 %v1414
        %v1818 = vpop.f32.mrb[0].mxu0
        %v1819 = vadd.f32 %v1658, %v1818
        %v1820 = vpop.f32.mrb[0].mxu0
        %v1821 = vadd.f32 %v1660, %v1820
        %1822 = vmatprep.mubr.f32.mxu0 %v1424
        %1823 = vmatmul.mubr.f32.gmra.mrb[0].mxu0 %v1422
        %v1824 = vpop.f32.mrb[0].mxu0
        %v1825 = vadd.f32 %v1664, %v1824
        %v1826 = vpop.f32.mrb[0].mxu0
        %v1827 = vadd.f32 %v1666, %v1826
        %1828 = vmatprep.mubr.f32.mxu0 %v1432
        %1829 = vmatmul.mubr.f32.gmra.mrb[0].mxu0 %v1430
        %v1830 = vpop.f32.mrb[0].mxu0
        %v1831 = vadd.f32 %v1670, %v1830
        %v1832 = vpop.f32.mrb[0].mxu0
        %v1833 = vadd.f32 %v1672, %v1832
        %1834 = vmatprep.mubr.f32.mxu0 %v1440
        %1835 = vmatmul.mubr.f32.gmra.mrb[0].mxu0 %v1438
        %v1836 = vpop.f32.mrb[0].mxu0
        %v1837 = vadd.f32 %v1676, %v1836
        %v1838 = vpop.f32.mrb[0].mxu0
        %v1839 = vadd.f32 %v1678, %v1838
        %1840 = vmatprep.mubr.f32.mxu0 %v1448
        %1841 = vmatmul.mubr.f32.gmra.mrb[0].mxu0 %v1446
        %v1842 = vpop.f32.mrb[0].mxu0
        %v1843 = vadd.f32 %v1682, %v1842
        %v1844 = vpop.f32.mrb[0].mxu0
        %v1845 = vadd.f32 %v1684, %v1844
        %1846 = vmatprep.mubr.f32.mxu0 %v1456
        %1847 = vmatmul.mubr.f32.gmra.mrb[0].mxu0 %v1454
        %v1848 = vpop.f32.mrb[0].mxu0
        %v1849 = vadd.f32 %v1688, %v1848
        %v1850 = vpop.f32.mrb[0].mxu0
        %v1851 = vadd.f32 %v1690, %v1850
        %1852 = vmatprep.mubr.f32.mxu0 %v1464
        %1853 = vmatmul.mubr.f32.gmra.mrb[0].mxu0 %v1462
        %v1854 = vpop.f32.mrb[0].mxu0
        %v1855 = vadd.f32 %v1694, %v1854
        %v1856 = vpop.f32.mrb[0].mxu0
        %v1857 = vadd.f32 %v1696, %v1856
        %1858 = vmatprep.mubr.f32.mxu0 %v1472
        %1859 = vmatmul.mubr.f32.gmra.mrb[0].mxu0 %v1470
        %v1860 = vpop.f32.mrb[0].mxu0
        %v1861 = vadd.f32 %v1700, %v1860
        %v1862 = vpop.f32.mrb[0].mxu0
        %v1863 = vadd.f32 %v1702, %v1862
        %1864 = vmatprep.mubr.f32.mxu0 %v1480
        %1865 = vmatmul.mubr.f32.gmra.mrb[0].mxu0 %v1478
        %v1866 = vpop.f32.mrb[0].mxu0
        %v1867 = vadd.f32 %v1706, %v1866
        %v1868 = vpop.f32.mrb[0].mxu0
        %v1869 = vadd.f32 %v1708, %v1868
        %1870 = vmatprep.mubr.f32.mxu0 %v1488
        %1871 = vmatmul.mubr.f32.gmra.mrb[0].mxu0 %v1486
        %v1872 = vpop.f32.mrb[0].mxu0
        %v1873 = vadd.f32 %v1712, %v1872
        %v1874 = vpop.f32.mrb[0].mxu0
        %v1875 = vadd.f32 %v1714, %v1874
        %1876 = vmatprep.mubr.f32.mxu0 %v1496
        %1877 = vmatmul.mubr.f32.gmra.mrb[0].mxu0 %v1494
        %v1878 = vpop.f32.mrb[0].mxu0
        %v1879 = vadd.f32 %v1718, %v1878
        %v1880 = vpop.f32.mrb[0].mxu0
        %v1881 = vadd.f32 %v1720, %v1880
        %1882 = vdwg.mxu0
        %1883 = vmatprep.subr.mxu0 %v787
        %1884 = vmatpush1.msra.mxu0 %v786
        %1885 = vmatprep.subr.mxu0 %v795
        %1886 = vmatpush1.msra.mxu0 %v794
        %1887 = vmatprep.subr.mxu0 %v803
        %1888 = vmatpush1.msra.mxu0 %v802
        %1889 = vmatprep.subr.mxu0 %v811
        %1890 = vmatpush1.msra.mxu0 %v810
        %1891 = vmatprep.subr.mxu0 %v819
        %1892 = vmatpush1.msra.mxu0 %v818
        %1893 = vmatprep.subr.mxu0 %v827
        %1894 = vmatpush1.msra.mxu0 %v826
        %1895 = vmatprep.subr.mxu0 %v835
        %1896 = vmatpush1.msra.mxu0 %v834
        %1897 = vmatprep.subr.mxu0 %v843
        %1898 = vmatpush1.msra.mxu0 %v842
        %1899 = vmatprep.subr.mxu0 %v851
        %1900 = vmatpush1.msra.mxu0 %v850
        %1901 = vmatprep.subr.mxu0 %v859
        %1902 = vmatpush1.msra.mxu0 %v858
        %1903 = vmatprep.subr.mxu0 %v867
        %1904 = vmatpush1.msra.mxu0 %v866
        %1905 = vmatprep.subr.mxu0 %v875
        %1906 = vmatpush1.msra.mxu0 %v874
        %1907 = vmatprep.subr.mxu0 %v883
        %1908 = vmatpush1.msra.mxu0 %v882
        %1909 = vmatprep.subr.mxu0 %v891
        %1910 = vmatpush1.msra.mxu0 %v890
        %1911 = vmatprep.subr.mxu0 %v899
        %1912 = vmatpush1.msra.mxu0 %v898
        %1913 = vmatprep.subr.mxu0 %v907
        %1914 = vmatpush1.msra.mxu0 %v906
        %1915 = vmatprep.subr.mxu0 %v915
        %1916 = vmatpush1.msra.mxu0 %v914
        %1917 = vmatprep.subr.mxu0 %v923
        %1918 = vmatpush1.msra.mxu0 %v922
        %1919 = vmatprep.subr.mxu0 %v931
        %1920 = vmatpush1.msra.mxu0 %v930
        %1921 = vmatprep.subr.mxu0 %v939
        %1922 = vmatpush1.msra.mxu0 %v938
        %1923 = vmatprep.subr.mxu0 %v947
        %1924 = vmatpush1.msra.mxu0 %v946
        %1925 = vmatprep.subr.mxu0 %v955
        %1926 = vmatpush1.msra.mxu0 %v954
        %1927 = vmatprep.subr.mxu0 %v963
        %1928 = vmatpush1.msra.mxu0 %v962
        %1929 = vmatprep.subr.mxu0 %v971
        %1930 = vmatpush1.msra.mxu0 %v970
        %1931 = vmatprep.subr.mxu0 %v979
        %1932 = vmatpush1.msra.mxu0 %v978
        %1933 = vmatprep.subr.mxu0 %v987
        %1934 = vmatpush1.msra.mxu0 %v986
        %1935 = vmatprep.subr.mxu0 %v995
        %1936 = vmatpush1.msra.mxu0 %v994
        %1937 = vmatprep.subr.mxu0 %v1003
        %1938 = vmatpush1.msra.mxu0 %v1002
        %1939 = vmatprep.subr.mxu0 %v1011
        %1940 = vmatpush1.msra.mxu0 %v1010
        %1941 = vmatprep.subr.mxu0 %v1019
        %1942 = vmatpush1.msra.mxu0 %v1018
        %1943 = vmatprep.subr.mxu0 %v1027
        %1944 = vmatpush1.msra.mxu0 %v1026
        %1945 = vmatprep.subr.mxu0 %v1035
        %1946 = vmatpush1.msra.mxu0 %v1034
        %1947 = vmatprep.mubr.f32.mxu0 %v1370
        %1948 = vmatmul.mubr.f32.gmra.mrb[0].mxu0 %v1367
        %v1949 = vpop.f32.mrb[0].mxu0
        %v1950 = vadd.f32 0.0, %v1949
        %v1951 = vpop.f32.mrb[0].mxu0
        %v1952 = vadd.f32 0.0, %v1951
        %1953 = vmatprep.mubr.f32.mxu0 %v1380
        %1954 = vmatmul.mubr.f32.gmra.mrb[0].mxu0 %v1378
        %v1955 = vpop.f32.mrb[0].mxu0
        %v1956 = vadd.f32 0.0, %v1955
        %v1957 = vpop.f32.mrb[0].mxu0
        %v1958 = vadd.f32 0.0, %v1957
        %1959 = vmatprep.mubr.f32.mxu0 %v1388
        %1960 = vmatmul.mubr.f32.gmra.mrb[0].mxu0 %v1386
        %v1961 = vpop.f32.mrb[0].mxu0
        %v1962 = vadd.f32 0.0, %v1961
        %v1963 = vpop.f32.mrb[0].mxu0
        %v1964 = vadd.f32 0.0, %v1963
        %1965 = vmatprep.mubr.f32.mxu0 %v1396
        %1966 = vmatmul.mubr.f32.gmra.mrb[0].mxu0 %v1394
        %v1967 = vpop.f32.mrb[0].mxu0
        %v1968 = vadd.f32 0.0, %v1967
        %v1969 = vpop.f32.mrb[0].mxu0
        %v1970 = vadd.f32 0.0, %v1969
        %1971 = vmatprep.mubr.f32.mxu0 %v1404
        %1972 = vmatmul.mubr.f32.gmra.mrb[0].mxu0 %v1402
        %v1973 = vpop.f32.mrb[0].mxu0
        %v1974 = vadd.f32 0.0, %v1973
        %v1975 = vpop.f32.mrb[0].mxu0
        %v1976 = vadd.f32 0.0, %v1975
        %1977 = vmatprep.mubr.f32.mxu0 %v1412
        %1978 = vmatmul.mubr.f32.gmra.mrb[0].mxu0 %v1410
        %v1979 = vpop.f32.mrb[0].mxu0
        %v1980 = vadd.f32 0.0, %v1979
        %v1981 = vpop.f32.mrb[0].mxu0
        %v1982 = vadd.f32 0.0, %v1981
        %1983 = vmatprep.mubr.f32.mxu0 %v1420
        %1984 = vmatmul.mubr.f32.gmra.mrb[0].mxu0 %v1418
        %v1985 = vpop.f32.mrb[0].mxu0
        %v1986 = vadd.f32 0.0, %v1985
        %v1987 = vpop.f32.mrb[0].mxu0
        %v1988 = vadd.f32 0.0, %v1987
        %1989 = vmatprep.mubr.f32.mxu0 %v1428
        %1990 = vmatmul.mubr.f32.gmra.mrb[0].mxu0 %v1426
        %v1991 = vpop.f32.mrb[0].mxu0
        %v1992 = vadd.f32 0.0, %v1991
        %v1993 = vpop.f32.mrb[0].mxu0
        %v1994 = vadd.f32 0.0, %v1993
        %1995 = vmatprep.mubr.f32.mxu0 %v1436
        %1996 = vmatmul.mubr.f32.gmra.mrb[0].mxu0 %v1434
        %v1997 = vpop.f32.mrb[0].mxu0
        %v1998 = vadd.f32 0.0, %v1997
        %v1999 = vpop.f32.mrb[0].mxu0
        %v2000 = vadd.f32 0.0, %v1999
        %2001 = vmatprep.mubr.f32.mxu0 %v1444
        %2002 = vmatmul.mubr.f32.gmra.mrb[0].mxu0 %v1442
        %v2003 = vpop.f32.mrb[0].mxu0
        %v2004 = vadd.f32 0.0, %v2003
        %v2005 = vpop.f32.mrb[0].mxu0
        %v2006 = vadd.f32 0.0, %v2005
        %2007 = vmatprep.mubr.f32.mxu0 %v1452
        %2008 = vmatmul.mubr.f32.gmra.mrb[0].mxu0 %v1450
        %v2009 = vpop.f32.mrb[0].mxu0
        %v2010 = vadd.f32 0.0, %v2009
        %v2011 = vpop.f32.mrb[0].mxu0
        %v2012 = vadd.f32 0.0, %v2011
        %2013 = vmatprep.mubr.f32.mxu0 %v1460
        %2014 = vmatmul.mubr.f32.gmra.mrb[0].mxu0 %v1458
        %v2015 = vpop.f32.mrb[0].mxu0
        %v2016 = vadd.f32 0.0, %v2015
        %v2017 = vpop.f32.mrb[0].mxu0
        %v2018 = vadd.f32 0.0, %v2017
        %2019 = vmatprep.mubr.f32.mxu0 %v1468
        %2020 = vmatmul.mubr.f32.gmra.mrb[0].mxu0 %v1466
        %v2021 = vpop.f32.mrb[0].mxu0
        %v2022 = vadd.f32 0.0, %v2021
        %v2023 = vpop.f32.mrb[0].mxu0
        %v2024 = vadd.f32 0.0, %v2023
        %2025 = vmatprep.mubr.f32.mxu0 %v1476
        %2026 = vmatmul.mubr.f32.gmra.mrb[0].mxu0 %v1474
        %v2027 = vpop.f32.mrb[0].mxu0
        %v2028 = vadd.f32 0.0, %v2027
        %v2029 = vpop.f32.mrb[0].mxu0
        %v2030 = vadd.f32 0.0, %v2029
        %2031 = vmatprep.mubr.f32.mxu0 %v1484
        %2032 = vmatmul.mubr.f32.gmra.mrb[0].mxu0 %v1482
        %v2033 = vpop.f32.mrb[0].mxu0
        %v2034 = vadd.f32 0.0, %v2033
        %v2035 = vpop.f32.mrb[0].mxu0
        %v2036 = vadd.f32 0.0, %v2035
        %2037 = vmatprep.mubr.f32.mxu0 %v1492
        %2038 = vmatmul.mubr.f32.gmra.mrb[0].mxu0 %v1490
        %v2039 = vpop.f32.mrb[0].mxu0
        %v2040 = vadd.f32 0.0, %v2039
        %v2041 = vpop.f32.mrb[0].mxu0
        %v2042 = vadd.f32 0.0, %v2041
        %2043 = vdwg.mxu0
        %2044 = vmatprep.subr.mxu0 %v1043
        %2045 = vmatpush1.msra.mxu0 %v1042
        %2046 = vmatprep.subr.mxu0 %v1051
        %2047 = vmatpush1.msra.mxu0 %v1050
        %2048 = vmatprep.subr.mxu0 %v1059
        %2049 = vmatpush1.msra.mxu0 %v1058
        %2050 = vmatprep.subr.mxu0 %v1067
        %2051 = vmatpush1.msra.mxu0 %v1066
        %2052 = vmatprep.subr.mxu0 %v1075
        %2053 = vmatpush1.msra.mxu0 %v1074
        %2054 = vmatprep.subr.mxu0 %v1083
        %2055 = vmatpush1.msra.mxu0 %v1082
        %2056 = vmatprep.subr.mxu0 %v1091
        %2057 = vmatpush1.msra.mxu0 %v1090
        %2058 = vmatprep.subr.mxu0 %v1099
        %2059 = vmatpush1.msra.mxu0 %v1098
        %2060 = vmatprep.subr.mxu0 %v1107
        %2061 = vmatpush1.msra.mxu0 %v1106
        %2062 = vmatprep.subr.mxu0 %v1115
        %2063 = vmatpush1.msra.mxu0 %v1114
        %2064 = vmatprep.subr.mxu0 %v1123
        %2065 = vmatpush1.msra.mxu0 %v1122
        %2066 = vmatprep.subr.mxu0 %v1131
        %2067 = vmatpush1.msra.mxu0 %v1130
        %2068 = vmatprep.subr.mxu0 %v1139
        %2069 = vmatpush1.msra.mxu0 %v1138
        %2070 = vmatprep.subr.mxu0 %v1147
        %2071 = vmatpush1.msra.mxu0 %v1146
        %2072 = vmatprep.subr.mxu0 %v1155
        %2073 = vmatpush1.msra.mxu0 %v1154
        %2074 = vmatprep.subr.mxu0 %v1163
        %2075 = vmatpush1.msra.mxu0 %v1162
        %2076 = vmatprep.subr.mxu0 %v1171
        %2077 = vmatpush1.msra.mxu0 %v1170
        %2078 = vmatprep.subr.mxu0 %v1179
        %2079 = vmatpush1.msra.mxu0 %v1178
        %2080 = vmatprep.subr.mxu0 %v1187
        %2081 = vmatpush1.msra.mxu0 %v1186
        %2082 = vmatprep.subr.mxu0 %v1195
        %2083 = vmatpush1.msra.mxu0 %v1194
        %2084 = vmatprep.subr.mxu0 %v1203
        %2085 = vmatpush1.msra.mxu0 %v1202
        %2086 = vmatprep.subr.mxu0 %v1211
        %2087 = vmatpush1.msra.mxu0 %v1210
        %2088 = vmatprep.subr.mxu0 %v1219
        %2089 = vmatpush1.msra.mxu0 %v1218
        %2090 = vmatprep.subr.mxu0 %v1227
        %2091 = vmatpush1.msra.mxu0 %v1226
        %2092 = vmatprep.subr.mxu0 %v1235
        %2093 = vmatpush1.msra.mxu0 %v1234
        %2094 = vmatprep.subr.mxu0 %v1243
        %2095 = vmatpush1.msra.mxu0 %v1242
        %2096 = vmatprep.subr.mxu0 %v1251
        %2097 = vmatpush1.msra.mxu0 %v1250
        %2098 = vmatprep.subr.mxu0 %v1259
        %2099 = vmatpush1.msra.mxu0 %v1258
        %2100 = vmatprep.subr.mxu0 %v1267
        %2101 = vmatpush1.msra.mxu0 %v1266
        %2102 = vmatprep.subr.mxu0 %v1275
        %2103 = vmatpush1.msra.mxu0 %v1274
        %2104 = vmatprep.subr.mxu0 %v1283
        %2105 = vmatpush1.msra.mxu0 %v1282
        %2106 = vmatprep.subr.mxu0 %v1291
        %2107 = vmatpush1.msra.mxu0 %v1290
        %2108 = vmatprep.mubr.f32.mxu0 %v1376
        %2109 = vmatmul.mubr.f32.gmra.mrb[0].mxu0 %v1373
        %v2110 = vpop.f32.mrb[0].mxu0
        %v2111 = vadd.f32 %v1950, %v2110
        %v2112 = vpop.f32.mrb[0].mxu0
        %v2113 = vadd.f32 %v1952, %v2112
        %2114 = vmatprep.mubr.f32.mxu0 %v1384
        %2115 = vmatmul.mubr.f32.gmra.mrb[0].mxu0 %v1382
        %v2116 = vpop.f32.mrb[0].mxu0
        %v2117 = vadd.f32 %v1956, %v2116
        %v2118 = vpop.f32.mrb[0].mxu0
        %v2119 = vadd.f32 %v1958, %v2118
        %2120 = vmatprep.mubr.f32.mxu0 %v1392
        %2121 = vmatmul.mubr.f32.gmra.mrb[0].mxu0 %v1390
        %v2122 = vpop.f32.mrb[0].mxu0
        %v2123 = vadd.f32 %v1962, %v2122
        %v2124 = vpop.f32.mrb[0].mxu0
        %v2125 = vadd.f32 %v1964, %v2124
        %2126 = vmatprep.mubr.f32.mxu0 %v1400
        %2127 = vmatmul.mubr.f32.gmra.mrb[0].mxu0 %v1398
        %v2128 = vpop.f32.mrb[0].mxu0
        %v2129 = vadd.f32 %v1968, %v2128
        %v2130 = vpop.f32.mrb[0].mxu0
        %v2131 = vadd.f32 %v1970, %v2130
        %2132 = vmatprep.mubr.f32.mxu0 %v1408
        %2133 = vmatmul.mubr.f32.gmra.mrb[0].mxu0 %v1406
        %v2134 = vpop.f32.mrb[0].mxu0
        %v2135 = vadd.f32 %v1974, %v2134
        %v2136 = vpop.f32.mrb[0].mxu0
        %v2137 = vadd.f32 %v1976, %v2136
        %2138 = vmatprep.mubr.f32.mxu0 %v1416
        %2139 = vmatmul.mubr.f32.gmra.mrb[0].mxu0 %v1414
        %v2140 = vpop.f32.mrb[0].mxu0
        %v2141 = vadd.f32 %v1980, %v2140
        %v2142 = vpop.f32.mrb[0].mxu0
        %v2143 = vadd.f32 %v1982, %v2142
        %2144 = vmatprep.mubr.f32.mxu0 %v1424
        %2145 = vmatmul.mubr.f32.gmra.mrb[0].mxu0 %v1422
        %v2146 = vpop.f32.mrb[0].mxu0
        %v2147 = vadd.f32 %v1986, %v2146
        %v2148 = vpop.f32.mrb[0].mxu0
        %v2149 = vadd.f32 %v1988, %v2148
        %2150 = vmatprep.mubr.f32.mxu0 %v1432
        %2151 = vmatmul.mubr.f32.gmra.mrb[0].mxu0 %v1430
        %v2152 = vpop.f32.mrb[0].mxu0
        %v2153 = vadd.f32 %v1992, %v2152
        %v2154 = vpop.f32.mrb[0].mxu0
        %v2155 = vadd.f32 %v1994, %v2154
        %2156 = vmatprep.mubr.f32.mxu0 %v1440
        %2157 = vmatmul.mubr.f32.gmra.mrb[0].mxu0 %v1438
        %v2158 = vpop.f32.mrb[0].mxu0
        %v2159 = vadd.f32 %v1998, %v2158
        %v2160 = vpop.f32.mrb[0].mxu0
        %v2161 = vadd.f32 %v2000, %v2160
        %2162 = vmatprep.mubr.f32.mxu0 %v1448
        %2163 = vmatmul.mubr.f32.gmra.mrb[0].mxu0 %v1446
        %v2164 = vpop.f32.mrb[0].mxu0
        %v2165 = vadd.f32 %v2004, %v2164
        %v2166 = vpop.f32.mrb[0].mxu0
        %v2167 = vadd.f32 %v2006, %v2166
        %2168 = vmatprep.mubr.f32.mxu0 %v1456
        %2169 = vmatmul.mubr.f32.gmra.mrb[0].mxu0 %v1454
        %v2170 = vpop.f32.mrb[0].mxu0
        %v2171 = vadd.f32 %v2010, %v2170
        %v2172 = vpop.f32.mrb[0].mxu0
        %v2173 = vadd.f32 %v2012, %v2172
        %2174 = vmatprep.mubr.f32.mxu0 %v1464
        %2175 = vmatmul.mubr.f32.gmra.mrb[0].mxu0 %v1462
        %v2176 = vpop.f32.mrb[0].mxu0
        %v2177 = vadd.f32 %v2016, %v2176
        %v2178 = vpop.f32.mrb[0].mxu0
        %v2179 = vadd.f32 %v2018, %v2178
        %2180 = vmatprep.mubr.f32.mxu0 %v1472
        %2181 = vmatmul.mubr.f32.gmra.mrb[0].mxu0 %v1470
        %v2182 = vpop.f32.mrb[0].mxu0
        %v2183 = vadd.f32 %v2022, %v2182
        %v2184 = vpop.f32.mrb[0].mxu0
        %v2185 = vadd.f32 %v2024, %v2184
        %2186 = vmatprep.mubr.f32.mxu0 %v1480
        %2187 = vmatmul.mubr.f32.gmra.mrb[0].mxu0 %v1478
        %v2188 = vpop.f32.mrb[0].mxu0
        %v2189 = vadd.f32 %v2028, %v2188
        %v2190 = vpop.f32.mrb[0].mxu0
        %v2191 = vadd.f32 %v2030, %v2190
        %2192 = vmatprep.mubr.f32.mxu0 %v1488
        %2193 = vmatmul.mubr.f32.gmra.mrb[0].mxu0 %v1486
        %v2194 = vpop.f32.mrb[0].mxu0
        %v2195 = vadd.f32 %v2034, %v2194
        %v2196 = vpop.f32.mrb[0].mxu0
        %v2197 = vadd.f32 %v2036, %v2196
        %2198 = vmatprep.mubr.f32.mxu0 %v1496
        %2199 = vmatmul.mubr.f32.gmra.mrb[0].mxu0 %v1494
        %v2200 = vpop.f32.mrb[0].mxu0
        %v2201 = vadd.f32 %v2040, %v2200
        %v2202 = vpop.f32.mrb[0].mxu0
        %v2203 = vadd.f32 %v2042, %v2202
        %2204 = vdwg.mxu0
        %2205 = vmatprep.subr.mxu0 %v789
        %2206 = vmatpush1.msra.mxu0 %v788
        %2207 = vmatprep.subr.mxu0 %v797
        %2208 = vmatpush1.msra.mxu0 %v796
        %2209 = vmatprep.subr.mxu0 %v805
        %2210 = vmatpush1.msra.mxu0 %v804
        %2211 = vmatprep.subr.mxu0 %v813
        %2212 = vmatpush1.msra.mxu0 %v812
        %2213 = vmatprep.subr.mxu0 %v821
        %2214 = vmatpush1.msra.mxu0 %v820
        %2215 = vmatprep.subr.mxu0 %v829
        %2216 = vmatpush1.msra.mxu0 %v828
        %2217 = vmatprep.subr.mxu0 %v837
        %2218 = vmatpush1.msra.mxu0 %v836
        %2219 = vmatprep.subr.mxu0 %v845
        %2220 = vmatpush1.msra.mxu0 %v844
        %2221 = vmatprep.subr.mxu0 %v853
        %2222 = vmatpush1.msra.mxu0 %v852
        %2223 = vmatprep.subr.mxu0 %v861
        %2224 = vmatpush1.msra.mxu0 %v860
        %2225 = vmatprep.subr.mxu0 %v869
        %2226 = vmatpush1.msra.mxu0 %v868
        %2227 = vmatprep.subr.mxu0 %v877
        %2228 = vmatpush1.msra.mxu0 %v876
        %2229 = vmatprep.subr.mxu0 %v885
        %2230 = vmatpush1.msra.mxu0 %v884
        %2231 = vmatprep.subr.mxu0 %v893
        %2232 = vmatpush1.msra.mxu0 %v892
        %2233 = vmatprep.subr.mxu0 %v901
        %2234 = vmatpush1.msra.mxu0 %v900
        %2235 = vmatprep.subr.mxu0 %v909
        %2236 = vmatpush1.msra.mxu0 %v908
        %2237 = vmatprep.subr.mxu0 %v917
        %2238 = vmatpush1.msra.mxu0 %v916
        %2239 = vmatprep.subr.mxu0 %v925
        %2240 = vmatpush1.msra.mxu0 %v924
        %2241 = vmatprep.subr.mxu0 %v933
        %2242 = vmatpush1.msra.mxu0 %v932
        %2243 = vmatprep.subr.mxu0 %v941
        %2244 = vmatpush1.msra.mxu0 %v940
        %2245 = vmatprep.subr.mxu0 %v949
        %2246 = vmatpush1.msra.mxu0 %v948
        %2247 = vmatprep.subr.mxu0 %v957
        %2248 = vmatpush1.msra.mxu0 %v956
        %2249 = vmatprep.subr.mxu0 %v965
        %2250 = vmatpush1.msra.mxu0 %v964
        %2251 = vmatprep.subr.mxu0 %v973
        %2252 = vmatpush1.msra.mxu0 %v972
        %2253 = vmatprep.subr.mxu0 %v981
        %2254 = vmatpush1.msra.mxu0 %v980
        %2255 = vmatprep.subr.mxu0 %v989
        %2256 = vmatpush1.msra.mxu0 %v988
        %2257 = vmatprep.subr.mxu0 %v997
        %2258 = vmatpush1.msra.mxu0 %v996
        %2259 = vmatprep.subr.mxu0 %v1005
        %2260 = vmatpush1.msra.mxu0 %v1004
        %2261 = vmatprep.subr.mxu0 %v1013
        %2262 = vmatpush1.msra.mxu0 %v1012
        %2263 = vmatprep.subr.mxu0 %v1021
        %2264 = vmatpush1.msra.mxu0 %v1020
        %2265 = vmatprep.subr.mxu0 %v1029
        %2266 = vmatpush1.msra.mxu0 %v1028
        %2267 = vmatprep.subr.mxu0 %v1037
        %2268 = vmatpush1.msra.mxu0 %v1036
        %2269 = vmatprep.mubr.f32.mxu0 %v1370
        %2270 = vmatmul.mubr.f32.gmra.mrb[0].mxu0 %v1367
        %v2271 = vpop.f32.mrb[0].mxu0
        %v2272 = vadd.f32 0.0, %v2271
        %v2273 = vpop.f32.mrb[0].mxu0
        %v2274 = vadd.f32 0.0, %v2273
        %2275 = vmatprep.mubr.f32.mxu0 %v1380
        %2276 = vmatmul.mubr.f32.gmra.mrb[0].mxu0 %v1378
        %v2277 = vpop.f32.mrb[0].mxu0
        %v2278 = vadd.f32 0.0, %v2277
        %v2279 = vpop.f32.mrb[0].mxu0
        %v2280 = vadd.f32 0.0, %v2279
        %2281 = vmatprep.mubr.f32.mxu0 %v1388
        %2282 = vmatmul.mubr.f32.gmra.mrb[0].mxu0 %v1386
        %v2283 = vpop.f32.mrb[0].mxu0
        %v2284 = vadd.f32 0.0, %v2283
        %v2285 = vpop.f32.mrb[0].mxu0
        %v2286 = vadd.f32 0.0, %v2285
        %2287 = vmatprep.mubr.f32.mxu0 %v1396
        %2288 = vmatmul.mubr.f32.gmra.mrb[0].mxu0 %v1394
        %v2289 = vpop.f32.mrb[0].mxu0
        %v2290 = vadd.f32 0.0, %v2289
        %v2291 = vpop.f32.mrb[0].mxu0
        %v2292 = vadd.f32 0.0, %v2291
        %2293 = vmatprep.mubr.f32.mxu0 %v1404
        %2294 = vmatmul.mubr.f32.gmra.mrb[0].mxu0 %v1402
        %v2295 = vpop.f32.mrb[0].mxu0
        %v2296 = vadd.f32 0.0, %v2295
        %v2297 = vpop.f32.mrb[0].mxu0
        %v2298 = vadd.f32 0.0, %v2297
        %2299 = vmatprep.mubr.f32.mxu0 %v1412
        %2300 = vmatmul.mubr.f32.gmra.mrb[0].mxu0 %v1410
        %v2301 = vpop.f32.mrb[0].mxu0
        %v2302 = vadd.f32 0.0, %v2301
        %v2303 = vpop.f32.mrb[0].mxu0
        %v2304 = vadd.f32 0.0, %v2303
        %2305 = vmatprep.mubr.f32.mxu0 %v1420
        %2306 = vmatmul.mubr.f32.gmra.mrb[0].mxu0 %v1418
        %v2307 = vpop.f32.mrb[0].mxu0
        %v2308 = vadd.f32 0.0, %v2307
        %v2309 = vpop.f32.mrb[0].mxu0
        %v2310 = vadd.f32 0.0, %v2309
        %2311 = vmatprep.mubr.f32.mxu0 %v1428
        %2312 = vmatmul.mubr.f32.gmra.mrb[0].mxu0 %v1426
        %v2313 = vpop.f32.mrb[0].mxu0
        %v2314 = vadd.f32 0.0, %v2313
        %v2315 = vpop.f32.mrb[0].mxu0
        %v2316 = vadd.f32 0.0, %v2315
        %2317 = vmatprep.mubr.f32.mxu0 %v1436
        %2318 = vmatmul.mubr.f32.gmra.mrb[0].mxu0 %v1434
        %v2319 = vpop.f32.mrb[0].mxu0
        %v2320 = vadd.f32 0.0, %v2319
        %v2321 = vpop.f32.mrb[0].mxu0
        %v2322 = vadd.f32 0.0, %v2321
        %2323 = vmatprep.mubr.f32.mxu0 %v1444
        %2324 = vmatmul.mubr.f32.gmra.mrb[0].mxu0 %v1442
        %v2325 = vpop.f32.mrb[0].mxu0
        %v2326 = vadd.f32 0.0, %v2325
        %v2327 = vpop.f32.mrb[0].mxu0
        %v2328 = vadd.f32 0.0, %v2327
        %2329 = vmatprep.mubr.f32.mxu0 %v1452
        %2330 = vmatmul.mubr.f32.gmra.mrb[0].mxu0 %v1450
        %v2331 = vpop.f32.mrb[0].mxu0
        %v2332 = vadd.f32 0.0, %v2331
        %v2333 = vpop.f32.mrb[0].mxu0
        %v2334 = vadd.f32 0.0, %v2333
        %2335 = vmatprep.mubr.f32.mxu0 %v1460
        %2336 = vmatmul.mubr.f32.gmra.mrb[0].mxu0 %v1458
        %v2337 = vpop.f32.mrb[0].mxu0
        %v2338 = vadd.f32 0.0, %v2337
        %v2339 = vpop.f32.mrb[0].mxu0
        %v2340 = vadd.f32 0.0, %v2339
        %2341 = vmatprep.mubr.f32.mxu0 %v1468
        %2342 = vmatmul.mubr.f32.gmra.mrb[0].mxu0 %v1466
        %v2343 = vpop.f32.mrb[0].mxu0
        %v2344 = vadd.f32 0.0, %v2343
        %v2345 = vpop.f32.mrb[0].mxu0
        %v2346 = vadd.f32 0.0, %v2345
        %2347 = vmatprep.mubr.f32.mxu0 %v1476
        %2348 = vmatmul.mubr.f32.gmra.mrb[0].mxu0 %v1474
        %v2349 = vpop.f32.mrb[0].mxu0
        %v2350 = vadd.f32 0.0, %v2349
        %v2351 = vpop.f32.mrb[0].mxu0
        %v2352 = vadd.f32 0.0, %v2351
        %2353 = vmatprep.mubr.f32.mxu0 %v1484
        %2354 = vmatmul.mubr.f32.gmra.mrb[0].mxu0 %v1482
        %v2355 = vpop.f32.mrb[0].mxu0
        %v2356 = vadd.f32 0.0, %v2355
        %v2357 = vpop.f32.mrb[0].mxu0
        %v2358 = vadd.f32 0.0, %v2357
        %2359 = vmatprep.mubr.f32.mxu0 %v1492
        %2360 = vmatmul.mubr.f32.gmra.mrb[0].mxu0 %v1490
        %v2361 = vpop.f32.mrb[0].mxu0
        %v2362 = vadd.f32 0.0, %v2361
        %v2363 = vpop.f32.mrb[0].mxu0
        %v2364 = vadd.f32 0.0, %v2363
        %2365 = vdwg.mxu0
        %2366 = vmatprep.subr.mxu0 %v1045
        %2367 = vmatpush1.msra.mxu0 %v1044
        %2368 = vmatprep.subr.mxu0 %v1053
        %2369 = vmatpush1.msra.mxu0 %v1052
        %2370 = vmatprep.subr.mxu0 %v1061
        %2371 = vmatpush1.msra.mxu0 %v1060
        %2372 = vmatprep.subr.mxu0 %v1069
        %2373 = vmatpush1.msra.mxu0 %v1068
        %2374 = vmatprep.subr.mxu0 %v1077
        %2375 = vmatpush1.msra.mxu0 %v1076
        %2376 = vmatprep.subr.mxu0 %v1085
        %2377 = vmatpush1.msra.mxu0 %v1084
        %2378 = vmatprep.subr.mxu0 %v1093
        %2379 = vmatpush1.msra.mxu0 %v1092
        %2380 = vmatprep.subr.mxu0 %v1101
        %2381 = vmatpush1.msra.mxu0 %v1100
        %2382 = vmatprep.subr.mxu0 %v1109
        %2383 = vmatpush1.msra.mxu0 %v1108
        %2384 = vmatprep.subr.mxu0 %v1117
        %2385 = vmatpush1.msra.mxu0 %v1116
        %2386 = vmatprep.subr.mxu0 %v1125
        %2387 = vmatpush1.msra.mxu0 %v1124
        %2388 = vmatprep.subr.mxu0 %v1133
        %2389 = vmatpush1.msra.mxu0 %v1132
        %2390 = vmatprep.subr.mxu0 %v1141
        %2391 = vmatpush1.msra.mxu0 %v1140
        %2392 = vmatprep.subr.mxu0 %v1149
        %2393 = vmatpush1.msra.mxu0 %v1148
        %2394 = vmatprep.subr.mxu0 %v1157
        %2395 = vmatpush1.msra.mxu0 %v1156
        %2396 = vmatprep.subr.mxu0 %v1165
        %2397 = vmatpush1.msra.mxu0 %v1164
        %2398 = vmatprep.subr.mxu0 %v1173
        %2399 = vmatpush1.msra.mxu0 %v1172
        %2400 = vmatprep.subr.mxu0 %v1181
        %2401 = vmatpush1.msra.mxu0 %v1180
        %2402 = vmatprep.subr.mxu0 %v1189
        %2403 = vmatpush1.msra.mxu0 %v1188
        %2404 = vmatprep.subr.mxu0 %v1197
        %2405 = vmatpush1.msra.mxu0 %v1196
        %2406 = vmatprep.subr.mxu0 %v1205
        %2407 = vmatpush1.msra.mxu0 %v1204
        %2408 = vmatprep.subr.mxu0 %v1213
        %2409 = vmatpush1.msra.mxu0 %v1212
        %2410 = vmatprep.subr.mxu0 %v1221
        %2411 = vmatpush1.msra.mxu0 %v1220
        %2412 = vmatprep.subr.mxu0 %v1229
        %2413 = vmatpush1.msra.mxu0 %v1228
        %2414 = vmatprep.subr.mxu0 %v1237
        %2415 = vmatpush1.msra.mxu0 %v1236
        %2416 = vmatprep.subr.mxu0 %v1245
        %2417 = vmatpush1.msra.mxu0 %v1244
        %2418 = vmatprep.subr.mxu0 %v1253
        %2419 = vmatpush1.msra.mxu0 %v1252
        %2420 = vmatprep.subr.mxu0 %v1261
        %2421 = vmatpush1.msra.mxu0 %v1260
        %2422 = vmatprep.subr.mxu0 %v1269
        %2423 = vmatpush1.msra.mxu0 %v1268
        %2424 = vmatprep.subr.mxu0 %v1277
        %2425 = vmatpush1.msra.mxu0 %v1276
        %2426 = vmatprep.subr.mxu0 %v1285
        %2427 = vmatpush1.msra.mxu0 %v1284
        %2428 = vmatprep.subr.mxu0 %v1293
        %2429 = vmatpush1.msra.mxu0 %v1292
        %2430 = vmatprep.mubr.f32.mxu0 %v1376
        %2431 = vmatmul.mubr.f32.gmra.mrb[0].mxu0 %v1373
        %v2432 = vpop.f32.mrb[0].mxu0
        %v2433 = vadd.f32 %v2272, %v2432
        %v2434 = vpop.f32.mrb[0].mxu0
        %v2435 = vadd.f32 %v2274, %v2434
        %2436 = vmatprep.mubr.f32.mxu0 %v1384
        %2437 = vmatmul.mubr.f32.gmra.mrb[0].mxu0 %v1382
        %v2438 = vpop.f32.mrb[0].mxu0
        %v2439 = vadd.f32 %v2278, %v2438
        %v2440 = vpop.f32.mrb[0].mxu0
        %v2441 = vadd.f32 %v2280, %v2440
        %2442 = vmatprep.mubr.f32.mxu0 %v1392
        %2443 = vmatmul.mubr.f32.gmra.mrb[0].mxu0 %v1390
        %v2444 = vpop.f32.mrb[0].mxu0
        %v2445 = vadd.f32 %v2284, %v2444
        %v2446 = vpop.f32.mrb[0].mxu0
        %v2447 = vadd.f32 %v2286, %v2446
        %2448 = vmatprep.mubr.f32.mxu0 %v1400
        %2449 = vmatmul.mubr.f32.gmra.mrb[0].mxu0 %v1398
        %v2450 = vpop.f32.mrb[0].mxu0
        %v2451 = vadd.f32 %v2290, %v2450
        %v2452 = vpop.f32.mrb[0].mxu0
        %v2453 = vadd.f32 %v2292, %v2452
        %2454 = vmatprep.mubr.f32.mxu0 %v1408
        %2455 = vmatmul.mubr.f32.gmra.mrb[0].mxu0 %v1406
        %v2456 = vpop.f32.mrb[0].mxu0
        %v2457 = vadd.f32 %v2296, %v2456
        %v2458 = vpop.f32.mrb[0].mxu0
        %v2459 = vadd.f32 %v2298, %v2458
        %2460 = vmatprep.mubr.f32.mxu0 %v1416
        %2461 = vmatmul.mubr.f32.gmra.mrb[0].mxu0 %v1414
        %v2462 = vpop.f32.mrb[0].mxu0
        %v2463 = vadd.f32 %v2302, %v2462
        %v2464 = vpop.f32.mrb[0].mxu0
        %v2465 = vadd.f32 %v2304, %v2464
        %2466 = vmatprep.mubr.f32.mxu0 %v1424
        %2467 = vmatmul.mubr.f32.gmra.mrb[0].mxu0 %v1422
        %v2468 = vpop.f32.mrb[0].mxu0
        %v2469 = vadd.f32 %v2308, %v2468
        %v2470 = vpop.f32.mrb[0].mxu0
        %v2471 = vadd.f32 %v2310, %v2470
        %2472 = vmatprep.mubr.f32.mxu0 %v1432
        %2473 = vmatmul.mubr.f32.gmra.mrb[0].mxu0 %v1430
        %v2474 = vpop.f32.mrb[0].mxu0
        %v2475 = vadd.f32 %v2314, %v2474
        %v2476 = vpop.f32.mrb[0].mxu0
        %v2477 = vadd.f32 %v2316, %v2476
        %2478 = vmatprep.mubr.f32.mxu0 %v1440
        %2479 = vmatmul.mubr.f32.gmra.mrb[0].mxu0 %v1438
        %v2480 = vpop.f32.mrb[0].mxu0
        %v2481 = vadd.f32 %v2320, %v2480
        %v2482 = vpop.f32.mrb[0].mxu0
        %v2483 = vadd.f32 %v2322, %v2482
        %2484 = vmatprep.mubr.f32.mxu0 %v1448
        %2485 = vmatmul.mubr.f32.gmra.mrb[0].mxu0 %v1446
        %v2486 = vpop.f32.mrb[0].mxu0
        %v2487 = vadd.f32 %v2326, %v2486
        %v2488 = vpop.f32.mrb[0].mxu0
        %v2489 = vadd.f32 %v2328, %v2488
        %2490 = vmatprep.mubr.f32.mxu0 %v1456
        %2491 = vmatmul.mubr.f32.gmra.mrb[0].mxu0 %v1454
        %v2492 = vpop.f32.mrb[0].mxu0
        %v2493 = vadd.f32 %v2332, %v2492
        %v2494 = vpop.f32.mrb[0].mxu0
        %v2495 = vadd.f32 %v2334, %v2494
        %2496 = vmatprep.mubr.f32.mxu0 %v1464
        %2497 = vmatmul.mubr.f32.gmra.mrb[0].mxu0 %v1462
        %v2498 = vpop.f32.mrb[0].mxu0
        %v2499 = vadd.f32 %v2338, %v2498
        %v2500 = vpop.f32.mrb[0].mxu0
        %v2501 = vadd.f32 %v2340, %v2500
        %2502 = vmatprep.mubr.f32.mxu0 %v1472
        %2503 = vmatmul.mubr.f32.gmra.mrb[0].mxu0 %v1470
        %v2504 = vpop.f32.mrb[0].mxu0
        %v2505 = vadd.f32 %v2344, %v2504
        %v2506 = vpop.f32.mrb[0].mxu0
        %v2507 = vadd.f32 %v2346, %v2506
        %2508 = vmatprep.mubr.f32.mxu0 %v1480
        %2509 = vmatmul.mubr.f32.gmra.mrb[0].mxu0 %v1478
        %v2510 = vpop.f32.mrb[0].mxu0
        %v2511 = vadd.f32 %v2350, %v2510
        %v2512 = vpop.f32.mrb[0].mxu0
        %v2513 = vadd.f32 %v2352, %v2512
        %2514 = vmatprep.mubr.f32.mxu0 %v1488
        %2515 = vmatmul.mubr.f32.gmra.mrb[0].mxu0 %v1486
        %v2516 = vpop.f32.mrb[0].mxu0
        %v2517 = vadd.f32 %v2356, %v2516
        %v2518 = vpop.f32.mrb[0].mxu0
        %v2519 = vadd.f32 %v2358, %v2518
        %2520 = vmatprep.mubr.f32.mxu0 %v1496
        %2521 = vmatmul.mubr.f32.gmra.mrb[0].mxu0 %v1494
        %v2522 = vpop.f32.mrb[0].mxu0
        %v2523 = vadd.f32 %v2362, %v2522
        %v2524 = vpop.f32.mrb[0].mxu0
        %v2525 = vadd.f32 %v2364, %v2524
        %2526 = vdwg.mxu0
        %2527 = vmatprep.subr.mxu0 %v791
        %2528 = vmatpush1.msra.mxu0 %v790
        %2529 = vmatprep.subr.mxu0 %v799
        %2530 = vmatpush1.msra.mxu0 %v798
        %2531 = vmatprep.subr.mxu0 %v807
        %2532 = vmatpush1.msra.mxu0 %v806
        %2533 = vmatprep.subr.mxu0 %v815
        %2534 = vmatpush1.msra.mxu0 %v814
        %2535 = vmatprep.subr.mxu0 %v823
        %2536 = vmatpush1.msra.mxu0 %v822
        %2537 = vmatprep.subr.mxu0 %v831
        %2538 = vmatpush1.msra.mxu0 %v830
        %2539 = vmatprep.subr.mxu0 %v839
        %2540 = vmatpush1.msra.mxu0 %v838
        %2541 = vmatprep.subr.mxu0 %v847
        %2542 = vmatpush1.msra.mxu0 %v846
        %2543 = vmatprep.subr.mxu0 %v855
        %2544 = vmatpush1.msra.mxu0 %v854
        %2545 = vmatprep.subr.mxu0 %v863
        %2546 = vmatpush1.msra.mxu0 %v862
        %2547 = vmatprep.subr.mxu0 %v871
        %2548 = vmatpush1.msra.mxu0 %v870
        %2549 = vmatprep.subr.mxu0 %v879
        %2550 = vmatpush1.msra.mxu0 %v878
        %2551 = vmatprep.subr.mxu0 %v887
        %2552 = vmatpush1.msra.mxu0 %v886
        %2553 = vmatprep.subr.mxu0 %v895
        %2554 = vmatpush1.msra.mxu0 %v894
        %2555 = vmatprep.subr.mxu0 %v903
        %2556 = vmatpush1.msra.mxu0 %v902
        %2557 = vmatprep.subr.mxu0 %v911
        %2558 = vmatpush1.msra.mxu0 %v910
        %2559 = vmatprep.subr.mxu0 %v919
        %2560 = vmatpush1.msra.mxu0 %v918
        %2561 = vmatprep.subr.mxu0 %v927
        %2562 = vmatpush1.msra.mxu0 %v926
        %2563 = vmatprep.subr.mxu0 %v935
        %2564 = vmatpush1.msra.mxu0 %v934
        %2565 = vmatprep.subr.mxu0 %v943
        %2566 = vmatpush1.msra.mxu0 %v942
        %2567 = vmatprep.subr.mxu0 %v951
        %2568 = vmatpush1.msra.mxu0 %v950
        %2569 = vmatprep.subr.mxu0 %v959
        %2570 = vmatpush1.msra.mxu0 %v958
        %2571 = vmatprep.subr.mxu0 %v967
        %2572 = vmatpush1.msra.mxu0 %v966
        %2573 = vmatprep.subr.mxu0 %v975
        %2574 = vmatpush1.msra.mxu0 %v974
        %2575 = vmatprep.subr.mxu0 %v983
        %2576 = vmatpush1.msra.mxu0 %v982
        %2577 = vmatprep.subr.mxu0 %v991
        %2578 = vmatpush1.msra.mxu0 %v990
        %2579 = vmatprep.subr.mxu0 %v999
        %2580 = vmatpush1.msra.mxu0 %v998
        %2581 = vmatprep.subr.mxu0 %v1007
        %2582 = vmatpush1.msra.mxu0 %v1006
        %2583 = vmatprep.subr.mxu0 %v1015
        %2584 = vmatpush1.msra.mxu0 %v1014
        %2585 = vmatprep.subr.mxu0 %v1023
        %2586 = vmatpush1.msra.mxu0 %v1022
        %2587 = vmatprep.subr.mxu0 %v1031
        %2588 = vmatpush1.msra.mxu0 %v1030
        %2589 = vmatprep.subr.mxu0 %v1039
        %2590 = vmatpush1.msra.mxu0 %v1038
        %2591 = vmatprep.mubr.f32.mxu0 %v1370
        %2592 = vmatmul.mubr.f32.gmra.mrb[0].mxu0 %v1367
        %v2593 = vpop.f32.mrb[0].mxu0
        %v2594 = vadd.f32 0.0, %v2593
        %v2595 = vpop.f32.mrb[0].mxu0
        %v2596 = vadd.f32 0.0, %v2595
        %2597 = vmatprep.mubr.f32.mxu0 %v1380
        %2598 = vmatmul.mubr.f32.gmra.mrb[0].mxu0 %v1378
        %v2599 = vpop.f32.mrb[0].mxu0
        %v2600 = vadd.f32 0.0, %v2599
        %v2601 = vpop.f32.mrb[0].mxu0
        %v2602 = vadd.f32 0.0, %v2601
        %2603 = vmatprep.mubr.f32.mxu0 %v1388
        %2604 = vmatmul.mubr.f32.gmra.mrb[0].mxu0 %v1386
        %v2605 = vpop.f32.mrb[0].mxu0
        %v2606 = vadd.f32 0.0, %v2605
        %v2607 = vpop.f32.mrb[0].mxu0
        %v2608 = vadd.f32 0.0, %v2607
        %2609 = vmatprep.mubr.f32.mxu0 %v1396
        %2610 = vmatmul.mubr.f32.gmra.mrb[0].mxu0 %v1394
        %v2611 = vpop.f32.mrb[0].mxu0
        %v2612 = vadd.f32 0.0, %v2611
        %v2613 = vpop.f32.mrb[0].mxu0
        %v2614 = vadd.f32 0.0, %v2613
        %2615 = vmatprep.mubr.f32.mxu0 %v1404
        %2616 = vmatmul.mubr.f32.gmra.mrb[0].mxu0 %v1402
        %v2617 = vpop.f32.mrb[0].mxu0
        %v2618 = vadd.f32 0.0, %v2617
        %v2619 = vpop.f32.mrb[0].mxu0
        %v2620 = vadd.f32 0.0, %v2619
        %2621 = vmatprep.mubr.f32.mxu0 %v1412
        %2622 = vmatmul.mubr.f32.gmra.mrb[0].mxu0 %v1410
        %v2623 = vpop.f32.mrb[0].mxu0
        %v2624 = vadd.f32 0.0, %v2623
        %v2625 = vpop.f32.mrb[0].mxu0
        %v2626 = vadd.f32 0.0, %v2625
        %2627 = vmatprep.mubr.f32.mxu0 %v1420
        %2628 = vmatmul.mubr.f32.gmra.mrb[0].mxu0 %v1418
        %v2629 = vpop.f32.mrb[0].mxu0
        %v2630 = vadd.f32 0.0, %v2629
        %v2631 = vpop.f32.mrb[0].mxu0
        %v2632 = vadd.f32 0.0, %v2631
        %2633 = vmatprep.mubr.f32.mxu0 %v1428
        %2634 = vmatmul.mubr.f32.gmra.mrb[0].mxu0 %v1426
        %v2635 = vpop.f32.mrb[0].mxu0
        %v2636 = vadd.f32 0.0, %v2635
        %v2637 = vpop.f32.mrb[0].mxu0
        %v2638 = vadd.f32 0.0, %v2637
        %2639 = vmatprep.mubr.f32.mxu0 %v1436
        %2640 = vmatmul.mubr.f32.gmra.mrb[0].mxu0 %v1434
        %v2641 = vpop.f32.mrb[0].mxu0
        %v2642 = vadd.f32 0.0, %v2641
        %v2643 = vpop.f32.mrb[0].mxu0
        %v2644 = vadd.f32 0.0, %v2643
        %2645 = vmatprep.mubr.f32.mxu0 %v1444
        %2646 = vmatmul.mubr.f32.gmra.mrb[0].mxu0 %v1442
        %v2647 = vpop.f32.mrb[0].mxu0
        %v2648 = vadd.f32 0.0, %v2647
        %v2649 = vpop.f32.mrb[0].mxu0
        %v2650 = vadd.f32 0.0, %v2649
        %2651 = vmatprep.mubr.f32.mxu0 %v1452
        %2652 = vmatmul.mubr.f32.gmra.mrb[0].mxu0 %v1450
        %v2653 = vpop.f32.mrb[0].mxu0
        %v2654 = vadd.f32 0.0, %v2653
        %v2655 = vpop.f32.mrb[0].mxu0
        %v2656 = vadd.f32 0.0, %v2655
        %2657 = vmatprep.mubr.f32.mxu0 %v1460
        %2658 = vmatmul.mubr.f32.gmra.mrb[0].mxu0 %v1458
        %v2659 = vpop.f32.mrb[0].mxu0
        %v2660 = vadd.f32 0.0, %v2659
        %v2661 = vpop.f32.mrb[0].mxu0
        %v2662 = vadd.f32 0.0, %v2661
        %2663 = vmatprep.mubr.f32.mxu0 %v1468
        %2664 = vmatmul.mubr.f32.gmra.mrb[0].mxu0 %v1466
        %v2665 = vpop.f32.mrb[0].mxu0
        %v2666 = vadd.f32 0.0, %v2665
        %v2667 = vpop.f32.mrb[0].mxu0
        %v2668 = vadd.f32 0.0, %v2667
        %2669 = vmatprep.mubr.f32.mxu0 %v1476
        %2670 = vmatmul.mubr.f32.gmra.mrb[0].mxu0 %v1474
        %v2671 = vpop.f32.mrb[0].mxu0
        %v2672 = vadd.f32 0.0, %v2671
        %v2673 = vpop.f32.mrb[0].mxu0
        %v2674 = vadd.f32 0.0, %v2673
        %2675 = vmatprep.mubr.f32.mxu0 %v1484
        %2676 = vmatmul.mubr.f32.gmra.mrb[0].mxu0 %v1482
        %v2677 = vpop.f32.mrb[0].mxu0
        %v2678 = vadd.f32 0.0, %v2677
        %v2679 = vpop.f32.mrb[0].mxu0
        %v2680 = vadd.f32 0.0, %v2679
        %2681 = vmatprep.mubr.f32.mxu0 %v1492
        %2682 = vmatmul.mubr.f32.gmra.mrb[0].mxu0 %v1490
        %v2683 = vpop.f32.mrb[0].mxu0
        %v2684 = vadd.f32 0.0, %v2683
        %v2685 = vpop.f32.mrb[0].mxu0
        %v2686 = vadd.f32 0.0, %v2685
        %2687 = vdwg.mxu0
        %2688 = vmatprep.subr.mxu0 %v1047
        %2689 = vmatpush1.msra.mxu0 %v1046
        %2690 = vmatprep.subr.mxu0 %v1055
        %2691 = vmatpush1.msra.mxu0 %v1054
        %2692 = vmatprep.subr.mxu0 %v1063
        %2693 = vmatpush1.msra.mxu0 %v1062
        %2694 = vmatprep.subr.mxu0 %v1071
        %2695 = vmatpush1.msra.mxu0 %v1070
        %2696 = vmatprep.subr.mxu0 %v1079
        %2697 = vmatpush1.msra.mxu0 %v1078
        %2698 = vmatprep.subr.mxu0 %v1087
        %2699 = vmatpush1.msra.mxu0 %v1086
        %2700 = vmatprep.subr.mxu0 %v1095
        %2701 = vmatpush1.msra.mxu0 %v1094
        %2702 = vmatprep.subr.mxu0 %v1103
        %2703 = vmatpush1.msra.mxu0 %v1102
        %2704 = vmatprep.subr.mxu0 %v1111
        %2705 = vmatpush1.msra.mxu0 %v1110
        %2706 = vmatprep.subr.mxu0 %v1119
        %2707 = vmatpush1.msra.mxu0 %v1118
        %2708 = vmatprep.subr.mxu0 %v1127
        %2709 = vmatpush1.msra.mxu0 %v1126
        %2710 = vmatprep.subr.mxu0 %v1135
        %2711 = vmatpush1.msra.mxu0 %v1134
        %2712 = vmatprep.subr.mxu0 %v1143
        %2713 = vmatpush1.msra.mxu0 %v1142
        %2714 = vmatprep.subr.mxu0 %v1151
        %2715 = vmatpush1.msra.mxu0 %v1150
        %2716 = vmatprep.subr.mxu0 %v1159
        %2717 = vmatpush1.msra.mxu0 %v1158
        %2718 = vmatprep.subr.mxu0 %v1167
        %2719 = vmatpush1.msra.mxu0 %v1166
        %2720 = vmatprep.subr.mxu0 %v1175
        %2721 = vmatpush1.msra.mxu0 %v1174
        %2722 = vmatprep.subr.mxu0 %v1183
        %2723 = vmatpush1.msra.mxu0 %v1182
        %2724 = vmatprep.subr.mxu0 %v1191
        %2725 = vmatpush1.msra.mxu0 %v1190
        %2726 = vmatprep.subr.mxu0 %v1199
        %2727 = vmatpush1.msra.mxu0 %v1198
        %2728 = vmatprep.subr.mxu0 %v1207
        %2729 = vmatpush1.msra.mxu0 %v1206
        %2730 = vmatprep.subr.mxu0 %v1215
        %2731 = vmatpush1.msra.mxu0 %v1214
        %2732 = vmatprep.subr.mxu0 %v1223
        %2733 = vmatpush1.msra.mxu0 %v1222
        %2734 = vmatprep.subr.mxu0 %v1231
        %2735 = vmatpush1.msra.mxu0 %v1230
        %2736 = vmatprep.subr.mxu0 %v1239
        %2737 = vmatpush1.msra.mxu0 %v1238
        %2738 = vmatprep.subr.mxu0 %v1247
        %2739 = vmatpush1.msra.mxu0 %v1246
        %2740 = vmatprep.subr.mxu0 %v1255
        %2741 = vmatpush1.msra.mxu0 %v1254
        %2742 = vmatprep.subr.mxu0 %v1263
        %2743 = vmatpush1.msra.mxu0 %v1262
        %2744 = vmatprep.subr.mxu0 %v1271
        %2745 = vmatpush1.msra.mxu0 %v1270
        %2746 = vmatprep.subr.mxu0 %v1279
        %2747 = vmatpush1.msra.mxu0 %v1278
        %2748 = vmatprep.subr.mxu0 %v1287
        %2749 = vmatpush1.msra.mxu0 %v1286
        %2750 = vmatprep.subr.mxu0 %v1295
        %2751 = vmatpush1.msra.mxu0 %v1294
        %2752 = vmatprep.mubr.f32.mxu0 %v1376
        %2753 = vmatmul.mubr.f32.gmra.mrb[0].mxu0 %v1373
        %v2754 = vpop.f32.mrb[0].mxu0
        %v2755 = vadd.f32 %v2594, %v2754
        %v2756 = vpop.f32.mrb[0].mxu0
        %v2757 = vadd.f32 %v2596, %v2756
        %2758 = vmatprep.mubr.f32.mxu0 %v1384
        %2759 = vmatmul.mubr.f32.gmra.mrb[0].mxu0 %v1382
        %v2760 = vpop.f32.mrb[0].mxu0
        %v2761 = vadd.f32 %v2600, %v2760
        %v2762 = vpop.f32.mrb[0].mxu0
        %v2763 = vadd.f32 %v2602, %v2762
        %2764 = vmatprep.mubr.f32.mxu0 %v1392
        %2765 = vmatmul.mubr.f32.gmra.mrb[0].mxu0 %v1390
        %v2766 = vpop.f32.mrb[0].mxu0
        %v2767 = vadd.f32 %v2606, %v2766
        %v2768 = vpop.f32.mrb[0].mxu0
        %v2769 = vadd.f32 %v2608, %v2768
        %2770 = vmatprep.mubr.f32.mxu0 %v1400
        %2771 = vmatmul.mubr.f32.gmra.mrb[0].mxu0 %v1398
        %v2772 = vpop.f32.mrb[0].mxu0
        %v2773 = vadd.f32 %v2612, %v2772
        %v2774 = vpop.f32.mrb[0].mxu0
        %v2775 = vadd.f32 %v2614, %v2774
        %2776 = vmatprep.mubr.f32.mxu0 %v1408
        %2777 = vmatmul.mubr.f32.gmra.mrb[0].mxu0 %v1406
        %v2778 = vpop.f32.mrb[0].mxu0
        %v2779 = vadd.f32 %v2618, %v2778
        %v2780 = vpop.f32.mrb[0].mxu0
        %v2781 = vadd.f32 %v2620, %v2780
        %2782 = vmatprep.mubr.f32.mxu0 %v1416
        %2783 = vmatmul.mubr.f32.gmra.mrb[0].mxu0 %v1414
        %v2784 = vpop.f32.mrb[0].mxu0
        %v2785 = vadd.f32 %v2624, %v2784
        %v2786 = vpop.f32.mrb[0].mxu0
        %v2787 = vadd.f32 %v2626, %v2786
        %2788 = vmatprep.mubr.f32.mxu0 %v1424
        %2789 = vmatmul.mubr.f32.gmra.mrb[0].mxu0 %v1422
        %v2790 = vpop.f32.mrb[0].mxu0
        %v2791 = vadd.f32 %v2630, %v2790
        %v2792 = vpop.f32.mrb[0].mxu0
        %v2793 = vadd.f32 %v2632, %v2792
        %2794 = vmatprep.mubr.f32.mxu0 %v1432
        %2795 = vmatmul.mubr.f32.gmra.mrb[0].mxu0 %v1430
        %v2796 = vpop.f32.mrb[0].mxu0
        %v2797 = vadd.f32 %v2636, %v2796
        %v2798 = vpop.f32.mrb[0].mxu0
        %v2799 = vadd.f32 %v2638, %v2798
        %2800 = vmatprep.mubr.f32.mxu0 %v1440
        %2801 = vmatmul.mubr.f32.gmra.mrb[0].mxu0 %v1438
        %v2802 = vpop.f32.mrb[0].mxu0
        %v2803 = vadd.f32 %v2642, %v2802
        %v2804 = vpop.f32.mrb[0].mxu0
        %v2805 = vadd.f32 %v2644, %v2804
        %2806 = vmatprep.mubr.f32.mxu0 %v1448
        %2807 = vmatmul.mubr.f32.gmra.mrb[0].mxu0 %v1446
        %v2808 = vpop.f32.mrb[0].mxu0
        %v2809 = vadd.f32 %v2648, %v2808
        %v2810 = vpop.f32.mrb[0].mxu0
        %v2811 = vadd.f32 %v2650, %v2810
        %2812 = vmatprep.mubr.f32.mxu0 %v1456
        %2813 = vmatmul.mubr.f32.gmra.mrb[0].mxu0 %v1454
        %v2814 = vpop.f32.mrb[0].mxu0
        %v2815 = vadd.f32 %v2654, %v2814
        %v2816 = vpop.f32.mrb[0].mxu0
        %v2817 = vadd.f32 %v2656, %v2816
        %2818 = vmatprep.mubr.f32.mxu0 %v1464
        %2819 = vmatmul.mubr.f32.gmra.mrb[0].mxu0 %v1462
        %v2820 = vpop.f32.mrb[0].mxu0
        %v2821 = vadd.f32 %v2660, %v2820
        %v2822 = vpop.f32.mrb[0].mxu0
        %v2823 = vadd.f32 %v2662, %v2822
        %2824 = vmatprep.mubr.f32.mxu0 %v1472
        %2825 = vmatmul.mubr.f32.gmra.mrb[0].mxu0 %v1470
        %v2826 = vpop.f32.mrb[0].mxu0
        %v2827 = vadd.f32 %v2666, %v2826
        %v2828 = vpop.f32.mrb[0].mxu0
        %v2829 = vadd.f32 %v2668, %v2828
        %2830 = vmatprep.mubr.f32.mxu0 %v1480
        %2831 = vmatmul.mubr.f32.gmra.mrb[0].mxu0 %v1478
        %v2832 = vpop.f32.mrb[0].mxu0
        %v2833 = vadd.f32 %v2672, %v2832
        %v2834 = vpop.f32.mrb[0].mxu0
        %v2835 = vadd.f32 %v2674, %v2834
        %2836 = vmatprep.mubr.f32.mxu0 %v1488
        %2837 = vmatmul.mubr.f32.gmra.mrb[0].mxu0 %v1486
        %v2838 = vpop.f32.mrb[0].mxu0
        %v2839 = vadd.f32 %v2678, %v2838
        %v2840 = vpop.f32.mrb[0].mxu0
        %v2841 = vadd.f32 %v2680, %v2840
        %2842 = vmatprep.mubr.f32.mxu0 %v1496
        %2843 = vmatmul.mubr.f32.gmra.mrb[0].mxu0 %v1494
        %v2844 = vpop.f32.mrb[0].mxu0
        %v2845 = vadd.f32 %v2684, %v2844
        %v2846 = vpop.f32.mrb[0].mxu0
        %v2847 = vadd.f32 %v2686, %v2846
        %2848 = vdwg.mxu0
        %2849 = vmatprep.subr.mxu0 %v272
        %2850 = vmatpush1.msra.mxu0 %v271
        %2851 = vmatprep.subr.mxu0 %v280
        %2852 = vmatpush1.msra.mxu0 %v279
        %2853 = vmatprep.subr.mxu0 %v288
        %2854 = vmatpush1.msra.mxu0 %v287
        %2855 = vmatprep.subr.mxu0 %v296
        %2856 = vmatpush1.msra.mxu0 %v295
        %2857 = vmatprep.subr.mxu0 %v304
        %2858 = vmatpush1.msra.mxu0 %v303
        %2859 = vmatprep.subr.mxu0 %v312
        %2860 = vmatpush1.msra.mxu0 %v311
        %2861 = vmatprep.subr.mxu0 %v320
        %2862 = vmatpush1.msra.mxu0 %v319
        %2863 = vmatprep.subr.mxu0 %v328
        %2864 = vmatpush1.msra.mxu0 %v327
        %2865 = vmatprep.subr.mxu0 %v336
        %2866 = vmatpush1.msra.mxu0 %v335
        %2867 = vmatprep.subr.mxu0 %v344
        %2868 = vmatpush1.msra.mxu0 %v343
        %2869 = vmatprep.subr.mxu0 %v352
        %2870 = vmatpush1.msra.mxu0 %v351
        %2871 = vmatprep.subr.mxu0 %v360
        %2872 = vmatpush1.msra.mxu0 %v359
        %2873 = vmatprep.subr.mxu0 %v368
        %2874 = vmatpush1.msra.mxu0 %v367
        %2875 = vmatprep.subr.mxu0 %v376
        %2876 = vmatpush1.msra.mxu0 %v375
        %2877 = vmatprep.subr.mxu0 %v384
        %2878 = vmatpush1.msra.mxu0 %v383
        %2879 = vmatprep.subr.mxu0 %v392
        %2880 = vmatpush1.msra.mxu0 %v391
        %2881 = vmatprep.subr.mxu0 %v400
        %2882 = vmatpush1.msra.mxu0 %v399
        %2883 = vmatprep.subr.mxu0 %v408
        %2884 = vmatpush1.msra.mxu0 %v407
        %2885 = vmatprep.subr.mxu0 %v416
        %2886 = vmatpush1.msra.mxu0 %v415
        %2887 = vmatprep.subr.mxu0 %v424
        %2888 = vmatpush1.msra.mxu0 %v423
        %2889 = vmatprep.subr.mxu0 %v432
        %2890 = vmatpush1.msra.mxu0 %v431
        %2891 = vmatprep.subr.mxu0 %v440
        %2892 = vmatpush1.msra.mxu0 %v439
        %2893 = vmatprep.subr.mxu0 %v448
        %2894 = vmatpush1.msra.mxu0 %v447
        %2895 = vmatprep.subr.mxu0 %v456
        %2896 = vmatpush1.msra.mxu0 %v455
        %2897 = vmatprep.subr.mxu0 %v464
        %2898 = vmatpush1.msra.mxu0 %v463
        %2899 = vmatprep.subr.mxu0 %v472
        %2900 = vmatpush1.msra.mxu0 %v471
        %2901 = vmatprep.subr.mxu0 %v480
        %2902 = vmatpush1.msra.mxu0 %v479
        %2903 = vmatprep.subr.mxu0 %v488
        %2904 = vmatpush1.msra.mxu0 %v487
        %2905 = vmatprep.subr.mxu0 %v496
        %2906 = vmatpush1.msra.mxu0 %v495
        %2907 = vmatprep.subr.mxu0 %v504
        %2908 = vmatpush1.msra.mxu0 %v503
        %2909 = vmatprep.subr.mxu0 %v512
        %2910 = vmatpush1.msra.mxu0 %v511
        %2911 = vmatprep.subr.mxu0 %v520
        %2912 = vmatpush1.msra.mxu0 %v519
        %2913 = vmatprep.mubr.f32.mxu0 %v200
        %2914 = vmatmul.mubr.f32.gmra.mrb[0].mxu0 %v199
        %v2915 = vpop.f32.mrb[0].mxu0
        %v2916 = vadd.f32 %v1789, %v2915
        %v2917 = vpop.f32.mrb[0].mxu0
        %v2918 = vadd.f32 %v1791, %v2917
        %2919 = vmatprep.mubr.f32.mxu0 %v204
        %2920 = vmatmul.mubr.f32.gmra.mrb[0].mxu0 %v203
        %v2921 = vpop.f32.mrb[0].mxu0
        %v2922 = vadd.f32 %v1795, %v2921
        %v2923 = vpop.f32.mrb[0].mxu0
        %v2924 = vadd.f32 %v1797, %v2923
        %2925 = vmatprep.mubr.f32.mxu0 %v208
        %2926 = vmatmul.mubr.f32.gmra.mrb[0].mxu0 %v207
        %v2927 = vpop.f32.mrb[0].mxu0
        %v2928 = vadd.f32 %v1801, %v2927
        %v2929 = vpop.f32.mrb[0].mxu0
        %v2930 = vadd.f32 %v1803, %v2929
        %2931 = vmatprep.mubr.f32.mxu0 %v212
        %2932 = vmatmul.mubr.f32.gmra.mrb[0].mxu0 %v211
        %v2933 = vpop.f32.mrb[0].mxu0
        %v2934 = vadd.f32 %v1807, %v2933
        %v2935 = vpop.f32.mrb[0].mxu0
        %v2936 = vadd.f32 %v1809, %v2935
        %2937 = vmatprep.mubr.f32.mxu0 %v216
        %2938 = vmatmul.mubr.f32.gmra.mrb[0].mxu0 %v215
        %v2939 = vpop.f32.mrb[0].mxu0
        %v2940 = vadd.f32 %v1813, %v2939
        %v2941 = vpop.f32.mrb[0].mxu0
        %v2942 = vadd.f32 %v1815, %v2941
        %2943 = vmatprep.mubr.f32.mxu0 %v220
        %2944 = vmatmul.mubr.f32.gmra.mrb[0].mxu0 %v219
        %v2945 = vpop.f32.mrb[0].mxu0
        %v2946 = vadd.f32 %v1819, %v2945
        %v2947 = vpop.f32.mrb[0].mxu0
        %v2948 = vadd.f32 %v1821, %v2947
        %2949 = vmatprep.mubr.f32.mxu0 %v224
        %2950 = vmatmul.mubr.f32.gmra.mrb[0].mxu0 %v223
        %v2951 = vpop.f32.mrb[0].mxu0
        %v2952 = vadd.f32 %v1825, %v2951
        %v2953 = vpop.f32.mrb[0].mxu0
        %v2954 = vadd.f32 %v1827, %v2953
        %2955 = vmatprep.mubr.f32.mxu0 %v228
        %2956 = vmatmul.mubr.f32.gmra.mrb[0].mxu0 %v227
        %v2957 = vpop.f32.mrb[0].mxu0
        %v2958 = vadd.f32 %v1831, %v2957
        %v2959 = vpop.f32.mrb[0].mxu0
        %v2960 = vadd.f32 %v1833, %v2959
        %2961 = vmatprep.mubr.f32.mxu0 %v232
        %2962 = vmatmul.mubr.f32.gmra.mrb[0].mxu0 %v231
        %v2963 = vpop.f32.mrb[0].mxu0
        %v2964 = vadd.f32 %v1837, %v2963
        %v2965 = vpop.f32.mrb[0].mxu0
        %v2966 = vadd.f32 %v1839, %v2965
        %2967 = vmatprep.mubr.f32.mxu0 %v236
        %2968 = vmatmul.mubr.f32.gmra.mrb[0].mxu0 %v235
        %v2969 = vpop.f32.mrb[0].mxu0
        %v2970 = vadd.f32 %v1843, %v2969
        %v2971 = vpop.f32.mrb[0].mxu0
        %v2972 = vadd.f32 %v1845, %v2971
        %2973 = vmatprep.mubr.f32.mxu0 %v240
        %2974 = vmatmul.mubr.f32.gmra.mrb[0].mxu0 %v239
        %v2975 = vpop.f32.mrb[0].mxu0
        %v2976 = vadd.f32 %v1849, %v2975
        %v2977 = vpop.f32.mrb[0].mxu0
        %v2978 = vadd.f32 %v1851, %v2977
        %2979 = vmatprep.mubr.f32.mxu0 %v244
        %2980 = vmatmul.mubr.f32.gmra.mrb[0].mxu0 %v243
        %v2981 = vpop.f32.mrb[0].mxu0
        %v2982 = vadd.f32 %v1855, %v2981
        %v2983 = vpop.f32.mrb[0].mxu0
        %v2984 = vadd.f32 %v1857, %v2983
        %2985 = vmatprep.mubr.f32.mxu0 %v248
        %2986 = vmatmul.mubr.f32.gmra.mrb[0].mxu0 %v247
        %v2987 = vpop.f32.mrb[0].mxu0
        %v2988 = vadd.f32 %v1861, %v2987
        %v2989 = vpop.f32.mrb[0].mxu0
        %v2990 = vadd.f32 %v1863, %v2989
        %2991 = vmatprep.mubr.f32.mxu0 %v252
        %2992 = vmatmul.mubr.f32.gmra.mrb[0].mxu0 %v251
        %v2993 = vpop.f32.mrb[0].mxu0
        %v2994 = vadd.f32 %v1867, %v2993
        %v2995 = vpop.f32.mrb[0].mxu0
        %v2996 = vadd.f32 %v1869, %v2995
        %2997 = vmatprep.mubr.f32.mxu0 %v256
        %2998 = vmatmul.mubr.f32.gmra.mrb[0].mxu0 %v255
        %v2999 = vpop.f32.mrb[0].mxu0
        %v3000 = vadd.f32 %v1873, %v2999
        %v3001 = vpop.f32.mrb[0].mxu0
        %v3002 = vadd.f32 %v1875, %v3001
        %3003 = vmatprep.mubr.f32.mxu0 %v260
        %3004 = vmatmul.mubr.f32.gmra.mrb[0].mxu0 %v259
        %v3005 = vpop.f32.mrb[0].mxu0
        %v3006 = vadd.f32 %v1879, %v3005
        %v3007 = vpop.f32.mrb[0].mxu0
        %v3008 = vadd.f32 %v1881, %v3007
        %3009 = vdwg.mxu0
        %3010 = vmatprep.subr.mxu0 %v528
        %3011 = vmatpush1.msra.mxu0 %v527
        %3012 = vmatprep.subr.mxu0 %v536
        %3013 = vmatpush1.msra.mxu0 %v535
        %3014 = vmatprep.subr.mxu0 %v544
        %3015 = vmatpush1.msra.mxu0 %v543
        %3016 = vmatprep.subr.mxu0 %v552
        %3017 = vmatpush1.msra.mxu0 %v551
        %3018 = vmatprep.subr.mxu0 %v560
        %3019 = vmatpush1.msra.mxu0 %v559
        %3020 = vmatprep.subr.mxu0 %v568
        %3021 = vmatpush1.msra.mxu0 %v567
        %3022 = vmatprep.subr.mxu0 %v576
        %3023 = vmatpush1.msra.mxu0 %v575
        %3024 = vmatprep.subr.mxu0 %v584
        %3025 = vmatpush1.msra.mxu0 %v583
        %3026 = vmatprep.subr.mxu0 %v592
        %3027 = vmatpush1.msra.mxu0 %v591
        %3028 = vmatprep.subr.mxu0 %v600
        %3029 = vmatpush1.msra.mxu0 %v599
        %3030 = vmatprep.subr.mxu0 %v608
        %3031 = vmatpush1.msra.mxu0 %v607
        %3032 = vmatprep.subr.mxu0 %v616
        %3033 = vmatpush1.msra.mxu0 %v615
        %3034 = vmatprep.subr.mxu0 %v624
        %3035 = vmatpush1.msra.mxu0 %v623
        %3036 = vmatprep.subr.mxu0 %v632
        %3037 = vmatpush1.msra.mxu0 %v631
        %3038 = vmatprep.subr.mxu0 %v640
        %3039 = vmatpush1.msra.mxu0 %v639
        %3040 = vmatprep.subr.mxu0 %v648
        %3041 = vmatpush1.msra.mxu0 %v647
        %3042 = vmatprep.subr.mxu0 %v656
        %3043 = vmatpush1.msra.mxu0 %v655
        %3044 = vmatprep.subr.mxu0 %v664
        %3045 = vmatpush1.msra.mxu0 %v663
        %3046 = vmatprep.subr.mxu0 %v672
        %3047 = vmatpush1.msra.mxu0 %v671
        %3048 = vmatprep.subr.mxu0 %v680
        %3049 = vmatpush1.msra.mxu0 %v679
        %3050 = vmatprep.subr.mxu0 %v688
        %3051 = vmatpush1.msra.mxu0 %v687
        %3052 = vmatprep.subr.mxu0 %v696
        %3053 = vmatpush1.msra.mxu0 %v695
        %3054 = vmatprep.subr.mxu0 %v704
        %3055 = vmatpush1.msra.mxu0 %v703
        %3056 = vmatprep.subr.mxu0 %v712
        %3057 = vmatpush1.msra.mxu0 %v711
        %3058 = vmatprep.subr.mxu0 %v720
        %3059 = vmatpush1.msra.mxu0 %v719
        %3060 = vmatprep.subr.mxu0 %v728
        %3061 = vmatpush1.msra.mxu0 %v727
        %3062 = vmatprep.subr.mxu0 %v736
        %3063 = vmatpush1.msra.mxu0 %v735
        %3064 = vmatprep.subr.mxu0 %v744
        %3065 = vmatpush1.msra.mxu0 %v743
        %3066 = vmatprep.subr.mxu0 %v752
        %3067 = vmatpush1.msra.mxu0 %v751
        %3068 = vmatprep.subr.mxu0 %v760
        %3069 = vmatpush1.msra.mxu0 %v759
        %3070 = vmatprep.subr.mxu0 %v768
        %3071 = vmatpush1.msra.mxu0 %v767
        %3072 = vmatprep.subr.mxu0 %v776
        %3073 = vmatpush1.msra.mxu0 %v775
        %3074 = vmatprep.mubr.f32.mxu0 %v202
        %3075 = vmatmul.mubr.f32.gmra.mrb[0].mxu0 %v201
        %v3076 = vpop.f32.mrb[0].mxu0
        %v3077 = vadd.f32 %v2916, %v3076
        %v3078 = vpop.f32.mrb[0].mxu0
        %v3079 = vadd.f32 %v2918, %v3078
        %3080 = vmatprep.mubr.f32.mxu0 %v206
        %3081 = vmatmul.mubr.f32.gmra.mrb[0].mxu0 %v205
        %v3082 = vpop.f32.mrb[0].mxu0
        %v3083 = vadd.f32 %v2922, %v3082
        %v3084 = vpop.f32.mrb[0].mxu0
        %v3085 = vadd.f32 %v2924, %v3084
        %3086 = vmatprep.mubr.f32.mxu0 %v210
        %3087 = vmatmul.mubr.f32.gmra.mrb[0].mxu0 %v209
        %v3088 = vpop.f32.mrb[0].mxu0
        %v3089 = vadd.f32 %v2928, %v3088
        %v3090 = vpop.f32.mrb[0].mxu0
        %v3091 = vadd.f32 %v2930, %v3090
        %3092 = vmatprep.mubr.f32.mxu0 %v214
        %3093 = vmatmul.mubr.f32.gmra.mrb[0].mxu0 %v213
        %v3094 = vpop.f32.mrb[0].mxu0
        %v3095 = vadd.f32 %v2934, %v3094
        %v3096 = vpop.f32.mrb[0].mxu0
        %v3097 = vadd.f32 %v2936, %v3096
        %3098 = vmatprep.mubr.f32.mxu0 %v218
        %3099 = vmatmul.mubr.f32.gmra.mrb[0].mxu0 %v217
        %v3100 = vpop.f32.mrb[0].mxu0
        %v3101 = vadd.f32 %v2940, %v3100
        %v3102 = vpop.f32.mrb[0].mxu0
        %v3103 = vadd.f32 %v2942, %v3102
        %3104 = vmatprep.mubr.f32.mxu0 %v222
        %3105 = vmatmul.mubr.f32.gmra.mrb[0].mxu0 %v221
        %v3106 = vpop.f32.mrb[0].mxu0
        %v3107 = vadd.f32 %v2946, %v3106
        %v3108 = vpop.f32.mrb[0].mxu0
        %v3109 = vadd.f32 %v2948, %v3108
        %3110 = vmatprep.mubr.f32.mxu0 %v226
        %3111 = vmatmul.mubr.f32.gmra.mrb[0].mxu0 %v225
        %v3112 = vpop.f32.mrb[0].mxu0
        %v3113 = vadd.f32 %v2952, %v3112
        %v3114 = vpop.f32.mrb[0].mxu0
        %v3115 = vadd.f32 %v2954, %v3114
        %3116 = vmatprep.mubr.f32.mxu0 %v230
        %3117 = vmatmul.mubr.f32.gmra.mrb[0].mxu0 %v229
        %v3118 = vpop.f32.mrb[0].mxu0
        %v3119 = vadd.f32 %v2958, %v3118
        %v3120 = vpop.f32.mrb[0].mxu0
        %v3121 = vadd.f32 %v2960, %v3120
        %3122 = vmatprep.mubr.f32.mxu0 %v234
        %3123 = vmatmul.mubr.f32.gmra.mrb[0].mxu0 %v233
        %v3124 = vpop.f32.mrb[0].mxu0
        %v3125 = vadd.f32 %v2964, %v3124
        %v3126 = vpop.f32.mrb[0].mxu0
        %v3127 = vadd.f32 %v2966, %v3126
        %3128 = vmatprep.mubr.f32.mxu0 %v238
        %3129 = vmatmul.mubr.f32.gmra.mrb[0].mxu0 %v237
        %v3130 = vpop.f32.mrb[0].mxu0
        %v3131 = vadd.f32 %v2970, %v3130
        %v3132 = vpop.f32.mrb[0].mxu0
        %v3133 = vadd.f32 %v2972, %v3132
        %3134 = vmatprep.mubr.f32.mxu0 %v242
        %3135 = vmatmul.mubr.f32.gmra.mrb[0].mxu0 %v241
        %v3136 = vpop.f32.mrb[0].mxu0
        %v3137 = vadd.f32 %v2976, %v3136
        %v3138 = vpop.f32.mrb[0].mxu0
        %v3139 = vadd.f32 %v2978, %v3138
        %3140 = vmatprep.mubr.f32.mxu0 %v246
        %3141 = vmatmul.mubr.f32.gmra.mrb[0].mxu0 %v245
        %v3142 = vpop.f32.mrb[0].mxu0
        %v3143 = vadd.f32 %v2982, %v3142
        %v3144 = vpop.f32.mrb[0].mxu0
        %v3145 = vadd.f32 %v2984, %v3144
        %3146 = vmatprep.mubr.f32.mxu0 %v250
        %3147 = vmatmul.mubr.f32.gmra.mrb[0].mxu0 %v249
        %v3148 = vpop.f32.mrb[0].mxu0
        %v3149 = vadd.f32 %v2988, %v3148
        %v3150 = vpop.f32.mrb[0].mxu0
        %v3151 = vadd.f32 %v2990, %v3150
        %3152 = vmatprep.mubr.f32.mxu0 %v254
        %3153 = vmatmul.mubr.f32.gmra.mrb[0].mxu0 %v253
        %v3154 = vpop.f32.mrb[0].mxu0
        %v3155 = vadd.f32 %v2994, %v3154
        %v3156 = vpop.f32.mrb[0].mxu0
        %v3157 = vadd.f32 %v2996, %v3156
        %3158 = vmatprep.mubr.f32.mxu0 %v258
        %3159 = vmatmul.mubr.f32.gmra.mrb[0].mxu0 %v257
        %v3160 = vpop.f32.mrb[0].mxu0
        %v3161 = vadd.f32 %v3000, %v3160
        %v3162 = vpop.f32.mrb[0].mxu0
        %v3163 = vadd.f32 %v3002, %v3162
        %3164 = vmatprep.mubr.f32.mxu0 %v262
        %3165 = vmatmul.mubr.f32.gmra.mrb[0].mxu0 %v261
        %v3166 = vpop.f32.mrb[0].mxu0
        %v3167 = vadd.f32 %v3006, %v3166
        %v3168 = vpop.f32.mrb[0].mxu0
        %v3169 = vadd.f32 %v3008, %v3168
        %3170 = vdwg.mxu0
        %3171 = vmatprep.subr.mxu0 %v274
        %3172 = vmatpush1.msra.mxu0 %v273
        %3173 = vmatprep.subr.mxu0 %v282
        %3174 = vmatpush1.msra.mxu0 %v281
        %3175 = vmatprep.subr.mxu0 %v290
        %3176 = vmatpush1.msra.mxu0 %v289
        %3177 = vmatprep.subr.mxu0 %v298
        %3178 = vmatpush1.msra.mxu0 %v297
        %3179 = vmatprep.subr.mxu0 %v306
        %3180 = vmatpush1.msra.mxu0 %v305
        %3181 = vmatprep.subr.mxu0 %v314
        %3182 = vmatpush1.msra.mxu0 %v313
        %3183 = vmatprep.subr.mxu0 %v322
        %3184 = vmatpush1.msra.mxu0 %v321
        %3185 = vmatprep.subr.mxu0 %v330
        %3186 = vmatpush1.msra.mxu0 %v329
        %3187 = vmatprep.subr.mxu0 %v338
        %3188 = vmatpush1.msra.mxu0 %v337
        %3189 = vmatprep.subr.mxu0 %v346
        %3190 = vmatpush1.msra.mxu0 %v345
        %3191 = vmatprep.subr.mxu0 %v354
        %3192 = vmatpush1.msra.mxu0 %v353
        %3193 = vmatprep.subr.mxu0 %v362
        %3194 = vmatpush1.msra.mxu0 %v361
        %3195 = vmatprep.subr.mxu0 %v370
        %3196 = vmatpush1.msra.mxu0 %v369
        %3197 = vmatprep.subr.mxu0 %v378
        %3198 = vmatpush1.msra.mxu0 %v377
        %3199 = vmatprep.subr.mxu0 %v386
        %3200 = vmatpush1.msra.mxu0 %v385
        %3201 = vmatprep.subr.mxu0 %v394
        %3202 = vmatpush1.msra.mxu0 %v393
        %3203 = vmatprep.subr.mxu0 %v402
        %3204 = vmatpush1.msra.mxu0 %v401
        %3205 = vmatprep.subr.mxu0 %v410
        %3206 = vmatpush1.msra.mxu0 %v409
        %3207 = vmatprep.subr.mxu0 %v418
        %3208 = vmatpush1.msra.mxu0 %v417
        %3209 = vmatprep.subr.mxu0 %v426
        %3210 = vmatpush1.msra.mxu0 %v425
        %3211 = vmatprep.subr.mxu0 %v434
        %3212 = vmatpush1.msra.mxu0 %v433
        %3213 = vmatprep.subr.mxu0 %v442
        %3214 = vmatpush1.msra.mxu0 %v441
        %3215 = vmatprep.subr.mxu0 %v450
        %3216 = vmatpush1.msra.mxu0 %v449
        %3217 = vmatprep.subr.mxu0 %v458
        %3218 = vmatpush1.msra.mxu0 %v457
        %3219 = vmatprep.subr.mxu0 %v466
        %3220 = vmatpush1.msra.mxu0 %v465
        %3221 = vmatprep.subr.mxu0 %v474
        %3222 = vmatpush1.msra.mxu0 %v473
        %3223 = vmatprep.subr.mxu0 %v482
        %3224 = vmatpush1.msra.mxu0 %v481
        %3225 = vmatprep.subr.mxu0 %v490
        %3226 = vmatpush1.msra.mxu0 %v489
        %3227 = vmatprep.subr.mxu0 %v498
        %3228 = vmatpush1.msra.mxu0 %v497
        %3229 = vmatprep.subr.mxu0 %v506
        %3230 = vmatpush1.msra.mxu0 %v505
        %3231 = vmatprep.subr.mxu0 %v514
        %3232 = vmatpush1.msra.mxu0 %v513
        %3233 = vmatprep.subr.mxu0 %v522
        %3234 = vmatpush1.msra.mxu0 %v521
        %3235 = vmatprep.mubr.f32.mxu0 %v200
        %3236 = vmatmul.mubr.f32.gmra.mrb[0].mxu0 %v199
        %v3237 = vpop.f32.mrb[0].mxu0
        %v3238 = vadd.f32 %v2111, %v3237
        %v3239 = vpop.f32.mrb[0].mxu0
        %v3240 = vadd.f32 %v2113, %v3239
        %3241 = vmatprep.mubr.f32.mxu0 %v204
        %3242 = vmatmul.mubr.f32.gmra.mrb[0].mxu0 %v203
        %v3243 = vpop.f32.mrb[0].mxu0
        %v3244 = vadd.f32 %v2117, %v3243
        %v3245 = vpop.f32.mrb[0].mxu0
        %v3246 = vadd.f32 %v2119, %v3245
        %3247 = vmatprep.mubr.f32.mxu0 %v208
        %3248 = vmatmul.mubr.f32.gmra.mrb[0].mxu0 %v207
        %v3249 = vpop.f32.mrb[0].mxu0
        %v3250 = vadd.f32 %v2123, %v3249
        %v3251 = vpop.f32.mrb[0].mxu0
        %v3252 = vadd.f32 %v2125, %v3251
        %3253 = vmatprep.mubr.f32.mxu0 %v212
        %3254 = vmatmul.mubr.f32.gmra.mrb[0].mxu0 %v211
        %v3255 = vpop.f32.mrb[0].mxu0
        %v3256 = vadd.f32 %v2129, %v3255
        %v3257 = vpop.f32.mrb[0].mxu0
        %v3258 = vadd.f32 %v2131, %v3257
        %3259 = vmatprep.mubr.f32.mxu0 %v216
        %3260 = vmatmul.mubr.f32.gmra.mrb[0].mxu0 %v215
        %v3261 = vpop.f32.mrb[0].mxu0
        %v3262 = vadd.f32 %v2135, %v3261
        %v3263 = vpop.f32.mrb[0].mxu0
        %v3264 = vadd.f32 %v2137, %v3263
        %3265 = vmatprep.mubr.f32.mxu0 %v220
        %3266 = vmatmul.mubr.f32.gmra.mrb[0].mxu0 %v219
        %v3267 = vpop.f32.mrb[0].mxu0
        %v3268 = vadd.f32 %v2141, %v3267
        %v3269 = vpop.f32.mrb[0].mxu0
        %v3270 = vadd.f32 %v2143, %v3269
        %3271 = vmatprep.mubr.f32.mxu0 %v224
        %3272 = vmatmul.mubr.f32.gmra.mrb[0].mxu0 %v223
        %v3273 = vpop.f32.mrb[0].mxu0
        %v3274 = vadd.f32 %v2147, %v3273
        %v3275 = vpop.f32.mrb[0].mxu0
        %v3276 = vadd.f32 %v2149, %v3275
        %3277 = vmatprep.mubr.f32.mxu0 %v228
        %3278 = vmatmul.mubr.f32.gmra.mrb[0].mxu0 %v227
        %v3279 = vpop.f32.mrb[0].mxu0
        %v3280 = vadd.f32 %v2153, %v3279
        %v3281 = vpop.f32.mrb[0].mxu0
        %v3282 = vadd.f32 %v2155, %v3281
        %3283 = vmatprep.mubr.f32.mxu0 %v232
        %3284 = vmatmul.mubr.f32.gmra.mrb[0].mxu0 %v231
        %v3285 = vpop.f32.mrb[0].mxu0
        %v3286 = vadd.f32 %v2159, %v3285
        %v3287 = vpop.f32.mrb[0].mxu0
        %v3288 = vadd.f32 %v2161, %v3287
        %3289 = vmatprep.mubr.f32.mxu0 %v236
        %3290 = vmatmul.mubr.f32.gmra.mrb[0].mxu0 %v235
        %v3291 = vpop.f32.mrb[0].mxu0
        %v3292 = vadd.f32 %v2165, %v3291
        %v3293 = vpop.f32.mrb[0].mxu0
        %v3294 = vadd.f32 %v2167, %v3293
        %3295 = vmatprep.mubr.f32.mxu0 %v240
        %3296 = vmatmul.mubr.f32.gmra.mrb[0].mxu0 %v239
        %v3297 = vpop.f32.mrb[0].mxu0
        %v3298 = vadd.f32 %v2171, %v3297
        %v3299 = vpop.f32.mrb[0].mxu0
        %v3300 = vadd.f32 %v2173, %v3299
        %3301 = vmatprep.mubr.f32.mxu0 %v244
        %3302 = vmatmul.mubr.f32.gmra.mrb[0].mxu0 %v243
        %v3303 = vpop.f32.mrb[0].mxu0
        %v3304 = vadd.f32 %v2177, %v3303
        %v3305 = vpop.f32.mrb[0].mxu0
        %v3306 = vadd.f32 %v2179, %v3305
        %3307 = vmatprep.mubr.f32.mxu0 %v248
        %3308 = vmatmul.mubr.f32.gmra.mrb[0].mxu0 %v247
        %v3309 = vpop.f32.mrb[0].mxu0
        %v3310 = vadd.f32 %v2183, %v3309
        %v3311 = vpop.f32.mrb[0].mxu0
        %v3312 = vadd.f32 %v2185, %v3311
        %3313 = vmatprep.mubr.f32.mxu0 %v252
        %3314 = vmatmul.mubr.f32.gmra.mrb[0].mxu0 %v251
        %v3315 = vpop.f32.mrb[0].mxu0
        %v3316 = vadd.f32 %v2189, %v3315
        %v3317 = vpop.f32.mrb[0].mxu0
        %v3318 = vadd.f32 %v2191, %v3317
        %3319 = vmatprep.mubr.f32.mxu0 %v256
        %3320 = vmatmul.mubr.f32.gmra.mrb[0].mxu0 %v255
        %v3321 = vpop.f32.mrb[0].mxu0
        %v3322 = vadd.f32 %v2195, %v3321
        %v3323 = vpop.f32.mrb[0].mxu0
        %v3324 = vadd.f32 %v2197, %v3323
        %3325 = vmatprep.mubr.f32.mxu0 %v260
        %3326 = vmatmul.mubr.f32.gmra.mrb[0].mxu0 %v259
        %v3327 = vpop.f32.mrb[0].mxu0
        %v3328 = vadd.f32 %v2201, %v3327
        %v3329 = vpop.f32.mrb[0].mxu0
        %v3330 = vadd.f32 %v2203, %v3329
        %3331 = vdwg.mxu0
        %3332 = vmatprep.subr.mxu0 %v530
        %3333 = vmatpush1.msra.mxu0 %v529
        %3334 = vmatprep.subr.mxu0 %v538
        %3335 = vmatpush1.msra.mxu0 %v537
        %3336 = vmatprep.subr.mxu0 %v546
        %3337 = vmatpush1.msra.mxu0 %v545
        %3338 = vmatprep.subr.mxu0 %v554
        %3339 = vmatpush1.msra.mxu0 %v553
        %3340 = vmatprep.subr.mxu0 %v562
        %3341 = vmatpush1.msra.mxu0 %v561
        %3342 = vmatprep.subr.mxu0 %v570
        %3343 = vmatpush1.msra.mxu0 %v569
        %3344 = vmatprep.subr.mxu0 %v578
        %3345 = vmatpush1.msra.mxu0 %v577
        %3346 = vmatprep.subr.mxu0 %v586
        %3347 = vmatpush1.msra.mxu0 %v585
        %3348 = vmatprep.subr.mxu0 %v594
        %3349 = vmatpush1.msra.mxu0 %v593
        %3350 = vmatprep.subr.mxu0 %v602
        %3351 = vmatpush1.msra.mxu0 %v601
        %3352 = vmatprep.subr.mxu0 %v610
        %3353 = vmatpush1.msra.mxu0 %v609
        %3354 = vmatprep.subr.mxu0 %v618
        %3355 = vmatpush1.msra.mxu0 %v617
        %3356 = vmatprep.subr.mxu0 %v626
        %3357 = vmatpush1.msra.mxu0 %v625
        %3358 = vmatprep.subr.mxu0 %v634
        %3359 = vmatpush1.msra.mxu0 %v633
        %3360 = vmatprep.subr.mxu0 %v642
        %3361 = vmatpush1.msra.mxu0 %v641
        %3362 = vmatprep.subr.mxu0 %v650
        %3363 = vmatpush1.msra.mxu0 %v649
        %3364 = vmatprep.subr.mxu0 %v658
        %3365 = vmatpush1.msra.mxu0 %v657
        %3366 = vmatprep.subr.mxu0 %v666
        %3367 = vmatpush1.msra.mxu0 %v665
        %3368 = vmatprep.subr.mxu0 %v674
        %3369 = vmatpush1.msra.mxu0 %v673
        %3370 = vmatprep.subr.mxu0 %v682
        %3371 = vmatpush1.msra.mxu0 %v681
        %3372 = vmatprep.subr.mxu0 %v690
        %3373 = vmatpush1.msra.mxu0 %v689
        %3374 = vmatprep.subr.mxu0 %v698
        %3375 = vmatpush1.msra.mxu0 %v697
        %3376 = vmatprep.subr.mxu0 %v706
        %3377 = vmatpush1.msra.mxu0 %v705
        %3378 = vmatprep.subr.mxu0 %v714
        %3379 = vmatpush1.msra.mxu0 %v713
        %3380 = vmatprep.subr.mxu0 %v722
        %3381 = vmatpush1.msra.mxu0 %v721
        %3382 = vmatprep.subr.mxu0 %v730
        %3383 = vmatpush1.msra.mxu0 %v729
        %3384 = vmatprep.subr.mxu0 %v738
        %3385 = vmatpush1.msra.mxu0 %v737
        %3386 = vmatprep.subr.mxu0 %v746
        %3387 = vmatpush1.msra.mxu0 %v745
        %3388 = vmatprep.subr.mxu0 %v754
        %3389 = vmatpush1.msra.mxu0 %v753
        %3390 = vmatprep.subr.mxu0 %v762
        %3391 = vmatpush1.msra.mxu0 %v761
        %3392 = vmatprep.subr.mxu0 %v770
        %3393 = vmatpush1.msra.mxu0 %v769
        %3394 = vmatprep.subr.mxu0 %v778
        %3395 = vmatpush1.msra.mxu0 %v777
        %3396 = vmatprep.mubr.f32.mxu0 %v202
        %3397 = vmatmul.mubr.f32.gmra.mrb[0].mxu0 %v201
        %v3398 = vpop.f32.mrb[0].mxu0
        %v3399 = vadd.f32 %v3238, %v3398
        %v3400 = vpop.f32.mrb[0].mxu0
        %v3401 = vadd.f32 %v3240, %v3400
        %3402 = vmatprep.mubr.f32.mxu0 %v206
        %3403 = vmatmul.mubr.f32.gmra.mrb[0].mxu0 %v205
        %v3404 = vpop.f32.mrb[0].mxu0
        %v3405 = vadd.f32 %v3244, %v3404
        %v3406 = vpop.f32.mrb[0].mxu0
        %v3407 = vadd.f32 %v3246, %v3406
        %3408 = vmatprep.mubr.f32.mxu0 %v210
        %3409 = vmatmul.mubr.f32.gmra.mrb[0].mxu0 %v209
        %v3410 = vpop.f32.mrb[0].mxu0
        %v3411 = vadd.f32 %v3250, %v3410
        %v3412 = vpop.f32.mrb[0].mxu0
        %v3413 = vadd.f32 %v3252, %v3412
        %3414 = vmatprep.mubr.f32.mxu0 %v214
        %3415 = vmatmul.mubr.f32.gmra.mrb[0].mxu0 %v213
        %v3416 = vpop.f32.mrb[0].mxu0
        %v3417 = vadd.f32 %v3256, %v3416
        %v3418 = vpop.f32.mrb[0].mxu0
        %v3419 = vadd.f32 %v3258, %v3418
        %3420 = vmatprep.mubr.f32.mxu0 %v218
        %3421 = vmatmul.mubr.f32.gmra.mrb[0].mxu0 %v217
        %v3422 = vpop.f32.mrb[0].mxu0
        %v3423 = vadd.f32 %v3262, %v3422
        %v3424 = vpop.f32.mrb[0].mxu0
        %v3425 = vadd.f32 %v3264, %v3424
        %3426 = vmatprep.mubr.f32.mxu0 %v222
        %3427 = vmatmul.mubr.f32.gmra.mrb[0].mxu0 %v221
        %v3428 = vpop.f32.mrb[0].mxu0
        %v3429 = vadd.f32 %v3268, %v3428
        %v3430 = vpop.f32.mrb[0].mxu0
        %v3431 = vadd.f32 %v3270, %v3430
        %3432 = vmatprep.mubr.f32.mxu0 %v226
        %3433 = vmatmul.mubr.f32.gmra.mrb[0].mxu0 %v225
        %v3434 = vpop.f32.mrb[0].mxu0
        %v3435 = vadd.f32 %v3274, %v3434
        %v3436 = vpop.f32.mrb[0].mxu0
        %v3437 = vadd.f32 %v3276, %v3436
        %3438 = vmatprep.mubr.f32.mxu0 %v230
        %3439 = vmatmul.mubr.f32.gmra.mrb[0].mxu0 %v229
        %v3440 = vpop.f32.mrb[0].mxu0
        %v3441 = vadd.f32 %v3280, %v3440
        %v3442 = vpop.f32.mrb[0].mxu0
        %v3443 = vadd.f32 %v3282, %v3442
        %3444 = vmatprep.mubr.f32.mxu0 %v234
        %3445 = vmatmul.mubr.f32.gmra.mrb[0].mxu0 %v233
        %v3446 = vpop.f32.mrb[0].mxu0
        %v3447 = vadd.f32 %v3286, %v3446
        %v3448 = vpop.f32.mrb[0].mxu0
        %v3449 = vadd.f32 %v3288, %v3448
        %3450 = vmatprep.mubr.f32.mxu0 %v238
        %3451 = vmatmul.mubr.f32.gmra.mrb[0].mxu0 %v237
        %v3452 = vpop.f32.mrb[0].mxu0
        %v3453 = vadd.f32 %v3292, %v3452
        %v3454 = vpop.f32.mrb[0].mxu0
        %v3455 = vadd.f32 %v3294, %v3454
        %3456 = vmatprep.mubr.f32.mxu0 %v242
        %3457 = vmatmul.mubr.f32.gmra.mrb[0].mxu0 %v241
        %v3458 = vpop.f32.mrb[0].mxu0
        %v3459 = vadd.f32 %v3298, %v3458
        %v3460 = vpop.f32.mrb[0].mxu0
        %v3461 = vadd.f32 %v3300, %v3460
        %3462 = vmatprep.mubr.f32.mxu0 %v246
        %3463 = vmatmul.mubr.f32.gmra.mrb[0].mxu0 %v245
        %v3464 = vpop.f32.mrb[0].mxu0
        %v3465 = vadd.f32 %v3304, %v3464
        %v3466 = vpop.f32.mrb[0].mxu0
        %v3467 = vadd.f32 %v3306, %v3466
        %3468 = vmatprep.mubr.f32.mxu0 %v250
        %3469 = vmatmul.mubr.f32.gmra.mrb[0].mxu0 %v249
        %v3470 = vpop.f32.mrb[0].mxu0
        %v3471 = vadd.f32 %v3310, %v3470
        %v3472 = vpop.f32.mrb[0].mxu0
        %v3473 = vadd.f32 %v3312, %v3472
        %3474 = vmatprep.mubr.f32.mxu0 %v254
        %3475 = vmatmul.mubr.f32.gmra.mrb[0].mxu0 %v253
        %v3476 = vpop.f32.mrb[0].mxu0
        %v3477 = vadd.f32 %v3316, %v3476
        %v3478 = vpop.f32.mrb[0].mxu0
        %v3479 = vadd.f32 %v3318, %v3478
        %3480 = vmatprep.mubr.f32.mxu0 %v258
        %3481 = vmatmul.mubr.f32.gmra.mrb[0].mxu0 %v257
        %v3482 = vpop.f32.mrb[0].mxu0
        %v3483 = vadd.f32 %v3322, %v3482
        %v3484 = vpop.f32.mrb[0].mxu0
        %v3485 = vadd.f32 %v3324, %v3484
        %3486 = vmatprep.mubr.f32.mxu0 %v262
        %3487 = vmatmul.mubr.f32.gmra.mrb[0].mxu0 %v261
        %v3488 = vpop.f32.mrb[0].mxu0
        %v3489 = vadd.f32 %v3328, %v3488
        %v3490 = vpop.f32.mrb[0].mxu0
        %v3491 = vadd.f32 %v3330, %v3490
        %3492 = vdwg.mxu0
        %3493 = vmatprep.subr.mxu0 %v276
        %3494 = vmatpush1.msra.mxu0 %v275
        %3495 = vmatprep.subr.mxu0 %v284
        %3496 = vmatpush1.msra.mxu0 %v283
        %3497 = vmatprep.subr.mxu0 %v292
        %3498 = vmatpush1.msra.mxu0 %v291
        %3499 = vmatprep.subr.mxu0 %v300
        %3500 = vmatpush1.msra.mxu0 %v299
        %3501 = vmatprep.subr.mxu0 %v308
        %3502 = vmatpush1.msra.mxu0 %v307
        %3503 = vmatprep.subr.mxu0 %v316
        %3504 = vmatpush1.msra.mxu0 %v315
        %3505 = vmatprep.subr.mxu0 %v324
        %3506 = vmatpush1.msra.mxu0 %v323
        %3507 = vmatprep.subr.mxu0 %v332
        %3508 = vmatpush1.msra.mxu0 %v331
        %3509 = vmatprep.subr.mxu0 %v340
        %3510 = vmatpush1.msra.mxu0 %v339
        %3511 = vmatprep.subr.mxu0 %v348
        %3512 = vmatpush1.msra.mxu0 %v347
        %3513 = vmatprep.subr.mxu0 %v356
        %3514 = vmatpush1.msra.mxu0 %v355
        %3515 = vmatprep.subr.mxu0 %v364
        %3516 = vmatpush1.msra.mxu0 %v363
        %3517 = vmatprep.subr.mxu0 %v372
        %3518 = vmatpush1.msra.mxu0 %v371
        %3519 = vmatprep.subr.mxu0 %v380
        %3520 = vmatpush1.msra.mxu0 %v379
        %3521 = vmatprep.subr.mxu0 %v388
        %3522 = vmatpush1.msra.mxu0 %v387
        %3523 = vmatprep.subr.mxu0 %v396
        %3524 = vmatpush1.msra.mxu0 %v395
        %3525 = vmatprep.subr.mxu0 %v404
        %3526 = vmatpush1.msra.mxu0 %v403
        %3527 = vmatprep.subr.mxu0 %v412
        %3528 = vmatpush1.msra.mxu0 %v411
        %3529 = vmatprep.subr.mxu0 %v420
        %3530 = vmatpush1.msra.mxu0 %v419
        %3531 = vmatprep.subr.mxu0 %v428
        %3532 = vmatpush1.msra.mxu0 %v427
        %3533 = vmatprep.subr.mxu0 %v436
        %3534 = vmatpush1.msra.mxu0 %v435
        %3535 = vmatprep.subr.mxu0 %v444
        %3536 = vmatpush1.msra.mxu0 %v443
        %3537 = vmatprep.subr.mxu0 %v452
        %3538 = vmatpush1.msra.mxu0 %v451
        %3539 = vmatprep.subr.mxu0 %v460
        %3540 = vmatpush1.msra.mxu0 %v459
        %3541 = vmatprep.subr.mxu0 %v468
        %3542 = vmatpush1.msra.mxu0 %v467
        %3543 = vmatprep.subr.mxu0 %v476
        %3544 = vmatpush1.msra.mxu0 %v475
        %3545 = vmatprep.subr.mxu0 %v484
        %3546 = vmatpush1.msra.mxu0 %v483
        %3547 = vmatprep.subr.mxu0 %v492
        %3548 = vmatpush1.msra.mxu0 %v491
        %3549 = vmatprep.subr.mxu0 %v500
        %3550 = vmatpush1.msra.mxu0 %v499
        %3551 = vmatprep.subr.mxu0 %v508
        %3552 = vmatpush1.msra.mxu0 %v507
        %3553 = vmatprep.subr.mxu0 %v516
        %3554 = vmatpush1.msra.mxu0 %v515
        %3555 = vmatprep.subr.mxu0 %v524
        %3556 = vmatpush1.msra.mxu0 %v523
        %3557 = vmatprep.mubr.f32.mxu0 %v200
        %3558 = vmatmul.mubr.f32.gmra.mrb[0].mxu0 %v199
        %v3559 = vpop.f32.mrb[0].mxu0
        %v3560 = vadd.f32 %v2433, %v3559
        %v3561 = vpop.f32.mrb[0].mxu0
        %v3562 = vadd.f32 %v2435, %v3561
        %3563 = vmatprep.mubr.f32.mxu0 %v204
        %3564 = vmatmul.mubr.f32.gmra.mrb[0].mxu0 %v203
        %v3565 = vpop.f32.mrb[0].mxu0
        %v3566 = vadd.f32 %v2439, %v3565
        %v3567 = vpop.f32.mrb[0].mxu0
        %v3568 = vadd.f32 %v2441, %v3567
        %3569 = vmatprep.mubr.f32.mxu0 %v208
        %3570 = vmatmul.mubr.f32.gmra.mrb[0].mxu0 %v207
        %v3571 = vpop.f32.mrb[0].mxu0
        %v3572 = vadd.f32 %v2445, %v3571
        %v3573 = vpop.f32.mrb[0].mxu0
        %v3574 = vadd.f32 %v2447, %v3573
        %3575 = vmatprep.mubr.f32.mxu0 %v212
        %3576 = vmatmul.mubr.f32.gmra.mrb[0].mxu0 %v211
        %v3577 = vpop.f32.mrb[0].mxu0
        %v3578 = vadd.f32 %v2451, %v3577
        %v3579 = vpop.f32.mrb[0].mxu0
        %v3580 = vadd.f32 %v2453, %v3579
        %3581 = vmatprep.mubr.f32.mxu0 %v216
        %3582 = vmatmul.mubr.f32.gmra.mrb[0].mxu0 %v215
        %v3583 = vpop.f32.mrb[0].mxu0
        %v3584 = vadd.f32 %v2457, %v3583
        %v3585 = vpop.f32.mrb[0].mxu0
        %v3586 = vadd.f32 %v2459, %v3585
        %3587 = vmatprep.mubr.f32.mxu0 %v220
        %3588 = vmatmul.mubr.f32.gmra.mrb[0].mxu0 %v219
        %v3589 = vpop.f32.mrb[0].mxu0
        %v3590 = vadd.f32 %v2463, %v3589
        %v3591 = vpop.f32.mrb[0].mxu0
        %v3592 = vadd.f32 %v2465, %v3591
        %3593 = vmatprep.mubr.f32.mxu0 %v224
        %3594 = vmatmul.mubr.f32.gmra.mrb[0].mxu0 %v223
        %v3595 = vpop.f32.mrb[0].mxu0
        %v3596 = vadd.f32 %v2469, %v3595
        %v3597 = vpop.f32.mrb[0].mxu0
        %v3598 = vadd.f32 %v2471, %v3597
        %3599 = vmatprep.mubr.f32.mxu0 %v228
        %3600 = vmatmul.mubr.f32.gmra.mrb[0].mxu0 %v227
        %v3601 = vpop.f32.mrb[0].mxu0
        %v3602 = vadd.f32 %v2475, %v3601
        %v3603 = vpop.f32.mrb[0].mxu0
        %v3604 = vadd.f32 %v2477, %v3603
        %3605 = vmatprep.mubr.f32.mxu0 %v232
        %3606 = vmatmul.mubr.f32.gmra.mrb[0].mxu0 %v231
        %v3607 = vpop.f32.mrb[0].mxu0
        %v3608 = vadd.f32 %v2481, %v3607
        %v3609 = vpop.f32.mrb[0].mxu0
        %v3610 = vadd.f32 %v2483, %v3609
        %3611 = vmatprep.mubr.f32.mxu0 %v236
        %3612 = vmatmul.mubr.f32.gmra.mrb[0].mxu0 %v235
        %v3613 = vpop.f32.mrb[0].mxu0
        %v3614 = vadd.f32 %v2487, %v3613
        %v3615 = vpop.f32.mrb[0].mxu0
        %v3616 = vadd.f32 %v2489, %v3615
        %3617 = vmatprep.mubr.f32.mxu0 %v240
        %3618 = vmatmul.mubr.f32.gmra.mrb[0].mxu0 %v239
        %v3619 = vpop.f32.mrb[0].mxu0
        %v3620 = vadd.f32 %v2493, %v3619
        %v3621 = vpop.f32.mrb[0].mxu0
        %v3622 = vadd.f32 %v2495, %v3621
        %3623 = vmatprep.mubr.f32.mxu0 %v244
        %3624 = vmatmul.mubr.f32.gmra.mrb[0].mxu0 %v243
        %v3625 = vpop.f32.mrb[0].mxu0
        %v3626 = vadd.f32 %v2499, %v3625
        %v3627 = vpop.f32.mrb[0].mxu0
        %v3628 = vadd.f32 %v2501, %v3627
        %3629 = vmatprep.mubr.f32.mxu0 %v248
        %3630 = vmatmul.mubr.f32.gmra.mrb[0].mxu0 %v247
        %v3631 = vpop.f32.mrb[0].mxu0
        %v3632 = vadd.f32 %v2505, %v3631
        %v3633 = vpop.f32.mrb[0].mxu0
        %v3634 = vadd.f32 %v2507, %v3633
        %3635 = vmatprep.mubr.f32.mxu0 %v252
        %3636 = vmatmul.mubr.f32.gmra.mrb[0].mxu0 %v251
        %v3637 = vpop.f32.mrb[0].mxu0
        %v3638 = vadd.f32 %v2511, %v3637
        %v3639 = vpop.f32.mrb[0].mxu0
        %v3640 = vadd.f32 %v2513, %v3639
        %3641 = vmatprep.mubr.f32.mxu0 %v256
        %3642 = vmatmul.mubr.f32.gmra.mrb[0].mxu0 %v255
        %v3643 = vpop.f32.mrb[0].mxu0
        %v3644 = vadd.f32 %v2517, %v3643
        %v3645 = vpop.f32.mrb[0].mxu0
        %v3646 = vadd.f32 %v2519, %v3645
        %3647 = vmatprep.mubr.f32.mxu0 %v260
        %3648 = vmatmul.mubr.f32.gmra.mrb[0].mxu0 %v259
        %v3649 = vpop.f32.mrb[0].mxu0
        %v3650 = vadd.f32 %v2523, %v3649
        %v3651 = vpop.f32.mrb[0].mxu0
        %v3652 = vadd.f32 %v2525, %v3651
        %3653 = vdwg.mxu0
        %3654 = vmatprep.subr.mxu0 %v532
        %3655 = vmatpush1.msra.mxu0 %v531
        %3656 = vmatprep.subr.mxu0 %v540
        %3657 = vmatpush1.msra.mxu0 %v539
        %3658 = vmatprep.subr.mxu0 %v548
        %3659 = vmatpush1.msra.mxu0 %v547
        %3660 = vmatprep.subr.mxu0 %v556
        %3661 = vmatpush1.msra.mxu0 %v555
        %3662 = vmatprep.subr.mxu0 %v564
        %3663 = vmatpush1.msra.mxu0 %v563
        %3664 = vmatprep.subr.mxu0 %v572
        %3665 = vmatpush1.msra.mxu0 %v571
        %3666 = vmatprep.subr.mxu0 %v580
        %3667 = vmatpush1.msra.mxu0 %v579
        %3668 = vmatprep.subr.mxu0 %v588
        %3669 = vmatpush1.msra.mxu0 %v587
        %3670 = vmatprep.subr.mxu0 %v596
        %3671 = vmatpush1.msra.mxu0 %v595
        %3672 = vmatprep.subr.mxu0 %v604
        %3673 = vmatpush1.msra.mxu0 %v603
        %3674 = vmatprep.subr.mxu0 %v612
        %3675 = vmatpush1.msra.mxu0 %v611
        %3676 = vmatprep.subr.mxu0 %v620
        %3677 = vmatpush1.msra.mxu0 %v619
        %3678 = vmatprep.subr.mxu0 %v628
        %3679 = vmatpush1.msra.mxu0 %v627
        %3680 = vmatprep.subr.mxu0 %v636
        %3681 = vmatpush1.msra.mxu0 %v635
        %3682 = vmatprep.subr.mxu0 %v644
        %3683 = vmatpush1.msra.mxu0 %v643
        %3684 = vmatprep.subr.mxu0 %v652
        %3685 = vmatpush1.msra.mxu0 %v651
        %3686 = vmatprep.subr.mxu0 %v660
        %3687 = vmatpush1.msra.mxu0 %v659
        %3688 = vmatprep.subr.mxu0 %v668
        %3689 = vmatpush1.msra.mxu0 %v667
        %3690 = vmatprep.subr.mxu0 %v676
        %3691 = vmatpush1.msra.mxu0 %v675
        %3692 = vmatprep.subr.mxu0 %v684
        %3693 = vmatpush1.msra.mxu0 %v683
        %3694 = vmatprep.subr.mxu0 %v692
        %3695 = vmatpush1.msra.mxu0 %v691
        %3696 = vmatprep.subr.mxu0 %v700
        %3697 = vmatpush1.msra.mxu0 %v699
        %3698 = vmatprep.subr.mxu0 %v708
        %3699 = vmatpush1.msra.mxu0 %v707
        %3700 = vmatprep.subr.mxu0 %v716
        %3701 = vmatpush1.msra.mxu0 %v715
        %3702 = vmatprep.subr.mxu0 %v724
        %3703 = vmatpush1.msra.mxu0 %v723
        %3704 = vmatprep.subr.mxu0 %v732
        %3705 = vmatpush1.msra.mxu0 %v731
        %3706 = vmatprep.subr.mxu0 %v740
        %3707 = vmatpush1.msra.mxu0 %v739
        %3708 = vmatprep.subr.mxu0 %v748
        %3709 = vmatpush1.msra.mxu0 %v747
        %3710 = vmatprep.subr.mxu0 %v756
        %3711 = vmatpush1.msra.mxu0 %v755
        %3712 = vmatprep.subr.mxu0 %v764
        %3713 = vmatpush1.msra.mxu0 %v763
        %3714 = vmatprep.subr.mxu0 %v772
        %3715 = vmatpush1.msra.mxu0 %v771
        %3716 = vmatprep.subr.mxu0 %v780
        %3717 = vmatpush1.msra.mxu0 %v779
        %3718 = vmatprep.mubr.f32.mxu0 %v202
        %3719 = vmatmul.mubr.f32.gmra.mrb[0].mxu0 %v201
        %v3720 = vpop.f32.mrb[0].mxu0
        %v3721 = vadd.f32 %v3560, %v3720
        %v3722 = vpop.f32.mrb[0].mxu0
        %v3723 = vadd.f32 %v3562, %v3722
        %3724 = vmatprep.mubr.f32.mxu0 %v206
        %3725 = vmatmul.mubr.f32.gmra.mrb[0].mxu0 %v205
        %v3726 = vpop.f32.mrb[0].mxu0
        %v3727 = vadd.f32 %v3566, %v3726
        %v3728 = vpop.f32.mrb[0].mxu0
        %v3729 = vadd.f32 %v3568, %v3728
        %3730 = vmatprep.mubr.f32.mxu0 %v210
        %3731 = vmatmul.mubr.f32.gmra.mrb[0].mxu0 %v209
        %v3732 = vpop.f32.mrb[0].mxu0
        %v3733 = vadd.f32 %v3572, %v3732
        %v3734 = vpop.f32.mrb[0].mxu0
        %v3735 = vadd.f32 %v3574, %v3734
        %3736 = vmatprep.mubr.f32.mxu0 %v214
        %3737 = vmatmul.mubr.f32.gmra.mrb[0].mxu0 %v213
        %v3738 = vpop.f32.mrb[0].mxu0
        %v3739 = vadd.f32 %v3578, %v3738
        %v3740 = vpop.f32.mrb[0].mxu0
        %v3741 = vadd.f32 %v3580, %v3740
        %3742 = vmatprep.mubr.f32.mxu0 %v218
        %3743 = vmatmul.mubr.f32.gmra.mrb[0].mxu0 %v217
        %v3744 = vpop.f32.mrb[0].mxu0
        %v3745 = vadd.f32 %v3584, %v3744
        %v3746 = vpop.f32.mrb[0].mxu0
        %v3747 = vadd.f32 %v3586, %v3746
        %3748 = vmatprep.mubr.f32.mxu0 %v222
        %3749 = vmatmul.mubr.f32.gmra.mrb[0].mxu0 %v221
        %v3750 = vpop.f32.mrb[0].mxu0
        %v3751 = vadd.f32 %v3590, %v3750
        %v3752 = vpop.f32.mrb[0].mxu0
        %v3753 = vadd.f32 %v3592, %v3752
        %3754 = vmatprep.mubr.f32.mxu0 %v226
        %3755 = vmatmul.mubr.f32.gmra.mrb[0].mxu0 %v225
        %v3756 = vpop.f32.mrb[0].mxu0
        %v3757 = vadd.f32 %v3596, %v3756
        %v3758 = vpop.f32.mrb[0].mxu0
        %v3759 = vadd.f32 %v3598, %v3758
        %3760 = vmatprep.mubr.f32.mxu0 %v230
        %3761 = vmatmul.mubr.f32.gmra.mrb[0].mxu0 %v229
        %v3762 = vpop.f32.mrb[0].mxu0
        %v3763 = vadd.f32 %v3602, %v3762
        %v3764 = vpop.f32.mrb[0].mxu0
        %v3765 = vadd.f32 %v3604, %v3764
        %3766 = vmatprep.mubr.f32.mxu0 %v234
        %3767 = vmatmul.mubr.f32.gmra.mrb[0].mxu0 %v233
        %v3768 = vpop.f32.mrb[0].mxu0
        %v3769 = vadd.f32 %v3608, %v3768
        %v3770 = vpop.f32.mrb[0].mxu0
        %v3771 = vadd.f32 %v3610, %v3770
        %3772 = vmatprep.mubr.f32.mxu0 %v238
        %3773 = vmatmul.mubr.f32.gmra.mrb[0].mxu0 %v237
        %v3774 = vpop.f32.mrb[0].mxu0
        %v3775 = vadd.f32 %v3614, %v3774
        %v3776 = vpop.f32.mrb[0].mxu0
        %v3777 = vadd.f32 %v3616, %v3776
        %3778 = vmatprep.mubr.f32.mxu0 %v242
        %3779 = vmatmul.mubr.f32.gmra.mrb[0].mxu0 %v241
        %v3780 = vpop.f32.mrb[0].mxu0
        %v3781 = vadd.f32 %v3620, %v3780
        %v3782 = vpop.f32.mrb[0].mxu0
        %v3783 = vadd.f32 %v3622, %v3782
        %3784 = vmatprep.mubr.f32.mxu0 %v246
        %3785 = vmatmul.mubr.f32.gmra.mrb[0].mxu0 %v245
        %v3786 = vpop.f32.mrb[0].mxu0
        %v3787 = vadd.f32 %v3626, %v3786
        %v3788 = vpop.f32.mrb[0].mxu0
        %v3789 = vadd.f32 %v3628, %v3788
        %3790 = vmatprep.mubr.f32.mxu0 %v250
        %3791 = vmatmul.mubr.f32.gmra.mrb[0].mxu0 %v249
        %v3792 = vpop.f32.mrb[0].mxu0
        %v3793 = vadd.f32 %v3632, %v3792
        %v3794 = vpop.f32.mrb[0].mxu0
        %v3795 = vadd.f32 %v3634, %v3794
        %3796 = vmatprep.mubr.f32.mxu0 %v254
        %3797 = vmatmul.mubr.f32.gmra.mrb[0].mxu0 %v253
        %v3798 = vpop.f32.mrb[0].mxu0
        %v3799 = vadd.f32 %v3638, %v3798
        %v3800 = vpop.f32.mrb[0].mxu0
        %v3801 = vadd.f32 %v3640, %v3800
        %3802 = vmatprep.mubr.f32.mxu0 %v258
        %3803 = vmatmul.mubr.f32.gmra.mrb[0].mxu0 %v257
        %v3804 = vpop.f32.mrb[0].mxu0
        %v3805 = vadd.f32 %v3644, %v3804
        %v3806 = vpop.f32.mrb[0].mxu0
        %v3807 = vadd.f32 %v3646, %v3806
        %3808 = vmatprep.mubr.f32.mxu0 %v262
        %3809 = vmatmul.mubr.f32.gmra.mrb[0].mxu0 %v261
        %v3810 = vpop.f32.mrb[0].mxu0
        %v3811 = vadd.f32 %v3650, %v3810
        %v3812 = vpop.f32.mrb[0].mxu0
        %v3813 = vadd.f32 %v3652, %v3812
        %3814 = vdwg.mxu0
        %3815 = vmatprep.subr.mxu0 %v278
        %3816 = vmatpush1.msra.mxu0 %v277
        %3817 = vmatprep.subr.mxu0 %v286
        %3818 = vmatpush1.msra.mxu0 %v285
        %3819 = vmatprep.subr.mxu0 %v294
        %3820 = vmatpush1.msra.mxu0 %v293
        %3821 = vmatprep.subr.mxu0 %v302
        %3822 = vmatpush1.msra.mxu0 %v301
        %3823 = vmatprep.subr.mxu0 %v310
        %3824 = vmatpush1.msra.mxu0 %v309
        %3825 = vmatprep.subr.mxu0 %v318
        %3826 = vmatpush1.msra.mxu0 %v317
        %3827 = vmatprep.subr.mxu0 %v326
        %3828 = vmatpush1.msra.mxu0 %v325
        %3829 = vmatprep.subr.mxu0 %v334
        %3830 = vmatpush1.msra.mxu0 %v333
        %3831 = vmatprep.subr.mxu0 %v342
        %3832 = vmatpush1.msra.mxu0 %v341
        %3833 = vmatprep.subr.mxu0 %v350
        %3834 = vmatpush1.msra.mxu0 %v349
        %3835 = vmatprep.subr.mxu0 %v358
        %3836 = vmatpush1.msra.mxu0 %v357
        %3837 = vmatprep.subr.mxu0 %v366
        %3838 = vmatpush1.msra.mxu0 %v365
        %3839 = vmatprep.subr.mxu0 %v374
        %3840 = vmatpush1.msra.mxu0 %v373
        %3841 = vmatprep.subr.mxu0 %v382
        %3842 = vmatpush1.msra.mxu0 %v381
        %3843 = vmatprep.subr.mxu0 %v390
        %3844 = vmatpush1.msra.mxu0 %v389
        %3845 = vmatprep.subr.mxu0 %v398
        %3846 = vmatpush1.msra.mxu0 %v397
        %3847 = vmatprep.subr.mxu0 %v406
        %3848 = vmatpush1.msra.mxu0 %v405
        %3849 = vmatprep.subr.mxu0 %v414
        %3850 = vmatpush1.msra.mxu0 %v413
        %3851 = vmatprep.subr.mxu0 %v422
        %3852 = vmatpush1.msra.mxu0 %v421
        %3853 = vmatprep.subr.mxu0 %v430
        %3854 = vmatpush1.msra.mxu0 %v429
        %3855 = vmatprep.subr.mxu0 %v438
        %3856 = vmatpush1.msra.mxu0 %v437
        %3857 = vmatprep.subr.mxu0 %v446
        %3858 = vmatpush1.msra.mxu0 %v445
        %3859 = vmatprep.subr.mxu0 %v454
        %3860 = vmatpush1.msra.mxu0 %v453
        %3861 = vmatprep.subr.mxu0 %v462
        %3862 = vmatpush1.msra.mxu0 %v461
        %3863 = vmatprep.subr.mxu0 %v470
        %3864 = vmatpush1.msra.mxu0 %v469
        %3865 = vmatprep.subr.mxu0 %v478
        %3866 = vmatpush1.msra.mxu0 %v477
        %3867 = vmatprep.subr.mxu0 %v486
        %3868 = vmatpush1.msra.mxu0 %v485
        %3869 = vmatprep.subr.mxu0 %v494
        %3870 = vmatpush1.msra.mxu0 %v493
        %3871 = vmatprep.subr.mxu0 %v502
        %3872 = vmatpush1.msra.mxu0 %v501
        %3873 = vmatprep.subr.mxu0 %v510
        %3874 = vmatpush1.msra.mxu0 %v509
        %3875 = vmatprep.subr.mxu0 %v518
        %3876 = vmatpush1.msra.mxu0 %v517
        %3877 = vmatprep.subr.mxu0 %v526
        %3878 = vmatpush1.msra.mxu0 %v525
        %3879 = vmatprep.mubr.f32.mxu0 %v200
        %3880 = vmatmul.mubr.f32.gmra.mrb[0].mxu0 %v199
        %v3881 = vpop.f32.mrb[0].mxu0
        %v3882 = vadd.f32 %v2755, %v3881
        %v3883 = vpop.f32.mrb[0].mxu0
        %v3884 = vadd.f32 %v2757, %v3883
        %3885 = vmatprep.mubr.f32.mxu0 %v204
        %3886 = vmatmul.mubr.f32.gmra.mrb[0].mxu0 %v203
        %v3887 = vpop.f32.mrb[0].mxu0
        %v3888 = vadd.f32 %v2761, %v3887
        %v3889 = vpop.f32.mrb[0].mxu0
        %v3890 = vadd.f32 %v2763, %v3889
        %3891 = vmatprep.mubr.f32.mxu0 %v208
        %3892 = vmatmul.mubr.f32.gmra.mrb[0].mxu0 %v207
        %v3893 = vpop.f32.mrb[0].mxu0
        %v3894 = vadd.f32 %v2767, %v3893
        %v3895 = vpop.f32.mrb[0].mxu0
        %v3896 = vadd.f32 %v2769, %v3895
        %3897 = vmatprep.mubr.f32.mxu0 %v212
        %3898 = vmatmul.mubr.f32.gmra.mrb[0].mxu0 %v211
        %v3899 = vpop.f32.mrb[0].mxu0
        %v3900 = vadd.f32 %v2773, %v3899
        %v3901 = vpop.f32.mrb[0].mxu0
        %v3902 = vadd.f32 %v2775, %v3901
        %3903 = vmatprep.mubr.f32.mxu0 %v216
        %3904 = vmatmul.mubr.f32.gmra.mrb[0].mxu0 %v215
        %v3905 = vpop.f32.mrb[0].mxu0
        %v3906 = vadd.f32 %v2779, %v3905
        %v3907 = vpop.f32.mrb[0].mxu0
        %v3908 = vadd.f32 %v2781, %v3907
        %3909 = vmatprep.mubr.f32.mxu0 %v220
        %3910 = vmatmul.mubr.f32.gmra.mrb[0].mxu0 %v219
        %v3911 = vpop.f32.mrb[0].mxu0
        %v3912 = vadd.f32 %v2785, %v3911
        %v3913 = vpop.f32.mrb[0].mxu0
        %v3914 = vadd.f32 %v2787, %v3913
        %3915 = vmatprep.mubr.f32.mxu0 %v224
        %3916 = vmatmul.mubr.f32.gmra.mrb[0].mxu0 %v223
        %v3917 = vpop.f32.mrb[0].mxu0
        %v3918 = vadd.f32 %v2791, %v3917
        %v3919 = vpop.f32.mrb[0].mxu0
        %v3920 = vadd.f32 %v2793, %v3919
        %3921 = vmatprep.mubr.f32.mxu0 %v228
        %3922 = vmatmul.mubr.f32.gmra.mrb[0].mxu0 %v227
        %v3923 = vpop.f32.mrb[0].mxu0
        %v3924 = vadd.f32 %v2797, %v3923
        %v3925 = vpop.f32.mrb[0].mxu0
        %v3926 = vadd.f32 %v2799, %v3925
        %3927 = vmatprep.mubr.f32.mxu0 %v232
        %3928 = vmatmul.mubr.f32.gmra.mrb[0].mxu0 %v231
        %v3929 = vpop.f32.mrb[0].mxu0
        %v3930 = vadd.f32 %v2803, %v3929
        %v3931 = vpop.f32.mrb[0].mxu0
        %v3932 = vadd.f32 %v2805, %v3931
        %3933 = vmatprep.mubr.f32.mxu0 %v236
        %3934 = vmatmul.mubr.f32.gmra.mrb[0].mxu0 %v235
        %v3935 = vpop.f32.mrb[0].mxu0
        %v3936 = vadd.f32 %v2809, %v3935
        %v3937 = vpop.f32.mrb[0].mxu0
        %v3938 = vadd.f32 %v2811, %v3937
        %3939 = vmatprep.mubr.f32.mxu0 %v240
        %3940 = vmatmul.mubr.f32.gmra.mrb[0].mxu0 %v239
        %v3941 = vpop.f32.mrb[0].mxu0
        %v3942 = vadd.f32 %v2815, %v3941
        %v3943 = vpop.f32.mrb[0].mxu0
        %v3944 = vadd.f32 %v2817, %v3943
        %3945 = vmatprep.mubr.f32.mxu0 %v244
        %3946 = vmatmul.mubr.f32.gmra.mrb[0].mxu0 %v243
        %v3947 = vpop.f32.mrb[0].mxu0
        %v3948 = vadd.f32 %v2821, %v3947
        %v3949 = vpop.f32.mrb[0].mxu0
        %v3950 = vadd.f32 %v2823, %v3949
        %3951 = vmatprep.mubr.f32.mxu0 %v248
        %3952 = vmatmul.mubr.f32.gmra.mrb[0].mxu0 %v247
        %v3953 = vpop.f32.mrb[0].mxu0
        %v3954 = vadd.f32 %v2827, %v3953
        %v3955 = vpop.f32.mrb[0].mxu0
        %v3956 = vadd.f32 %v2829, %v3955
        %3957 = vmatprep.mubr.f32.mxu0 %v252
        %3958 = vmatmul.mubr.f32.gmra.mrb[0].mxu0 %v251
        %v3959 = vpop.f32.mrb[0].mxu0
        %v3960 = vadd.f32 %v2833, %v3959
        %v3961 = vpop.f32.mrb[0].mxu0
        %v3962 = vadd.f32 %v2835, %v3961
        %3963 = vmatprep.mubr.f32.mxu0 %v256
        %3964 = vmatmul.mubr.f32.gmra.mrb[0].mxu0 %v255
        %v3965 = vpop.f32.mrb[0].mxu0
        %v3966 = vadd.f32 %v2839, %v3965
        %v3967 = vpop.f32.mrb[0].mxu0
        %v3968 = vadd.f32 %v2841, %v3967
        %3969 = vmatprep.mubr.f32.mxu0 %v260
        %3970 = vmatmul.mubr.f32.gmra.mrb[0].mxu0 %v259
        %v3971 = vpop.f32.mrb[0].mxu0
        %v3972 = vadd.f32 %v2845, %v3971
        %v3973 = vpop.f32.mrb[0].mxu0
        %v3974 = vadd.f32 %v2847, %v3973
        %3975 = vdwg.mxu0
        %3976 = vmatprep.subr.mxu0 %v534
        %3977 = vmatpush1.msra.mxu0 %v533
        %3978 = vmatprep.subr.mxu0 %v542
        %3979 = vmatpush1.msra.mxu0 %v541
        %3980 = vmatprep.subr.mxu0 %v550
        %3981 = vmatpush1.msra.mxu0 %v549
        %3982 = vmatprep.subr.mxu0 %v558
        %3983 = vmatpush1.msra.mxu0 %v557
        %3984 = vmatprep.subr.mxu0 %v566
        %3985 = vmatpush1.msra.mxu0 %v565
        %3986 = vmatprep.subr.mxu0 %v574
        %3987 = vmatpush1.msra.mxu0 %v573
        %3988 = vmatprep.subr.mxu0 %v582
        %3989 = vmatpush1.msra.mxu0 %v581
        %3990 = vmatprep.subr.mxu0 %v590
        %3991 = vmatpush1.msra.mxu0 %v589
        %3992 = vmatprep.subr.mxu0 %v598
        %3993 = vmatpush1.msra.mxu0 %v597
        %3994 = vmatprep.subr.mxu0 %v606
        %3995 = vmatpush1.msra.mxu0 %v605
        %3996 = vmatprep.subr.mxu0 %v614
        %3997 = vmatpush1.msra.mxu0 %v613
        %3998 = vmatprep.subr.mxu0 %v622
        %3999 = vmatpush1.msra.mxu0 %v621
        %4000 = vmatprep.subr.mxu0 %v630
        %4001 = vmatpush1.msra.mxu0 %v629
        %4002 = vmatprep.subr.mxu0 %v638
        %4003 = vmatpush1.msra.mxu0 %v637
        %4004 = vmatprep.subr.mxu0 %v646
        %4005 = vmatpush1.msra.mxu0 %v645
        %4006 = vmatprep.subr.mxu0 %v654
        %4007 = vmatpush1.msra.mxu0 %v653
        %4008 = vmatprep.subr.mxu0 %v662
        %4009 = vmatpush1.msra.mxu0 %v661
        %4010 = vmatprep.subr.mxu0 %v670
        %4011 = vmatpush1.msra.mxu0 %v669
        %4012 = vmatprep.subr.mxu0 %v678
        %4013 = vmatpush1.msra.mxu0 %v677
        %4014 = vmatprep.subr.mxu0 %v686
        %4015 = vmatpush1.msra.mxu0 %v685
        %4016 = vmatprep.subr.mxu0 %v694
        %4017 = vmatpush1.msra.mxu0 %v693
        %4018 = vmatprep.subr.mxu0 %v702
        %4019 = vmatpush1.msra.mxu0 %v701
        %4020 = vmatprep.subr.mxu0 %v710
        %4021 = vmatpush1.msra.mxu0 %v709
        %4022 = vmatprep.subr.mxu0 %v718
        %4023 = vmatpush1.msra.mxu0 %v717
        %4024 = vmatprep.subr.mxu0 %v726
        %4025 = vmatpush1.msra.mxu0 %v725
        %4026 = vmatprep.subr.mxu0 %v734
        %4027 = vmatpush1.msra.mxu0 %v733
        %4028 = vmatprep.subr.mxu0 %v742
        %4029 = vmatpush1.msra.mxu0 %v741
        %4030 = vmatprep.subr.mxu0 %v750
        %4031 = vmatpush1.msra.mxu0 %v749
        %4032 = vmatprep.subr.mxu0 %v758
        %4033 = vmatpush1.msra.mxu0 %v757
        %4034 = vmatprep.subr.mxu0 %v766
        %4035 = vmatpush1.msra.mxu0 %v765
        %4036 = vmatprep.subr.mxu0 %v774
        %4037 = vmatpush1.msra.mxu0 %v773
        %4038 = vmatprep.subr.mxu0 %v782
        %4039 = vmatpush1.msra.mxu0 %v781
        %4040 = vmatprep.mubr.f32.mxu0 %v202
        %4041 = vmatmul.mubr.f32.gmra.mrb[0].mxu0 %v201
        %v4042 = vpop.f32.mrb[0].mxu0
        %v4043 = vadd.f32 %v3882, %v4042
        %v4044 = vpop.f32.mrb[0].mxu0
        %v4045 = vadd.f32 %v3884, %v4044
        %4046 = vmatprep.mubr.f32.mxu0 %v206
        %4047 = vmatmul.mubr.f32.gmra.mrb[0].mxu0 %v205
        %v4048 = vpop.f32.mrb[0].mxu0
        %v4049 = vadd.f32 %v3888, %v4048
        %v4050 = vpop.f32.mrb[0].mxu0
        %v4051 = vadd.f32 %v3890, %v4050
        %4052 = vmatprep.mubr.f32.mxu0 %v210
        %4053 = vmatmul.mubr.f32.gmra.mrb[0].mxu0 %v209
        %v4054 = vpop.f32.mrb[0].mxu0
        %v4055 = vadd.f32 %v3894, %v4054
        %v4056 = vpop.f32.mrb[0].mxu0
        %v4057 = vadd.f32 %v3896, %v4056
        %4058 = vmatprep.mubr.f32.mxu0 %v214
        %4059 = vmatmul.mubr.f32.gmra.mrb[0].mxu0 %v213
        %v4060 = vpop.f32.mrb[0].mxu0
        %v4061 = vadd.f32 %v3900, %v4060
        %v4062 = vpop.f32.mrb[0].mxu0
        %v4063 = vadd.f32 %v3902, %v4062
        %4064 = vmatprep.mubr.f32.mxu0 %v218
        %4065 = vmatmul.mubr.f32.gmra.mrb[0].mxu0 %v217
        %v4066 = vpop.f32.mrb[0].mxu0
        %v4067 = vadd.f32 %v3906, %v4066
        %v4068 = vpop.f32.mrb[0].mxu0
        %v4069 = vadd.f32 %v3908, %v4068
        %4070 = vmatprep.mubr.f32.mxu0 %v222
        %4071 = vmatmul.mubr.f32.gmra.mrb[0].mxu0 %v221
        %v4072 = vpop.f32.mrb[0].mxu0
        %v4073 = vadd.f32 %v3912, %v4072
        %v4074 = vpop.f32.mrb[0].mxu0
        %v4075 = vadd.f32 %v3914, %v4074
        %4076 = vmatprep.mubr.f32.mxu0 %v226
        %4077 = vmatmul.mubr.f32.gmra.mrb[0].mxu0 %v225
        %v4078 = vpop.f32.mrb[0].mxu0
        %v4079 = vadd.f32 %v3918, %v4078
        %v4080 = vpop.f32.mrb[0].mxu0
        %v4081 = vadd.f32 %v3920, %v4080
        %4082 = vmatprep.mubr.f32.mxu0 %v230
        %4083 = vmatmul.mubr.f32.gmra.mrb[0].mxu0 %v229
        %v4084 = vpop.f32.mrb[0].mxu0
        %v4085 = vadd.f32 %v3924, %v4084
        %v4086 = vpop.f32.mrb[0].mxu0
        %v4087 = vadd.f32 %v3926, %v4086
        %4088 = vmatprep.mubr.f32.mxu0 %v234
        %4089 = vmatmul.mubr.f32.gmra.mrb[0].mxu0 %v233
        %v4090 = vpop.f32.mrb[0].mxu0
        %v4091 = vadd.f32 %v3930, %v4090
        %v4092 = vpop.f32.mrb[0].mxu0
        %v4093 = vadd.f32 %v3932, %v4092
        %4094 = vmatprep.mubr.f32.mxu0 %v238
        %4095 = vmatmul.mubr.f32.gmra.mrb[0].mxu0 %v237
        %v4096 = vpop.f32.mrb[0].mxu0
        %v4097 = vadd.f32 %v3936, %v4096
        %v4098 = vpop.f32.mrb[0].mxu0
        %v4099 = vadd.f32 %v3938, %v4098
        %4100 = vmatprep.mubr.f32.mxu0 %v242
        %4101 = vmatmul.mubr.f32.gmra.mrb[0].mxu0 %v241
        %v4102 = vpop.f32.mrb[0].mxu0
        %v4103 = vadd.f32 %v3942, %v4102
        %v4104 = vpop.f32.mrb[0].mxu0
        %v4105 = vadd.f32 %v3944, %v4104
        %4106 = vmatprep.mubr.f32.mxu0 %v246
        %4107 = vmatmul.mubr.f32.gmra.mrb[0].mxu0 %v245
        %v4108 = vpop.f32.mrb[0].mxu0
        %v4109 = vadd.f32 %v3948, %v4108
        %v4110 = vpop.f32.mrb[0].mxu0
        %v4111 = vadd.f32 %v3950, %v4110
        %4112 = vmatprep.mubr.f32.mxu0 %v250
        %4113 = vmatmul.mubr.f32.gmra.mrb[0].mxu0 %v249
        %v4114 = vpop.f32.mrb[0].mxu0
        %v4115 = vadd.f32 %v3954, %v4114
        %v4116 = vpop.f32.mrb[0].mxu0
        %v4117 = vadd.f32 %v3956, %v4116
        %4118 = vmatprep.mubr.f32.mxu0 %v254
        %4119 = vmatmul.mubr.f32.gmra.mrb[0].mxu0 %v253
        %v4120 = vpop.f32.mrb[0].mxu0
        %v4121 = vadd.f32 %v3960, %v4120
        %v4122 = vpop.f32.mrb[0].mxu0
        %v4123 = vadd.f32 %v3962, %v4122
        %4124 = vmatprep.mubr.f32.mxu0 %v258
        %4125 = vmatmul.mubr.f32.gmra.mrb[0].mxu0 %v257
        %v4126 = vpop.f32.mrb[0].mxu0
        %v4127 = vadd.f32 %v3966, %v4126
        %v4128 = vpop.f32.mrb[0].mxu0
        %v4129 = vadd.f32 %v3968, %v4128
        %4130 = vmatprep.mubr.f32.mxu0 %v262
        %4131 = vmatmul.mubr.f32.gmra.mrb[0].mxu0 %v261
        %v4132 = vpop.f32.mrb[0].mxu0
        %v4133 = vadd.f32 %v3972, %v4132
        %v4134 = vpop.f32.mrb[0].mxu0
        %v4135 = vadd.f32 %v3974, %v4134
        %4136 = vdwg.mxu0
        %v4137 = vmul.f32 %v3077, %v3077
        %v4138 = vmul.f32 %v3079, %v3079
        %v4139 = vmul.f32 %v3399, %v3399
        %v4140 = vmul.f32 %v3401, %v3401
        %v4141 = vmul.f32 %v3083, %v3083
        %v4142 = vmul.f32 %v3085, %v3085
        %v4143 = vmul.f32 %v3405, %v3405
        %v4144 = vmul.f32 %v3407, %v3407
        %v4145 = vmul.f32 %v3089, %v3089
        %v4146 = vmul.f32 %v3091, %v3091
        %v4147 = vmul.f32 %v3411, %v3411
        %v4148 = vmul.f32 %v3413, %v3413
        %v4149 = vmul.f32 %v3095, %v3095
        %v4150 = vmul.f32 %v3097, %v3097
        %v4151 = vmul.f32 %v3417, %v3417
        %v4152 = vmul.f32 %v3419, %v3419
        %v4153 = vmul.f32 %v3101, %v3101
        %v4154 = vmul.f32 %v3103, %v3103
        %v4155 = vmul.f32 %v3423, %v3423
        %v4156 = vmul.f32 %v3425, %v3425
        %v4157 = vmul.f32 %v3107, %v3107
        %v4158 = vmul.f32 %v3109, %v3109
        %v4159 = vmul.f32 %v3429, %v3429
        %v4160 = vmul.f32 %v3431, %v3431
        %v4161 = vmul.f32 %v3113, %v3113
        %v4162 = vmul.f32 %v3115, %v3115
        %v4163 = vmul.f32 %v3435, %v3435
        %v4164 = vmul.f32 %v3437, %v3437
        %v4165 = vmul.f32 %v3119, %v3119
        %v4166 = vmul.f32 %v3121, %v3121
        %v4167 = vmul.f32 %v3441, %v3441
        %v4168 = vmul.f32 %v3443, %v3443
        %v4169 = vmul.f32 %v3125, %v3125
        %v4170 = vmul.f32 %v3127, %v3127
        %v4171 = vmul.f32 %v3447, %v3447
        %v4172 = vmul.f32 %v3449, %v3449
        %v4173 = vmul.f32 %v3131, %v3131
        %v4174 = vmul.f32 %v3133, %v3133
        %v4175 = vmul.f32 %v3453, %v3453
        %v4176 = vmul.f32 %v3455, %v3455
        %v4177 = vmul.f32 %v3137, %v3137
        %v4178 = vmul.f32 %v3139, %v3139
        %v4179 = vmul.f32 %v3459, %v3459
        %v4180 = vmul.f32 %v3461, %v3461
        %v4181 = vmul.f32 %v3143, %v3143
        %v4182 = vmul.f32 %v3145, %v3145
        %v4183 = vmul.f32 %v3465, %v3465
        %v4184 = vmul.f32 %v3467, %v3467
        %v4185 = vmul.f32 %v3149, %v3149
        %v4186 = vmul.f32 %v3151, %v3151
        %v4187 = vmul.f32 %v3471, %v3471
        %v4188 = vmul.f32 %v3473, %v3473
        %v4189 = vmul.f32 %v3155, %v3155
        %v4190 = vmul.f32 %v3157, %v3157
        %v4191 = vmul.f32 %v3477, %v3477
        %v4192 = vmul.f32 %v3479, %v3479
        %v4193 = vmul.f32 %v3161, %v3161
        %v4194 = vmul.f32 %v3163, %v3163
        %v4195 = vmul.f32 %v3483, %v3483
        %v4196 = vmul.f32 %v3485, %v3485
        %v4197 = vmul.f32 %v3167, %v3167
        %v4198 = vmul.f32 %v3169, %v3169
        %v4199 = vmul.f32 %v3489, %v3489
        %v4200 = vmul.f32 %v3491, %v3491
        %v4201 = vmul.f32 %v3721, %v3721
        %v4202 = vmul.f32 %v3723, %v3723
        %v4203 = vmul.f32 %v4043, %v4043
        %v4204 = vmul.f32 %v4045, %v4045
        %v4205 = vmul.f32 %v3727, %v3727
        %v4206 = vmul.f32 %v3729, %v3729
        %v4207 = vmul.f32 %v4049, %v4049
        %v4208 = vmul.f32 %v4051, %v4051
        %v4209 = vmul.f32 %v3733, %v3733
        %v4210 = vmul.f32 %v3735, %v3735
        %v4211 = vmul.f32 %v4055, %v4055
        %v4212 = vmul.f32 %v4057, %v4057
        %v4213 = vmul.f32 %v3739, %v3739
        %v4214 = vmul.f32 %v3741, %v3741
        %v4215 = vmul.f32 %v4061, %v4061
        %v4216 = vmul.f32 %v4063, %v4063
        %v4217 = vmul.f32 %v3745, %v3745
        %v4218 = vmul.f32 %v3747, %v3747
        %v4219 = vmul.f32 %v4067, %v4067
        %v4220 = vmul.f32 %v4069, %v4069
        %v4221 = vmul.f32 %v3751, %v3751
        %v4222 = vmul.f32 %v3753, %v3753
        %v4223 = vmul.f32 %v4073, %v4073
        %v4224 = vmul.f32 %v4075, %v4075
        %v4225 = vmul.f32 %v3757, %v3757
        %v4226 = vmul.f32 %v3759, %v3759
        %v4227 = vmul.f32 %v4079, %v4079
        %v4228 = vmul.f32 %v4081, %v4081
        %v4229 = vmul.f32 %v3763, %v3763
        %v4230 = vmul.f32 %v3765, %v3765
        %v4231 = vmul.f32 %v4085, %v4085
        %v4232 = vmul.f32 %v4087, %v4087
        %v4233 = vmul.f32 %v3769, %v3769
        %v4234 = vmul.f32 %v3771, %v3771
        %v4235 = vmul.f32 %v4091, %v4091
        %v4236 = vmul.f32 %v4093, %v4093
        %v4237 = vmul.f32 %v3775, %v3775
        %v4238 = vmul.f32 %v3777, %v3777
        %v4239 = vmul.f32 %v4097, %v4097
        %v4240 = vmul.f32 %v4099, %v4099
        %v4241 = vmul.f32 %v3781, %v3781
        %v4242 = vmul.f32 %v3783, %v3783
        %v4243 = vmul.f32 %v4103, %v4103
        %v4244 = vmul.f32 %v4105, %v4105
        %v4245 = vmul.f32 %v3787, %v3787
        %v4246 = vmul.f32 %v3789, %v3789
        %v4247 = vmul.f32 %v4109, %v4109
        %v4248 = vmul.f32 %v4111, %v4111
        %v4249 = vmul.f32 %v3793, %v3793
        %v4250 = vmul.f32 %v3795, %v3795
        %v4251 = vmul.f32 %v4115, %v4115
        %v4252 = vmul.f32 %v4117, %v4117
        %v4253 = vmul.f32 %v3799, %v3799
        %v4254 = vmul.f32 %v3801, %v3801
        %v4255 = vmul.f32 %v4121, %v4121
        %v4256 = vmul.f32 %v4123, %v4123
        %v4257 = vmul.f32 %v3805, %v3805
        %v4258 = vmul.f32 %v3807, %v3807
        %v4259 = vmul.f32 %v4127, %v4127
        %v4260 = vmul.f32 %v4129, %v4129
        %v4261 = vmul.f32 %v3811, %v3811
        %v4262 = vmul.f32 %v3813, %v3813
        %v4263 = vmul.f32 %v4133, %v4133
        %v4264 = vmul.f32 %v4135, %v4135
        %v4265 = vadd.f32 %v4137, %v4201
        %v4266 = vadd.f32 %v4138, %v4202
        %v4267 = vadd.f32 %v4139, %v4203
        %v4268 = vadd.f32 %v4140, %v4204
        %v4269 = vadd.f32 %v4141, %v4205
        %v4270 = vadd.f32 %v4142, %v4206
        %v4271 = vadd.f32 %v4143, %v4207
        %v4272 = vadd.f32 %v4144, %v4208
        %v4273 = vadd.f32 %v4145, %v4209
        %v4274 = vadd.f32 %v4146, %v4210
        %v4275 = vadd.f32 %v4147, %v4211
        %v4276 = vadd.f32 %v4148, %v4212
        %v4277 = vadd.f32 %v4149, %v4213
        %v4278 = vadd.f32 %v4150, %v4214
        %v4279 = vadd.f32 %v4151, %v4215
        %v4280 = vadd.f32 %v4152, %v4216
        %v4281 = vadd.f32 %v4153, %v4217
        %v4282 = vadd.f32 %v4154, %v4218
        %v4283 = vadd.f32 %v4155, %v4219
        %v4284 = vadd.f32 %v4156, %v4220
        %v4285 = vadd.f32 %v4157, %v4221
        %v4286 = vadd.f32 %v4158, %v4222
        %v4287 = vadd.f32 %v4159, %v4223
        %v4288 = vadd.f32 %v4160, %v4224
        %v4289 = vadd.f32 %v4161, %v4225
        %v4290 = vadd.f32 %v4162, %v4226
        %v4291 = vadd.f32 %v4163, %v4227
        %v4292 = vadd.f32 %v4164, %v4228
        %v4293 = vadd.f32 %v4165, %v4229
        %v4294 = vadd.f32 %v4166, %v4230
        %v4295 = vadd.f32 %v4167, %v4231
        %v4296 = vadd.f32 %v4168, %v4232
        %v4297 = vadd.f32 %v4169, %v4233
        %v4298 = vadd.f32 %v4170, %v4234
        %v4299 = vadd.f32 %v4171, %v4235
        %v4300 = vadd.f32 %v4172, %v4236
        %v4301 = vadd.f32 %v4173, %v4237
        %v4302 = vadd.f32 %v4174, %v4238
        %v4303 = vadd.f32 %v4175, %v4239
        %v4304 = vadd.f32 %v4176, %v4240
        %v4305 = vadd.f32 %v4177, %v4241
        %v4306 = vadd.f32 %v4178, %v4242
        %v4307 = vadd.f32 %v4179, %v4243
        %v4308 = vadd.f32 %v4180, %v4244
        %v4309 = vadd.f32 %v4181, %v4245
        %v4310 = vadd.f32 %v4182, %v4246
        %v4311 = vadd.f32 %v4183, %v4247
        %v4312 = vadd.f32 %v4184, %v4248
        %v4313 = vadd.f32 %v4185, %v4249
        %v4314 = vadd.f32 %v4186, %v4250
        %v4315 = vadd.f32 %v4187, %v4251
        %v4316 = vadd.f32 %v4188, %v4252
        %v4317 = vadd.f32 %v4189, %v4253
        %v4318 = vadd.f32 %v4190, %v4254
        %v4319 = vadd.f32 %v4191, %v4255
        %v4320 = vadd.f32 %v4192, %v4256
        %v4321 = vadd.f32 %v4193, %v4257
        %v4322 = vadd.f32 %v4194, %v4258
        %v4323 = vadd.f32 %v4195, %v4259
        %v4324 = vadd.f32 %v4196, %v4260
        %v4325 = vadd.f32 %v4197, %v4261
        %v4326 = vadd.f32 %v4198, %v4262
        %v4327 = vadd.f32 %v4199, %v4263
        %v4328 = vadd.f32 %v4200, %v4264
        %v4329 = vld [vmem:[#allocation5] sm:$0xff]
        %v4330 = vld [vmem:[#allocation5 + $0x8] sm:$0xff]
        %v4331 = vld [vmem:[#allocation5 + $0x10] sm:$0xff]
        %v4332 = vld [vmem:[#allocation5 + $0x18] sm:$0xff]
        %v4333 = vld [vmem:[#allocation5 + $0x20] sm:$0xff]
        %v4334 = vld [vmem:[#allocation5 + $0x28] sm:$0xff]
        %v4335 = vld [vmem:[#allocation5 + $0x30] sm:$0xff]
        %v4336 = vld [vmem:[#allocation5 + $0x38] sm:$0xff]
        %v4337 = vld [vmem:[#allocation5 + $0x40] sm:$0xff]
        %v4338 = vld [vmem:[#allocation5 + $0x48] sm:$0xff]
        %v4339 = vld [vmem:[#allocation5 + $0x50] sm:$0xff]
        %v4340 = vld [vmem:[#allocation5 + $0x58] sm:$0xff]
        %v4341 = vld [vmem:[#allocation5 + $0x60] sm:$0xff]
        %v4342 = vld [vmem:[#allocation5 + $0x68] sm:$0xff]
        %v4343 = vld [vmem:[#allocation5 + $0x70] sm:$0xff]
        %v4344 = vld [vmem:[#allocation5 + $0x78] sm:$0xff]
        %v4345 = vld [vmem:[#allocation5 + $0x80] sm:$0xff]
        %v4346 = vld [vmem:[#allocation5 + $0x88] sm:$0xff]
        %v4347 = vld [vmem:[#allocation5 + $0x90] sm:$0xff]
        %v4348 = vld [vmem:[#allocation5 + $0x98] sm:$0xff]
        %v4349 = vld [vmem:[#allocation5 + $0xa0] sm:$0xff]
        %v4350 = vld [vmem:[#allocation5 + $0xa8] sm:$0xff]
        %v4351 = vld [vmem:[#allocation5 + $0xb0] sm:$0xff]
        %v4352 = vld [vmem:[#allocation5 + $0xb8] sm:$0xff]
        %v4353 = vld [vmem:[#allocation5 + $0xc0] sm:$0xff]
        %v4354 = vld [vmem:[#allocation5 + $0xc8] sm:$0xff]
        %v4355 = vld [vmem:[#allocation5 + $0xd0] sm:$0xff]
        %v4356 = vld [vmem:[#allocation5 + $0xd8] sm:$0xff]
        %v4357 = vld [vmem:[#allocation5 + $0xe0] sm:$0xff]
        %v4358 = vld [vmem:[#allocation5 + $0xe8] sm:$0xff]
        %v4359 = vld [vmem:[#allocation5 + $0xf0] sm:$0xff]
        %v4360 = vld [vmem:[#allocation5 + $0xf8] sm:$0xff]
        %4361 = vmatprep.subr.mxu0 %v4266
        %4362 = vmatpush1.xpose.msra.mxu0 %v4265
        %4363 = vmatprep.subr.mxu0 %v4270
        %4364 = vmatpush1.xpose.msra.mxu0 %v4269
        %4365 = vmatprep.subr.mxu0 %v4274
        %4366 = vmatpush1.xpose.msra.mxu0 %v4273
        %4367 = vmatprep.subr.mxu0 %v4278
        %4368 = vmatpush1.xpose.msra.mxu0 %v4277
        %4369 = vmatprep.subr.mxu0 %v4282
        %4370 = vmatpush1.xpose.msra.mxu0 %v4281
        %4371 = vmatprep.subr.mxu0 %v4286
        %4372 = vmatpush1.xpose.msra.mxu0 %v4285
        %4373 = vmatprep.subr.mxu0 %v4290
        %4374 = vmatpush1.xpose.msra.mxu0 %v4289
        %4375 = vmatprep.subr.mxu0 %v4294
        %4376 = vmatpush1.xpose.msra.mxu0 %v4293
        %4377 = vmatprep.subr.mxu0 %v4298
        %4378 = vmatpush1.xpose.msra.mxu0 %v4297
        %4379 = vmatprep.subr.mxu0 %v4302
        %4380 = vmatpush1.xpose.msra.mxu0 %v4301
        %4381 = vmatprep.subr.mxu0 %v4306
        %4382 = vmatpush1.xpose.msra.mxu0 %v4305
        %4383 = vmatprep.subr.mxu0 %v4310
        %4384 = vmatpush1.xpose.msra.mxu0 %v4309
        %4385 = vmatprep.subr.mxu0 %v4314
        %4386 = vmatpush1.xpose.msra.mxu0 %v4313
        %4387 = vmatprep.subr.mxu0 %v4318
        %4388 = vmatpush1.xpose.msra.mxu0 %v4317
        %4389 = vmatprep.subr.mxu0 %v4322
        %4390 = vmatpush1.xpose.msra.mxu0 %v4321
        %4391 = vmatprep.subr.mxu0 %v4326
        %4392 = vmatpush1.xpose.msra.mxu0 %v4325
        %4393 = vmatprep.subr.mxu0 0.0
        %4394 = vmatpush1.xpose.msra.mxu0 0.0
        %4395 = vmatprep.subr.mxu0 0.0
        %4396 = vmatpush1.xpose.msra.mxu0 0.0
        %4397 = vmatprep.subr.mxu0 0.0
        %4398 = vmatpush1.xpose.msra.mxu0 0.0
        %4399 = vmatprep.subr.mxu0 0.0
        %4400 = vmatpush1.xpose.msra.mxu0 0.0
        %4401 = vmatprep.subr.mxu0 0.0
        %4402 = vmatpush1.xpose.msra.mxu0 0.0
        %4403 = vmatprep.subr.mxu0 0.0
        %4404 = vmatpush1.xpose.msra.mxu0 0.0
        %4405 = vmatprep.subr.mxu0 0.0
        %4406 = vmatpush1.xpose.msra.mxu0 0.0
        %4407 = vmatprep.subr.mxu0 0.0
        %4408 = vmatpush1.xpose.msra.mxu0 0.0
        %4409 = vmatprep.subr.mxu0 0.0
        %4410 = vmatpush1.xpose.msra.mxu0 0.0
        %4411 = vmatprep.subr.mxu0 0.0
        %4412 = vmatpush1.xpose.msra.mxu0 0.0
        %4413 = vmatprep.subr.mxu0 0.0
        %4414 = vmatpush1.xpose.msra.mxu0 0.0
        %4415 = vmatprep.subr.mxu0 0.0
        %4416 = vmatpush1.xpose.msra.mxu0 0.0
        %4417 = vmatprep.subr.mxu0 0.0
        %4418 = vmatpush1.xpose.msra.mxu0 0.0
        %4419 = vmatprep.subr.mxu0 0.0
        %4420 = vmatpush1.xpose.msra.mxu0 0.0
        %4421 = vmatprep.subr.mxu0 0.0
        %4422 = vmatpush1.xpose.msra.mxu0 0.0
        %4423 = vmatprep.subr.mxu0 0.0
        %4424 = vmatpush1.xpose.msra.mxu0 0.0
        %4425 = vmatprep.mubr.f32.mxu0 %v4330
        %4426 = vmatmul.mubr.f32.gmra.mrb[0].mxu0 %v4329
        %v4427 = vpop.f32.mrb[0].mxu0
        %v4428 = vadd.f32 0.0, %v4427
        %v4429 = vpop.f32.mrb[0].mxu0
        %4430 = vmatprep.mubr.f32.mxu0 %v4334
        %4431 = vmatmul.mubr.f32.gmra.mrb[0].mxu0 %v4333
        %v4432 = vpop.f32.mrb[0].mxu0
        %v4433 = vadd.f32 0.0, %v4432
        %v4434 = vpop.f32.mrb[0].mxu0
        %4435 = vmatprep.mubr.f32.mxu0 %v4338
        %4436 = vmatmul.mubr.f32.gmra.mrb[0].mxu0 %v4337
        %v4437 = vpop.f32.mrb[0].mxu0
        %v4438 = vadd.f32 0.0, %v4437
        %v4439 = vpop.f32.mrb[0].mxu0
        %4440 = vmatprep.mubr.f32.mxu0 %v4342
        %4441 = vmatmul.mubr.f32.gmra.mrb[0].mxu0 %v4341
        %v4442 = vpop.f32.mrb[0].mxu0
        %v4443 = vadd.f32 0.0, %v4442
        %v4444 = vpop.f32.mrb[0].mxu0
        %4445 = vmatprep.mubr.f32.mxu0 %v4346
        %4446 = vmatmul.mubr.f32.gmra.mrb[0].mxu0 %v4345
        %v4447 = vpop.f32.mrb[0].mxu0
        %v4448 = vadd.f32 0.0, %v4447
        %v4449 = vpop.f32.mrb[0].mxu0
        %4450 = vmatprep.mubr.f32.mxu0 %v4350
        %4451 = vmatmul.mubr.f32.gmra.mrb[0].mxu0 %v4349
        %v4452 = vpop.f32.mrb[0].mxu0
        %v4453 = vadd.f32 0.0, %v4452
        %v4454 = vpop.f32.mrb[0].mxu0
        %4455 = vmatprep.mubr.f32.mxu0 %v4354
        %4456 = vmatmul.mubr.f32.gmra.mrb[0].mxu0 %v4353
        %v4457 = vpop.f32.mrb[0].mxu0
        %v4458 = vadd.f32 0.0, %v4457
        %v4459 = vpop.f32.mrb[0].mxu0
        %4460 = vmatprep.mubr.f32.mxu0 %v4358
        %4461 = vmatmul.mubr.f32.gmra.mrb[0].mxu0 %v4357
        %v4462 = vpop.f32.mrb[0].mxu0
        %v4463 = vadd.f32 0.0, %v4462
        %v4464 = vpop.f32.mrb[0].mxu0
        %4465 = vdwg.mxu0
        %4466 = vmatprep.subr.mxu0 %v4268
        %4467 = vmatpush1.xpose.msra.mxu0 %v4267
        %4468 = vmatprep.subr.mxu0 %v4272
        %4469 = vmatpush1.xpose.msra.mxu0 %v4271
        %4470 = vmatprep.subr.mxu0 %v4276
        %4471 = vmatpush1.xpose.msra.mxu0 %v4275
        %4472 = vmatprep.subr.mxu0 %v4280
        %4473 = vmatpush1.xpose.msra.mxu0 %v4279
        %4474 = vmatprep.subr.mxu0 %v4284
        %4475 = vmatpush1.xpose.msra.mxu0 %v4283
        %4476 = vmatprep.subr.mxu0 %v4288
        %4477 = vmatpush1.xpose.msra.mxu0 %v4287
        %4478 = vmatprep.subr.mxu0 %v4292
        %4479 = vmatpush1.xpose.msra.mxu0 %v4291
        %4480 = vmatprep.subr.mxu0 %v4296
        %4481 = vmatpush1.xpose.msra.mxu0 %v4295
        %4482 = vmatprep.subr.mxu0 %v4300
        %4483 = vmatpush1.xpose.msra.mxu0 %v4299
        %4484 = vmatprep.subr.mxu0 %v4304
        %4485 = vmatpush1.xpose.msra.mxu0 %v4303
        %4486 = vmatprep.subr.mxu0 %v4308
        %4487 = vmatpush1.xpose.msra.mxu0 %v4307
        %4488 = vmatprep.subr.mxu0 %v4312
        %4489 = vmatpush1.xpose.msra.mxu0 %v4311
        %4490 = vmatprep.subr.mxu0 %v4316
        %4491 = vmatpush1.xpose.msra.mxu0 %v4315
        %4492 = vmatprep.subr.mxu0 %v4320
        %4493 = vmatpush1.xpose.msra.mxu0 %v4319
        %4494 = vmatprep.subr.mxu0 %v4324
        %4495 = vmatpush1.xpose.msra.mxu0 %v4323
        %4496 = vmatprep.subr.mxu0 %v4328
        %4497 = vmatpush1.xpose.msra.mxu0 %v4327
        %4498 = vmatprep.subr.mxu0 0.0
        %4499 = vmatpush1.xpose.msra.mxu0 0.0
        %4500 = vmatprep.subr.mxu0 0.0
        %4501 = vmatpush1.xpose.msra.mxu0 0.0
        %4502 = vmatprep.subr.mxu0 0.0
        %4503 = vmatpush1.xpose.msra.mxu0 0.0
        %4504 = vmatprep.subr.mxu0 0.0
        %4505 = vmatpush1.xpose.msra.mxu0 0.0
        %4506 = vmatprep.subr.mxu0 0.0
        %4507 = vmatpush1.xpose.msra.mxu0 0.0
        %4508 = vmatprep.subr.mxu0 0.0
        %4509 = vmatpush1.xpose.msra.mxu0 0.0
        %4510 = vmatprep.subr.mxu0 0.0
        %4511 = vmatpush1.xpose.msra.mxu0 0.0
        %4512 = vmatprep.subr.mxu0 0.0
        %4513 = vmatpush1.xpose.msra.mxu0 0.0
        %4514 = vmatprep.subr.mxu0 0.0
        %4515 = vmatpush1.xpose.msra.mxu0 0.0
        %4516 = vmatprep.subr.mxu0 0.0
        %4517 = vmatpush1.xpose.msra.mxu0 0.0
        %4518 = vmatprep.subr.mxu0 0.0
        %4519 = vmatpush1.xpose.msra.mxu0 0.0
        %4520 = vmatprep.subr.mxu0 0.0
        %4521 = vmatpush1.xpose.msra.mxu0 0.0
        %4522 = vmatprep.subr.mxu0 0.0
        %4523 = vmatpush1.xpose.msra.mxu0 0.0
        %4524 = vmatprep.subr.mxu0 0.0
        %4525 = vmatpush1.xpose.msra.mxu0 0.0
        %4526 = vmatprep.subr.mxu0 0.0
        %4527 = vmatpush1.xpose.msra.mxu0 0.0
        %4528 = vmatprep.subr.mxu0 0.0
        %4529 = vmatpush1.xpose.msra.mxu0 0.0
        %4530 = vmatprep.mubr.f32.mxu0 %v4332
        %4531 = vmatmul.mubr.f32.gmra.mrb[0].mxu0 %v4331
        %v4532 = vpop.f32.mrb[0].mxu0
        %v4533 = vadd.f32 %v4428, %v4532
        %v4534 = vpop.f32.mrb[0].mxu0
        %4535 = vmatprep.mubr.f32.mxu0 %v4336
        %4536 = vmatmul.mubr.f32.gmra.mrb[0].mxu0 %v4335
        %v4537 = vpop.f32.mrb[0].mxu0
        %v4538 = vadd.f32 %v4433, %v4537
        %v4539 = vpop.f32.mrb[0].mxu0
        %4540 = vmatprep.mubr.f32.mxu0 %v4340
        %4541 = vmatmul.mubr.f32.gmra.mrb[0].mxu0 %v4339
        %v4542 = vpop.f32.mrb[0].mxu0
        %v4543 = vadd.f32 %v4438, %v4542
        %v4544 = vpop.f32.mrb[0].mxu0
        %4545 = vmatprep.mubr.f32.mxu0 %v4344
        %4546 = vmatmul.mubr.f32.gmra.mrb[0].mxu0 %v4343
        %v4547 = vpop.f32.mrb[0].mxu0
        %v4548 = vadd.f32 %v4443, %v4547
        %v4549 = vpop.f32.mrb[0].mxu0
        %4550 = vmatprep.mubr.f32.mxu0 %v4348
        %4551 = vmatmul.mubr.f32.gmra.mrb[0].mxu0 %v4347
        %v4552 = vpop.f32.mrb[0].mxu0
        %v4553 = vadd.f32 %v4448, %v4552
        %v4554 = vpop.f32.mrb[0].mxu0
        %4555 = vmatprep.mubr.f32.mxu0 %v4352
        %4556 = vmatmul.mubr.f32.gmra.mrb[0].mxu0 %v4351
        %v4557 = vpop.f32.mrb[0].mxu0
        %v4558 = vadd.f32 %v4453, %v4557
        %v4559 = vpop.f32.mrb[0].mxu0
        %4560 = vmatprep.mubr.f32.mxu0 %v4356
        %4561 = vmatmul.mubr.f32.gmra.mrb[0].mxu0 %v4355
        %v4562 = vpop.f32.mrb[0].mxu0
        %v4563 = vadd.f32 %v4458, %v4562
        %v4564 = vpop.f32.mrb[0].mxu0
        %4565 = vmatprep.mubr.f32.mxu0 %v4360
        %4566 = vmatmul.mubr.f32.gmra.mrb[0].mxu0 %v4359
        %v4567 = vpop.f32.mrb[0].mxu0
        %v4568 = vadd.f32 %v4463, %v4567
        %v4569 = vpop.f32.mrb[0].mxu0
        %4570 = vdwg.mxu0
        %4571 = vst [vmem:[%s193] sm:$0xff] %v4533
        %4572 = vst [vmem:[%s193 + $0x8] sm:$0xff] %v4538
        %4573 = vst [vmem:[%s193 + $0x10] sm:$0xff] %v4543
        %4574 = vst [vmem:[%s193 + $0x18] sm:$0xff] %v4548
        %4575 = vst [vmem:[%s193 + $0x20] sm:$0xff] %v4553
        %4576 = vst [vmem:[%s193 + $0x28] sm:$0xff] %v4558
        %4577 = vst [vmem:[%s193 + $0x30] sm:$0xff] %v4563
        %4578 = vst [vmem:[%s193 + $0x38] sm:$0xff] %v4568
        %s4579 = scalar_lea.vmem %s193, 64 [#allocation7]
        %4580 = vst [vmem:[%s4579] sm:$0xff] %v4533
        %4581 = vst [vmem:[%s4579 + $0x8] sm:$0xff] %v4538
        %4582 = vst [vmem:[%s4579 + $0x10] sm:$0xff] %v4543
        %4583 = vst [vmem:[%s4579 + $0x18] sm:$0xff] %v4548
        %4584 = vst [vmem:[%s4579 + $0x20] sm:$0xff] %v4553
        %4585 = vst [vmem:[%s4579 + $0x28] sm:$0xff] %v4558
        %4586 = vst [vmem:[%s4579 + $0x30] sm:$0xff] %v4563
        %4587 = vst [vmem:[%s4579 + $0x38] sm:$0xff] %v4568
        %s4588 = scalar_lea.vmem %s193, 128 [#allocation7]
        %4589 = vst [vmem:[%s4588] sm:$0xff] %v4533
        %4590 = vst [vmem:[%s4588 + $0x8] sm:$0xff] %v4538
        %4591 = vst [vmem:[%s4588 + $0x10] sm:$0xff] %v4543
        %4592 = vst [vmem:[%s4588 + $0x18] sm:$0xff] %v4548
        %4593 = vst [vmem:[%s4588 + $0x20] sm:$0xff] %v4553
        %4594 = vst [vmem:[%s4588 + $0x28] sm:$0xff] %v4558
        %4595 = vst [vmem:[%s4588 + $0x30] sm:$0xff] %v4563
        %4596 = vst [vmem:[%s4588 + $0x38] sm:$0xff] %v4568
        %s4597 = sand.u32 %s95, 1
        %s4598 = scalar_lea.sflag [#allocation4], %s4597
        %s4599 = sand.u32 %s95, 1
        %s4600 = smul.addr %s4599, 192
        %s4601 = scalar_lea.vmem [#allocation7], %s4600
        // Predicated region
        $region41: #{mel_spectrogram_3channel.1} parent=31 // pred_check
          %p4602 = pneg %p105
        $region42: #{mel_spectrogram_3channel.1} parent=31 // pred_check_branch
          %4604 = sbr.rel (%p4602) target = $region44
        $region43: #{mel_spectrogram_3channel.1} parent=31 // pred_region
          %s4606 = ssub.s32 3072, 3072
          %4607 = vsyncadd %s4598, %s4606
          %s4608 = smul.addr %s19, 24
          %s4609 = smul.addr %s4608, 128
          %s4610 = scalar_lea.hbm %s3, %s4609
          %s4611 = sshll.u32 %s4601, 4
          %s4612 = int_to_ptr.vmem [resolvable:$true] %s4611
          %4617 = dma.vmem_to_hbm [thread:$0]  %s4612, 3072, %s4610, %s4598, 128, 128, 8
        $region44: #{mel_spectrogram_3channel.1} parent=31 // pred_fallthru
          _
      $region32: #{mel_spectrogram_3channel.1} parent=5 // pred_fallthru
        _
      %p4618 = scmp.le.s32.totalorder 2, %s14
      // Predicated region
      $region45: #{mel_spectrogram_3channel.1} parent=5 // pred_check
        %p4619 = pneg %p4618
      $region46: #{mel_spectrogram_3channel.1} parent=5 // pred_check_branch
        %4621 = sbr.rel (%p4619) target = $region48
      $region47: #{mel_spectrogram_3channel.1} parent=5 // pred_region
        %s4622 = ssub.s32 %s14, 2
        // Predicated region
        $region49: #{mel_spectrogram_3channel.1} parent=47 // pred_check
          %p4623 = pneg %p111
        $region50: #{mel_spectrogram_3channel.1} parent=47 // pred_check_branch
          %4625 = sbr.rel (%p4623) target = $region52
        $region51: #{mel_spectrogram_3channel.1} parent=47 // pred_region
          %s4626 = sand.u32 %s96, 1
          %s4627 = scalar_lea.sflag [#allocation4], %s4626
          %s4628 = sand.u32 %s96, 1
          %s4629 = smul.addr %s4628, 192
          %s4630 = scalar_lea.vmem [#allocation7], %s4629
          %4631 = dma.done %s4627, 3072
        $region52: #{mel_spectrogram_3channel.1} parent=47 // pred_fallthru
          _
      $region48: #{mel_spectrogram_3channel.1} parent=5 // pred_fallthru
        _
    $region6: #{mel_spectrogram_3channel.1} parent=1 // loop_footer
      %s18 = sadd.s32 1, %s14
    $region7: #{mel_spectrogram_3channel.1} parent=1 // loop_footer_branch
      %13 = sbr.rel target = $region3
    $region8: #{mel_spectrogram_3channel.1} parent=1 // loop_exit
      _
    %4632 = vsyncpa [#allocation3], 1
    %s4633 = scalar_lea.sflag [#allocation3], 1
    %4634 = vsyncpa %s4633, 1
    %4635 = vsyncpa [#allocation6], 1
    %4636 = vsyncpa [#allocation4], 1
    %s4637 = scalar_lea.sflag [#allocation4], 1
    %4638 = vsyncpa %s4637, 1

</llo_original>
